<compile_context>
chip_gen: v7x
topology: tpu7x:2x2x1
jax: 0.10.0
libtpu: 0.0.40
codegen_flags: <defaults>
</compile_context>

<pallas_src>
import math
import jax
import jax.numpy as jnp
from jax.experimental import pallas as pl
from jax.experimental.pallas import tpu as pltpu


# ----------------------------- shared helpers --------------------------------

def _layernorm(x, w, b, eps=1e-5):          # torch nn.LayerNorm default eps
    mu = jnp.mean(x, axis=-1, keepdims=True)
    var = jnp.mean(jnp.square(x - mu), axis=-1, keepdims=True)
    return (x - mu) * jax.lax.rsqrt(var + eps) * w + b


def _gelu(x):
    # exact (erf) GELU, matching torch.nn.GELU(approximate='none')
    return 0.5 * x * (1.0 + jax.lax.erf(x * (1.0 / math.sqrt(2.0))))


# ------------------------------ fused kernel ---------------------------------

def _make_vit_kernel(N, K, D, num_heads, H4):
    dh = D // num_heads
    scale = 1.0 / math.sqrt(dh)
    bf16 = jnp.bfloat16

    def kernel(patches_ref, pew_ref, peb_ref, pos_ref,
               ln1w_ref, ln1b_ref, qkvw_ref, qkvb_ref, pw_ref, pb_ref,
               ln2w_ref, ln2b_ref, f1w_ref, f1b_ref, f2w_ref, f2b_ref,
               nw_ref, nb_ref, out_ref, z_ref):
        d = pl.program_id(1)

        # --- depth step 0 for this batch element: fused patch + pos embed ---
        @pl.when(d == 0)
        def _():
            z_ref[...] = (jnp.dot(patches_ref[...], pew_ref[...],
                                  preferred_element_type=jnp.float32)
                          + peb_ref[...] + pos_ref[...])

        x = z_ref[...]                                        # (N, D) f32, VMEM-resident

        # ---------------- attention branch: x + Attn(LN1(x)) ----------------
        h = _layernorm(x, ln1w_ref[...], ln1b_ref[...]).astype(bf16)
        qkv = (jnp.dot(h, qkvw_ref[...], preferred_element_type=jnp.float32)
               + qkvb_ref[...])                               # (N, 3D) f32
        q = qkv[:, 0 * D:1 * D]
        k = qkv[:, 1 * D:2 * D]
        v = qkv[:, 2 * D:3 * D]
        pw = pw_ref[...]                                      # (D, D) bf16

        # concat(heads) @ proj_w  ==  sum_h head_h @ proj_w[h*dh:(h+1)*dh, :]
        attn_out = jnp.zeros((N, D), jnp.float32)
        for hh in range(num_heads):
            lo = hh * dh
            qh = q[:, lo:lo + dh].astype(bf16)
            kh = k[:, lo:lo + dh].astype(bf16)
            vh = v[:, lo:lo + dh].astype(bf16)
            att = jax.lax.dot_general(qh, kh, (((1,), (1,)), ((), ())),
                                      preferred_element_type=jnp.float32) * scale
            att = jnp.exp(att - jnp.max(att, axis=-1, keepdims=True))
            att = att * pl.reciprocal(jnp.sum(att, axis=-1, keepdims=True),
                                      approx=True)
            ho = jnp.dot(att.astype(bf16), vh,
                         preferred_element_type=jnp.float32)  # (N, dh) f32
            attn_out = attn_out + jnp.dot(ho.astype(bf16), pw[lo:lo + dh, :],
                                          preferred_element_type=jnp.float32)
        x = x + attn_out + pb_ref[...]

        # ------------------- MLP branch: x + MLP(LN2(x)) ---------------------
        h2 = _layernorm(x, ln2w_ref[...], ln2b_ref[...]).astype(bf16)
        m = (jnp.dot(h2, f1w_ref[...], preferred_element_type=jnp.float32)
             + f1b_ref[...])
        m = _gelu(m)
        m = (jnp.dot(m.astype(bf16), f2w_ref[...],
                     preferred_element_type=jnp.float32) + f2b_ref[...])
        x = x + m

        z_ref[...] = x                                        # carry to next layer

        # --- last depth step: final LayerNorm and write-out to HBM ----------
        @pl.when(d == pl.num_programs(1) - 1)
        def _():
            out_ref[...] = _layernorm(x, nw_ref[...], nb_ref[...])

    return kernel


# ------------------------------ kernel wrapper -------------------------------

def _vmem_limit_bytes(N, K, D, H4):
    bf, f4 = 2, 4
    per_layer = bf * (D * 3 * D + D * D + 2 * D * H4) + f4 * (9 * D + H4)
    invariant = bf * (K * D + N * K) + f4 * (N * D + 5 * D)
    work = f4 * (4 * N * D + 3 * N * D + N * H4 + 2 * N * N)
    total = 2 * (per_layer + invariant) + 2 * work + (16 << 20)
    return int(min(max(total, 32 << 20), 120 << 20))


def vit_encoder_call(patches, p, num_heads):
    B, N, K = patches.shape
    depth = p["qkv_w"].shape[0]
    D = p["pe_w"].shape[1]
    H4 = p["fc1_w"].shape[2]
    kernel = _make_vit_kernel(N, K, D, num_heads, H4)

    def full_spec(shape):             # grid-invariant (same block every step)
        return pl.BlockSpec(shape, lambda b, d, _n=len(shape): (0,) * _n)

    def per_layer(shape):             # stacked on depth; streamed per layer
        return pl.BlockSpec((None,) + shape,
                            lambda b, d, _n=len(shape): (d,) + (0,) * _n)

    return pl.pallas_call(
        kernel,
        out_shape=jax.ShapeDtypeStruct((B, N, D), jnp.float32),
        grid=(B, depth),
        in_specs=[
            pl.BlockSpec((None, N, K), lambda b, d: (b, 0, 0)),   # patches
            full_spec((K, D)), full_spec((1, D)), full_spec((N, D)),
            per_layer((1, D)), per_layer((1, D)),                 # ln1
            per_layer((D, 3 * D)), per_layer((1, 3 * D)),         # qkv
            per_layer((D, D)), per_layer((1, D)),                 # attn proj
            per_layer((1, D)), per_layer((1, D)),                 # ln2
            per_layer((D, H4)), per_layer((1, H4)),               # fc1
            per_layer((H4, D)), per_layer((1, D)),                # fc2
            full_spec((1, D)), full_spec((1, D)),                 # final norm
        ],
        out_specs=pl.BlockSpec((None, N, D), lambda b, d: (b, 0, 0)),
        scratch_shapes=[pltpu.VMEM((N, D), jnp.float32)],         # resident z
        compiler_params=pltpu.CompilerParams(
            dimension_semantics=("parallel", "arbitrary"),
            vmem_limit_bytes=_vmem_limit_bytes(N, K, D, H4)),
    )(patches, p["pe_w"], p["pe_b"], p["pos"],
      p["ln1_w"], p["ln1_b"], p["qkv_w"], p["qkv_b"], p["proj_w"], p["proj_b"],
      p["ln2_w"], p["ln2_b"], p["fc1_w"], p["fc1_b"], p["fc2_w"], p["fc2_b"],
      p["norm_w"], p["norm_b"])


# ------------------------------- full forward --------------------------------

def extract_patches(x, patch_size):
    """NCHW image -> (B, N, C*ph*pw) patch vectors in Conv2d weight order."""
    B, C, H, W = x.shape
    ph, pw = patch_size
    pad_h = (ph - H % ph) % ph
    pad_w = (pw - W % pw) % pw
    xp = jnp.pad(x, ((0, 0), (0, 0), (0, pad_h), (0, pad_w)))
    gh, gw = (H + pad_h) // ph, (W + pad_w) // pw
    patches = xp.reshape(B, C, gh, ph, gw, pw)
    patches = patches.transpose(0, 2, 4, 1, 3, 5).reshape(B, gh * gw, C * ph * pw)
    return patches, (H, W, pad_h, pad_w)


def vit_encoder_forward(x, params, patch_size, num_heads):
    patches, pad_info = extract_patches(x, patch_size)
    n = patches.shape[1]
    p = dict(params)
    p["pos"] = params["pos"][:n]
    out = vit_encoder_call(patches.astype(jnp.bfloat16), p, num_heads)
    return out, pad_info


# ----------------------- pure-JAX reference (validation) ---------------------
# Mirrors the same bf16-operand / f32-accumulation matmul policy as the kernel
# so the comparison isolates kernel-structure bugs; the only intended numeric
# deviations are the approx softmax reciprocal and summation order.

def vit_encoder_reference(x, params, patch_size, num_heads):
    bf16 = jnp.bfloat16
    patches, pad_info = extract_patches(x, patch_size)
    z = (jnp.dot(patches.astype(bf16), params["pe_w"],
                 preferred_element_type=jnp.float32)
         + params["pe_b"] + params["pos"][:patches.shape[1]])
    B, N, D = z.shape
    Hh = num_heads
    dh = D // Hh
    scale = 1.0 / math.sqrt(dh)
    depth = params["qkv_w"].shape[0]
    for l in range(depth):
        h = _layernorm(z, params["ln1_w"][l], params["ln1_b"][l]).astype(bf16)
        qkv = (jnp.einsum("bnd,df->bnf", h, params["qkv_w"][l],
                          preferred_element_type=jnp.float32)
               + params["qkv_b"][l])
        q = qkv[..., 0 * D:1 * D].reshape(B, N, Hh, dh).transpose(0, 2, 1, 3)
        k = qkv[..., 1 * D:2 * D].reshape(B, N, Hh, dh).transpose(0, 2, 1, 3)
        v = qkv[..., 2 * D:3 * D].reshape(B, N, Hh, dh).transpose(0, 2, 1, 3)
        att = jnp.einsum("bhqd,bhkd->bhqk", q.astype(bf16), k.astype(bf16),
                         preferred_element_type=jnp.float32) * scale
        att = jax.nn.softmax(att, axis=-1)
        o = jnp.einsum("bhqk,bhkd->bhqd", att.astype(bf16), v.astype(bf16),
                       preferred_element_type=jnp.float32)
        o = o.transpose(0, 2, 1, 3).reshape(B, N, D)
        z = z + (jnp.einsum("bnd,de->bne", o.astype(bf16), params["proj_w"][l],
                            preferred_element_type=jnp.float32)
                 + params["proj_b"][l])
        h2 = _layernorm(z, params["ln2_w"][l], params["ln2_b"][l]).astype(bf16)
        m = (jnp.einsum("bnd,dh->bnh", h2, params["fc1_w"][l],
                        preferred_element_type=jnp.float32)
             + params["fc1_b"][l])
        m = _gelu(m).astype(bf16)
        z = z + (jnp.einsum("bnh,hd->bnd", m, params["fc2_w"][l],
                            preferred_element_type=jnp.float32)
                 + params["fc2_b"][l])
    return _layernorm(z, params["norm_w"], params["norm_b"]), pad_info


# ----------------------------- parameter init --------------------------------

def init_params(key, in_chans, patch_size, embed_dim, depth, num_heads,
                mlp_ratio, n_patches):
    ph, pw = patch_size
    K = in_chans * ph * pw
    D = embed_dim
    H4 = int(D * mlp_ratio)
    f32, bf16 = jnp.float32, jnp.bfloat16
    ks = jax.random.split(key, 6)

    # Conv2d(in_chans, D, kernel=stride=patch) == linear (K, D) on flat patches.
    conv_w = 0.02 * jax.random.normal(ks[0], (D, in_chans, ph, pw), f32)
    return {
        "pe_w": conv_w.reshape(D, K).T.astype(bf16),                 # (K, D)
        "pe_b": jnp.zeros((1, D), f32),
        "pos": 0.02 * jax.random.normal(ks[1], (n_patches, D), f32),
        "norm_w": jnp.ones((1, D), f32),
        "norm_b": jnp.zeros((1, D), f32),
        # per-layer parameters stacked along a leading depth axis
        "ln1_w": jnp.ones((depth, 1, D), f32),
        "ln1_b": jnp.zeros((depth, 1, D), f32),
        "qkv_w": (0.02 * jax.random.normal(ks[2], (depth, D, 3 * D), f32)).astype(bf16),
        "qkv_b": jnp.zeros((depth, 1, 3 * D), f32),
        "proj_w": (0.02 * jax.random.normal(ks[3], (depth, D, D), f32)).astype(bf16),
        "proj_b": jnp.zeros((depth, 1, D), f32),
        "ln2_w": jnp.ones((depth, 1, D), f32),
        "ln2_b": jnp.zeros((depth, 1, D), f32),
        "fc1_w": (0.02 * jax.random.normal(ks[4], (depth, D, H4), f32)).astype(bf16),
        "fc1_b": jnp.zeros((depth, 1, H4), f32),
        "fc2_w": (0.02 * jax.random.normal(ks[5], (depth, H4, D), f32)).astype(bf16),
        "fc2_b": jnp.zeros((depth, 1, D), f32),
    }


# ----------------------------------- main -------------------------------------

if __name__ == "__main__":
    # Small ViT: img 16x16, patch 4x4 -> 16 patches, dim 128 (full lane width),
    # 3 blocks, 4 heads (dh=32), mlp hidden 512.
    B, C, H, W = 2, 4, 16, 16
    patch_size = (4, 4)
    embed_dim, depth, num_heads, mlp_ratio = 128, 3, 4, 4.0
    gh = (H + patch_size[0] - 1) // patch_size[0]
    gw = (W + patch_size[1] - 1) // patch_size[1]
    n_patches = gh * gw

    key = jax.random.PRNGKey(0)
    kx, kp = jax.random.split(key)
    x = jax.random.normal(kx, (B, C, H, W), jnp.float32)
    params = init_params(kp, C, patch_size, embed_dim, depth, num_heads,
                         mlp_ratio, n_patches)

    out, pad_info = vit_encoder_forward(x, params, patch_size, num_heads)
    out = jax.block_until_ready(out)

    ref, ref_pad = vit_encoder_reference(x, params, patch_size, num_heads)
    ref = jax.block_until_ready(ref)

    assert out.shape == (B, n_patches, embed_dim)
    assert pad_info == ref_pad
    max_err = float(jnp.max(jnp.abs(out - ref)))
    assert max_err < 1e-2, f"mismatch vs reference: {max_err}"

    print("KERNEL_OK")
</pallas_src>

<mosaic_0001>
module attributes {stable_mosaic.version = 11 : i64} {
  func.func @kernel(%arg0: i32, %arg1: i32, %arg2: memref<1x16x64xbf16, #tpu.memory_space<vmem>>, %arg3: memref<64x128xbf16, #tpu.memory_space<vmem>>, %arg4: memref<1x128xf32, #tpu.memory_space<vmem>>, %arg5: memref<16x128xf32, #tpu.memory_space<vmem>>, %arg6: memref<1x1x128xf32, #tpu.memory_space<vmem>>, %arg7: memref<1x1x128xf32, #tpu.memory_space<vmem>>, %arg8: memref<1x128x384xbf16, #tpu.memory_space<vmem>>, %arg9: memref<1x1x384xf32, #tpu.memory_space<vmem>>, %arg10: memref<1x128x128xbf16, #tpu.memory_space<vmem>>, %arg11: memref<1x1x128xf32, #tpu.memory_space<vmem>>, %arg12: memref<1x1x128xf32, #tpu.memory_space<vmem>>, %arg13: memref<1x1x128xf32, #tpu.memory_space<vmem>>, %arg14: memref<1x128x512xbf16, #tpu.memory_space<vmem>>, %arg15: memref<1x1x512xf32, #tpu.memory_space<vmem>>, %arg16: memref<1x512x128xbf16, #tpu.memory_space<vmem>>, %arg17: memref<1x1x128xf32, #tpu.memory_space<vmem>>, %arg18: memref<1x128xf32, #tpu.memory_space<vmem>>, %arg19: memref<1x128xf32, #tpu.memory_space<vmem>>, %arg20: memref<1x16x128xf32, #tpu.memory_space<vmem>>, %arg21: memref<16x128xf32, #tpu.memory_space<vmem>>) attributes {dimension_semantics = [#tpu.dimension_semantics<parallel>, #tpu.dimension_semantics<arbitrary>], iteration_bounds = array<i64: 2, 3>, scalar_prefetch = 0 : i64, scratch_operands = 1 : i64, tpu.core_type = #tpu.core_type<tc>, window_params = [{transform_indices = @transform_0, window_bounds = array<i64: 1, 16, 64>}, {pipeline_mode = #tpu.pipeline_mode<synchronous>, transform_indices = @transform_1, window_bounds = array<i64: 64, 128>}, {pipeline_mode = #tpu.pipeline_mode<synchronous>, transform_indices = @transform_2, window_bounds = array<i64: 1, 128>}, {pipeline_mode = #tpu.pipeline_mode<synchronous>, transform_indices = @transform_3, window_bounds = array<i64: 16, 128>}, {transform_indices = @transform_4, window_bounds = array<i64: 1, 1, 128>}, {transform_indices = @transform_5, window_bounds = array<i64: 1, 1, 128>}, {transform_indices = @transform_6, window_bounds = array<i64: 1, 128, 384>}, {transform_indices = @transform_7, window_bounds = array<i64: 1, 1, 384>}, {transform_indices = @transform_8, window_bounds = array<i64: 1, 128, 128>}, {transform_indices = @transform_9, window_bounds = array<i64: 1, 1, 128>}, {transform_indices = @transform_10, window_bounds = array<i64: 1, 1, 128>}, {transform_indices = @transform_11, window_bounds = array<i64: 1, 1, 128>}, {transform_indices = @transform_12, window_bounds = array<i64: 1, 128, 512>}, {transform_indices = @transform_13, window_bounds = array<i64: 1, 1, 512>}, {transform_indices = @transform_14, window_bounds = array<i64: 1, 512, 128>}, {transform_indices = @transform_15, window_bounds = array<i64: 1, 1, 128>}, {pipeline_mode = #tpu.pipeline_mode<synchronous>, transform_indices = @transform_16, window_bounds = array<i64: 1, 128>}, {pipeline_mode = #tpu.pipeline_mode<synchronous>, transform_indices = @transform_17, window_bounds = array<i64: 1, 128>}, {transform_indices = @transform_18, window_bounds = array<i64: 1, 16, 128>}]} {
    %c0_i32 = arith.constant 0 : i32
    %0 = arith.cmpi eq, %arg1, %c0_i32 : i32
    %1 = arith.extui %0 : i1 to i32
    %c0_i32_0 = arith.constant 0 : i32
    %2 = arith.cmpi ne, %1, %c0_i32_0 : i32
    scf.if %2 {
      %c0_81 = arith.constant 0 : index
      %c0_82 = arith.constant 0 : index
      %c0_83 = arith.constant 0 : index
      %204 = vector.load %arg2[%c0_81, %c0_82, %c0_83] : memref<1x16x64xbf16, #tpu.memory_space<vmem>>, vector<1x16x64xbf16>
      %205 = vector.shape_cast %204 : vector<1x16x64xbf16> to vector<16x64xbf16>
      %c0_84 = arith.constant 0 : index
      %c0_85 = arith.constant 0 : index
      %206 = vector.load %arg3[%c0_84, %c0_85] : memref<64x128xbf16, #tpu.memory_space<vmem>>, vector<64x128xbf16>
      %cst_86 = arith.constant dense<0.000000e+00> : vector<16x128xf32>
      %207 = tpu.matmul %205, %206, %cst_86 {dimension_numbers = #tpu.dot_dimension_numbers<[1], [0], [0], [1], [0, 0, 1, 1], [], []>} : vector<16x64xbf16>, vector<64x128xbf16>, vector<16x128xf32> -> vector<16x128xf32>
      %c0_87 = arith.constant 0 : index
      %c0_88 = arith.constant 0 : index
      %208 = vector.load %arg4[%c0_87, %c0_88] : memref<1x128xf32, #tpu.memory_space<vmem>>, vector<1x128xf32>
      %209 = vector.broadcast %208 : vector<1x128xf32> to vector<16x128xf32>
      %210 = arith.addf %207, %209 : vector<16x128xf32>
      %c0_89 = arith.constant 0 : index
      %c0_90 = arith.constant 0 : index
      %211 = vector.load %arg5[%c0_89, %c0_90] : memref<16x128xf32, #tpu.memory_space<vmem>>, vector<16x128xf32>
      %212 = arith.addf %210, %211 : vector<16x128xf32>
      %c0_91 = arith.constant 0 : index
      %c0_92 = arith.constant 0 : index
      %213 = vector.load %arg21[%c0_91, %c0_92] : memref<16x128xf32, #tpu.memory_space<vmem>>, vector<16x128xf32>
      tpu.vector_store %arg21[%c0_91, %c0_92], %212 {strides = array<i32>} : memref<16x128xf32, #tpu.memory_space<vmem>>, vector<16x128xf32>,
    } else {
    }
    %c0 = arith.constant 0 : index
    %c0_1 = arith.constant 0 : index
    %3 = vector.load %arg21[%c0, %c0_1] : memref<16x128xf32, #tpu.memory_space<vmem>>, vector<16x128xf32>
    %c0_2 = arith.constant 0 : index
    %c0_3 = arith.constant 0 : index
    %c0_4 = arith.constant 0 : index
    %4 = vector.load %arg6[%c0_2, %c0_3, %c0_4] : memref<1x1x128xf32, #tpu.memory_space<vmem>>, vector<1x1x128xf32>
    %5 = vector.shape_cast %4 : vector<1x1x128xf32> to vector<1x128xf32>
    %c0_5 = arith.constant 0 : index
    %c0_6 = arith.constant 0 : index
    %c0_7 = arith.constant 0 : index
    %6 = vector.load %arg7[%c0_5, %c0_6, %c0_7] : memref<1x1x128xf32, #tpu.memory_space<vmem>>, vector<1x1x128xf32>
    %7 = vector.shape_cast %6 : vector<1x1x128xf32> to vector<1x128xf32>
    %cst = arith.constant dense<0.000000e+00> : vector<16xf32>
    %8 = vector.multi_reduction <add>, %3, %cst [1] : vector<16x128xf32> to vector<16xf32>
    %9 = vector.shape_cast %8 : vector<16xf32> to vector<16x1xf32>
    %cst_8 = arith.constant 1.280000e+02 : f32
    %10 = vector.broadcast %cst_8 : f32 to vector<16x1xf32>
    %11 = arith.divf %9, %10 : vector<16x1xf32>
    %12 = vector.broadcast %11 : vector<16x1xf32> to vector<16x128xf32>
    %13 = arith.subf %3, %12 : vector<16x128xf32>
    %14 = arith.mulf %13, %13 : vector<16x128xf32>
    %cst_9 = arith.constant dense<0.000000e+00> : vector<16xf32>
    %15 = vector.multi_reduction <add>, %14, %cst_9 [1] : vector<16x128xf32> to vector<16xf32>
    %16 = vector.shape_cast %15 : vector<16xf32> to vector<16x1xf32>
    %cst_10 = arith.constant 1.280000e+02 : f32
    %17 = vector.broadcast %cst_10 : f32 to vector<16x1xf32>
    %18 = arith.divf %16, %17 : vector<16x1xf32>
    %19 = vector.broadcast %11 : vector<16x1xf32> to vector<16x128xf32>
    %20 = arith.subf %3, %19 : vector<16x128xf32>
    %cst_11 = arith.constant 9.99999974E-6 : f32
    %21 = vector.broadcast %cst_11 : f32 to vector<16x1xf32>
    %22 = arith.addf %18, %21 : vector<16x1xf32>
    %23 = math.rsqrt %22 : vector<16x1xf32>
    %24 = vector.broadcast %23 : vector<16x1xf32> to vector<16x128xf32>
    %25 = arith.mulf %20, %24 : vector<16x128xf32>
    %26 = vector.broadcast %5 : vector<1x128xf32> to vector<16x128xf32>
    %27 = arith.mulf %25, %26 : vector<16x128xf32>
    %28 = vector.broadcast %7 : vector<1x128xf32> to vector<16x128xf32>
    %29 = arith.addf %27, %28 : vector<16x128xf32>
    %30 = arith.truncf %29 : vector<16x128xf32> to vector<16x128xbf16>
    %c0_12 = arith.constant 0 : index
    %c0_13 = arith.constant 0 : index
    %c0_14 = arith.constant 0 : index
    %31 = vector.load %arg8[%c0_12, %c0_13, %c0_14] : memref<1x128x384xbf16, #tpu.memory_space<vmem>>, vector<1x128x384xbf16>
    %32 = vector.shape_cast %31 : vector<1x128x384xbf16> to vector<128x384xbf16>
    %cst_15 = arith.constant dense<0.000000e+00> : vector<16x384xf32>
    %33 = tpu.matmul %30, %32, %cst_15 {dimension_numbers = #tpu.dot_dimension_numbers<[1], [0], [0], [1], [0, 0, 1, 1], [], []>} : vector<16x128xbf16>, vector<128x384xbf16>, vector<16x384xf32> -> vector<16x384xf32>
    %c0_16 = arith.constant 0 : index
    %c0_17 = arith.constant 0 : index
    %c0_18 = arith.constant 0 : index
    %34 = vector.load %arg9[%c0_16, %c0_17, %c0_18] : memref<1x1x384xf32, #tpu.memory_space<vmem>>, vector<1x1x384xf32>
    %35 = vector.shape_cast %34 : vector<1x1x384xf32> to vector<1x384xf32>
    %36 = vector.broadcast %35 : vector<1x384xf32> to vector<16x384xf32>
    %37 = arith.addf %33, %36 : vector<16x384xf32>
    %38 = vector.extract_strided_slice %37 {offsets = [0, 0], sizes = [16, 128], strides = [1, 1]} : vector<16x384xf32> to vector<16x128xf32>
    %39 = vector.extract_strided_slice %37 {offsets = [0, 128], sizes = [16, 128], strides = [1, 1]} : vector<16x384xf32> to vector<16x128xf32>
    %40 = vector.extract_strided_slice %37 {offsets = [0, 256], sizes = [16, 128], strides = [1, 1]} : vector<16x384xf32> to vector<16x128xf32>
    %c0_19 = arith.constant 0 : index
    %c0_20 = arith.constant 0 : index
    %c0_21 = arith.constant 0 : index
    %41 = vector.load %arg10[%c0_19, %c0_20, %c0_21] : memref<1x128x128xbf16, #tpu.memory_space<vmem>>, vector<1x128x128xbf16>
    %42 = vector.shape_cast %41 : vector<1x128x128xbf16> to vector<128x128xbf16>
    %cst_22 = arith.constant 0.000000e+00 : f32
    %43 = vector.broadcast %cst_22 : f32 to vector<16x128xf32>
    %44 = vector.extract_strided_slice %38 {offsets = [0, 0], sizes = [16, 32], strides = [1, 1]} : vector<16x128xf32> to vector<16x32xf32>
    %45 = arith.truncf %44 : vector<16x32xf32> to vector<16x32xbf16>
    %46 = vector.extract_strided_slice %39 {offsets = [0, 0], sizes = [16, 32], strides = [1, 1]} : vector<16x128xf32> to vector<16x32xf32>
    %47 = arith.truncf %46 : vector<16x32xf32> to vector<16x32xbf16>
    %48 = vector.extract_strided_slice %40 {offsets = [0, 0], sizes = [16, 32], strides = [1, 1]} : vector<16x128xf32> to vector<16x32xf32>
    %49 = arith.truncf %48 : vector<16x32xf32> to vector<16x32xbf16>
    %cst_23 = arith.constant dense<0.000000e+00> : vector<16x16xf32>
    %50 = tpu.matmul %45, %47, %cst_23 {dimension_numbers = #tpu.dot_dimension_numbers<[1], [1], [0], [0], [0, 0, 1, 0], [], []>} : vector<16x32xbf16>, vector<16x32xbf16>, vector<16x16xf32> -> vector<16x16xf32>
    %cst_24 = arith.constant 0.176776692 : f32
    %51 = vector.broadcast %cst_24 : f32 to vector<16x16xf32>
    %52 = arith.mulf %50, %51 : vector<16x16xf32>
    %cst_25 = arith.constant dense<0xFF800000> : vector<16xf32>
    %53 = vector.multi_reduction <maximumf>, %52, %cst_25 [1] : vector<16x16xf32> to vector<16xf32>
    %54 = vector.shape_cast %53 : vector<16xf32> to vector<16x1xf32>
    %55 = vector.broadcast %54 : vector<16x1xf32> to vector<16x16xf32>
    %56 = arith.subf %52, %55 : vector<16x16xf32>
    %57 = math.exp %56 : vector<16x16xf32>
    %cst_26 = arith.constant dense<0.000000e+00> : vector<16xf32>
    %58 = vector.multi_reduction <add>, %57, %cst_26 [1] : vector<16x16xf32> to vector<16xf32>
    %59 = vector.shape_cast %58 : vector<16xf32> to vector<16x1xf32>
    %60 = tpu.reciprocal %59 {approx = true} : vector<16x1xf32> -> vector<16x1xf32>
    %61 = vector.broadcast %60 : vector<16x1xf32> to vector<16x16xf32>
    %62 = arith.mulf %57, %61 : vector<16x16xf32>
    %63 = arith.truncf %62 : vector<16x16xf32> to vector<16x16xbf16>
    %cst_27 = arith.constant dense<0.000000e+00> : vector<16x32xf32>
    %64 = tpu.matmul %63, %49, %cst_27 {dimension_numbers = #tpu.dot_dimension_numbers<[1], [0], [0], [1], [0, 0, 1, 1], [], []>} : vector<16x16xbf16>, vector<16x32xbf16>, vector<16x32xf32> -> vector<16x32xf32>
    %65 = arith.truncf %64 : vector<16x32xf32> to vector<16x32xbf16>
    %66 = vector.extract_strided_slice %42 {offsets = [0, 0], sizes = [32, 128], strides = [1, 1]} : vector<128x128xbf16> to vector<32x128xbf16>
    %cst_28 = arith.constant dense<0.000000e+00> : vector<16x128xf32>
    %67 = tpu.matmul %65, %66, %cst_28 {dimension_numbers = #tpu.dot_dimension_numbers<[1], [0], [0], [1], [0, 0, 1, 1], [], []>} : vector<16x32xbf16>, vector<32x128xbf16>, vector<16x128xf32> -> vector<16x128xf32>
    %68 = arith.addf %43, %67 : vector<16x128xf32>
    %69 = vector.extract_strided_slice %38 {offsets = [0, 32], sizes = [16, 32], strides = [1, 1]} : vector<16x128xf32> to vector<16x32xf32>
    %70 = arith.truncf %69 : vector<16x32xf32> to vector<16x32xbf16>
    %71 = vector.extract_strided_slice %39 {offsets = [0, 32], sizes = [16, 32], strides = [1, 1]} : vector<16x128xf32> to vector<16x32xf32>
    %72 = arith.truncf %71 : vector<16x32xf32> to vector<16x32xbf16>
    %73 = vector.extract_strided_slice %40 {offsets = [0, 32], sizes = [16, 32], strides = [1, 1]} : vector<16x128xf32> to vector<16x32xf32>
    %74 = arith.truncf %73 : vector<16x32xf32> to vector<16x32xbf16>
    %cst_29 = arith.constant dense<0.000000e+00> : vector<16x16xf32>
    %75 = tpu.matmul %70, %72, %cst_29 {dimension_numbers = #tpu.dot_dimension_numbers<[1], [1], [0], [0], [0, 0, 1, 0], [], []>} : vector<16x32xbf16>, vector<16x32xbf16>, vector<16x16xf32> -> vector<16x16xf32>
    %cst_30 = arith.constant 0.176776692 : f32
    %76 = vector.broadcast %cst_30 : f32 to vector<16x16xf32>
    %77 = arith.mulf %75, %76 : vector<16x16xf32>
    %cst_31 = arith.constant dense<0xFF800000> : vector<16xf32>
    %78 = vector.multi_reduction <maximumf>, %77, %cst_31 [1] : vector<16x16xf32> to vector<16xf32>
    %79 = vector.shape_cast %78 : vector<16xf32> to vector<16x1xf32>
    %80 = vector.broadcast %79 : vector<16x1xf32> to vector<16x16xf32>
    %81 = arith.subf %77, %80 : vector<16x16xf32>
    %82 = math.exp %81 : vector<16x16xf32>
    %cst_32 = arith.constant dense<0.000000e+00> : vector<16xf32>
    %83 = vector.multi_reduction <add>, %82, %cst_32 [1] : vector<16x16xf32> to vector<16xf32>
    %84 = vector.shape_cast %83 : vector<16xf32> to vector<16x1xf32>
    %85 = tpu.reciprocal %84 {approx = true} : vector<16x1xf32> -> vector<16x1xf32>
    %86 = vector.broadcast %85 : vector<16x1xf32> to vector<16x16xf32>
    %87 = arith.mulf %82, %86 : vector<16x16xf32>
    %88 = arith.truncf %87 : vector<16x16xf32> to vector<16x16xbf16>
    %cst_33 = arith.constant dense<0.000000e+00> : vector<16x32xf32>
    %89 = tpu.matmul %88, %74, %cst_33 {dimension_numbers = #tpu.dot_dimension_numbers<[1], [0], [0], [1], [0, 0, 1, 1], [], []>} : vector<16x16xbf16>, vector<16x32xbf16>, vector<16x32xf32> -> vector<16x32xf32>
    %90 = arith.truncf %89 : vector<16x32xf32> to vector<16x32xbf16>
    %91 = vector.extract_strided_slice %42 {offsets = [32, 0], sizes = [32, 128], strides = [1, 1]} : vector<128x128xbf16> to vector<32x128xbf16>
    %cst_34 = arith.constant dense<0.000000e+00> : vector<16x128xf32>
    %92 = tpu.matmul %90, %91, %cst_34 {dimension_numbers = #tpu.dot_dimension_numbers<[1], [0], [0], [1], [0, 0, 1, 1], [], []>} : vector<16x32xbf16>, vector<32x128xbf16>, vector<16x128xf32> -> vector<16x128xf32>
    %93 = arith.addf %68, %92 : vector<16x128xf32>
    %94 = vector.extract_strided_slice %38 {offsets = [0, 64], sizes = [16, 32], strides = [1, 1]} : vector<16x128xf32> to vector<16x32xf32>
    %95 = arith.truncf %94 : vector<16x32xf32> to vector<16x32xbf16>
    %96 = vector.extract_strided_slice %39 {offsets = [0, 64], sizes = [16, 32], strides = [1, 1]} : vector<16x128xf32> to vector<16x32xf32>
    %97 = arith.truncf %96 : vector<16x32xf32> to vector<16x32xbf16>
    %98 = vector.extract_strided_slice %40 {offsets = [0, 64], sizes = [16, 32], strides = [1, 1]} : vector<16x128xf32> to vector<16x32xf32>
    %99 = arith.truncf %98 : vector<16x32xf32> to vector<16x32xbf16>
    %cst_35 = arith.constant dense<0.000000e+00> : vector<16x16xf32>
    %100 = tpu.matmul %95, %97, %cst_35 {dimension_numbers = #tpu.dot_dimension_numbers<[1], [1], [0], [0], [0, 0, 1, 0], [], []>} : vector<16x32xbf16>, vector<16x32xbf16>, vector<16x16xf32> -> vector<16x16xf32>
    %cst_36 = arith.constant 0.176776692 : f32
    %101 = vector.broadcast %cst_36 : f32 to vector<16x16xf32>
    %102 = arith.mulf %100, %101 : vector<16x16xf32>
    %cst_37 = arith.constant dense<0xFF800000> : vector<16xf32>
    %103 = vector.multi_reduction <maximumf>, %102, %cst_37 [1] : vector<16x16xf32> to vector<16xf32>
    %104 = vector.shape_cast %103 : vector<16xf32> to vector<16x1xf32>
    %105 = vector.broadcast %104 : vector<16x1xf32> to vector<16x16xf32>
    %106 = arith.subf %102, %105 : vector<16x16xf32>
    %107 = math.exp %106 : vector<16x16xf32>
    %cst_38 = arith.constant dense<0.000000e+00> : vector<16xf32>
    %108 = vector.multi_reduction <add>, %107, %cst_38 [1] : vector<16x16xf32> to vector<16xf32>
    %109 = vector.shape_cast %108 : vector<16xf32> to vector<16x1xf32>
    %110 = tpu.reciprocal %109 {approx = true} : vector<16x1xf32> -> vector<16x1xf32>
    %111 = vector.broadcast %110 : vector<16x1xf32> to vector<16x16xf32>
    %112 = arith.mulf %107, %111 : vector<16x16xf32>
    %113 = arith.truncf %112 : vector<16x16xf32> to vector<16x16xbf16>
    %cst_39 = arith.constant dense<0.000000e+00> : vector<16x32xf32>
    %114 = tpu.matmul %113, %99, %cst_39 {dimension_numbers = #tpu.dot_dimension_numbers<[1], [0], [0], [1], [0, 0, 1, 1], [], []>} : vector<16x16xbf16>, vector<16x32xbf16>, vector<16x32xf32> -> vector<16x32xf32>
    %115 = arith.truncf %114 : vector<16x32xf32> to vector<16x32xbf16>
    %116 = vector.extract_strided_slice %42 {offsets = [64, 0], sizes = [32, 128], strides = [1, 1]} : vector<128x128xbf16> to vector<32x128xbf16>
    %cst_40 = arith.constant dense<0.000000e+00> : vector<16x128xf32>
    %117 = tpu.matmul %115, %116, %cst_40 {dimension_numbers = #tpu.dot_dimension_numbers<[1], [0], [0], [1], [0, 0, 1, 1], [], []>} : vector<16x32xbf16>, vector<32x128xbf16>, vector<16x128xf32> -> vector<16x128xf32>
    %118 = arith.addf %93, %117 : vector<16x128xf32>
    %119 = vector.extract_strided_slice %38 {offsets = [0, 96], sizes = [16, 32], strides = [1, 1]} : vector<16x128xf32> to vector<16x32xf32>
    %120 = arith.truncf %119 : vector<16x32xf32> to vector<16x32xbf16>
    %121 = vector.extract_strided_slice %39 {offsets = [0, 96], sizes = [16, 32], strides = [1, 1]} : vector<16x128xf32> to vector<16x32xf32>
    %122 = arith.truncf %121 : vector<16x32xf32> to vector<16x32xbf16>
    %123 = vector.extract_strided_slice %40 {offsets = [0, 96], sizes = [16, 32], strides = [1, 1]} : vector<16x128xf32> to vector<16x32xf32>
    %124 = arith.truncf %123 : vector<16x32xf32> to vector<16x32xbf16>
    %cst_41 = arith.constant dense<0.000000e+00> : vector<16x16xf32>
    %125 = tpu.matmul %120, %122, %cst_41 {dimension_numbers = #tpu.dot_dimension_numbers<[1], [1], [0], [0], [0, 0, 1, 0], [], []>} : vector<16x32xbf16>, vector<16x32xbf16>, vector<16x16xf32> -> vector<16x16xf32>
    %cst_42 = arith.constant 0.176776692 : f32
    %126 = vector.broadcast %cst_42 : f32 to vector<16x16xf32>
    %127 = arith.mulf %125, %126 : vector<16x16xf32>
    %cst_43 = arith.constant dense<0xFF800000> : vector<16xf32>
    %128 = vector.multi_reduction <maximumf>, %127, %cst_43 [1] : vector<16x16xf32> to vector<16xf32>
    %129 = vector.shape_cast %128 : vector<16xf32> to vector<16x1xf32>
    %130 = vector.broadcast %129 : vector<16x1xf32> to vector<16x16xf32>
    %131 = arith.subf %127, %130 : vector<16x16xf32>
    %132 = math.exp %131 : vector<16x16xf32>
    %cst_44 = arith.constant dense<0.000000e+00> : vector<16xf32>
    %133 = vector.multi_reduction <add>, %132, %cst_44 [1] : vector<16x16xf32> to vector<16xf32>
    %134 = vector.shape_cast %133 : vector<16xf32> to vector<16x1xf32>
    %135 = tpu.reciprocal %134 {approx = true} : vector<16x1xf32> -> vector<16x1xf32>
    %136 = vector.broadcast %135 : vector<16x1xf32> to vector<16x16xf32>
    %137 = arith.mulf %132, %136 : vector<16x16xf32>
    %138 = arith.truncf %137 : vector<16x16xf32> to vector<16x16xbf16>
    %cst_45 = arith.constant dense<0.000000e+00> : vector<16x32xf32>
    %139 = tpu.matmul %138, %124, %cst_45 {dimension_numbers = #tpu.dot_dimension_numbers<[1], [0], [0], [1], [0, 0, 1, 1], [], []>} : vector<16x16xbf16>, vector<16x32xbf16>, vector<16x32xf32> -> vector<16x32xf32>
    %140 = arith.truncf %139 : vector<16x32xf32> to vector<16x32xbf16>
    %141 = vector.extract_strided_slice %42 {offsets = [96, 0], sizes = [32, 128], strides = [1, 1]} : vector<128x128xbf16> to vector<32x128xbf16>
    %cst_46 = arith.constant dense<0.000000e+00> : vector<16x128xf32>
    %142 = tpu.matmul %140, %141, %cst_46 {dimension_numbers = #tpu.dot_dimension_numbers<[1], [0], [0], [1], [0, 0, 1, 1], [], []>} : vector<16x32xbf16>, vector<32x128xbf16>, vector<16x128xf32> -> vector<16x128xf32>
    %143 = arith.addf %118, %142 : vector<16x128xf32>
    %144 = arith.addf %3, %143 : vector<16x128xf32>
    %c0_47 = arith.constant 0 : index
    %c0_48 = arith.constant 0 : index
    %c0_49 = arith.constant 0 : index
    %145 = vector.load %arg11[%c0_47, %c0_48, %c0_49] : memref<1x1x128xf32, #tpu.memory_space<vmem>>, vector<1x1x128xf32>
    %146 = vector.shape_cast %145 : vector<1x1x128xf32> to vector<1x128xf32>
    %147 = vector.broadcast %146 : vector<1x128xf32> to vector<16x128xf32>
    %148 = arith.addf %144, %147 : vector<16x128xf32>
    %c0_50 = arith.constant 0 : index
    %c0_51 = arith.constant 0 : index
    %c0_52 = arith.constant 0 : index
    %149 = vector.load %arg12[%c0_50, %c0_51, %c0_52] : memref<1x1x128xf32, #tpu.memory_space<vmem>>, vector<1x1x128xf32>
    %150 = vector.shape_cast %149 : vector<1x1x128xf32> to vector<1x128xf32>
    %c0_53 = arith.constant 0 : index
    %c0_54 = arith.constant 0 : index
    %c0_55 = arith.constant 0 : index
    %151 = vector.load %arg13[%c0_53, %c0_54, %c0_55] : memref<1x1x128xf32, #tpu.memory_space<vmem>>, vector<1x1x128xf32>
    %152 = vector.shape_cast %151 : vector<1x1x128xf32> to vector<1x128xf32>
    %cst_56 = arith.constant dense<0.000000e+00> : vector<16xf32>
    %153 = vector.multi_reduction <add>, %148, %cst_56 [1] : vector<16x128xf32> to vector<16xf32>
    %154 = vector.shape_cast %153 : vector<16xf32> to vector<16x1xf32>
    %cst_57 = arith.constant 1.280000e+02 : f32
    %155 = vector.broadcast %cst_57 : f32 to vector<16x1xf32>
    %156 = arith.divf %154, %155 : vector<16x1xf32>
    %157 = vector.broadcast %156 : vector<16x1xf32> to vector<16x128xf32>
    %158 = arith.subf %148, %157 : vector<16x128xf32>
    %159 = arith.mulf %158, %158 : vector<16x128xf32>
    %cst_58 = arith.constant dense<0.000000e+00> : vector<16xf32>
    %160 = vector.multi_reduction <add>, %159, %cst_58 [1] : vector<16x128xf32> to vector<16xf32>
    %161 = vector.shape_cast %160 : vector<16xf32> to vector<16x1xf32>
    %cst_59 = arith.constant 1.280000e+02 : f32
    %162 = vector.broadcast %cst_59 : f32 to vector<16x1xf32>
    %163 = arith.divf %161, %162 : vector<16x1xf32>
    %164 = vector.broadcast %156 : vector<16x1xf32> to vector<16x128xf32>
    %165 = arith.subf %148, %164 : vector<16x128xf32>
    %cst_60 = arith.constant 9.99999974E-6 : f32
    %166 = vector.broadcast %cst_60 : f32 to vector<16x1xf32>
    %167 = arith.addf %163, %166 : vector<16x1xf32>
    %168 = math.rsqrt %167 : vector<16x1xf32>
    %169 = vector.broadcast %168 : vector<16x1xf32> to vector<16x128xf32>
    %170 = arith.mulf %165, %169 : vector<16x128xf32>
    %171 = vector.broadcast %150 : vector<1x128xf32> to vector<16x128xf32>
    %172 = arith.mulf %170, %171 : vector<16x128xf32>
    %173 = vector.broadcast %152 : vector<1x128xf32> to vector<16x128xf32>
    %174 = arith.addf %172, %173 : vector<16x128xf32>
    %175 = arith.truncf %174 : vector<16x128xf32> to vector<16x128xbf16>
    %c0_61 = arith.constant 0 : index
    %c0_62 = arith.constant 0 : index
    %c0_63 = arith.constant 0 : index
    %176 = vector.load %arg14[%c0_61, %c0_62, %c0_63] : memref<1x128x512xbf16, #tpu.memory_space<vmem>>, vector<1x128x512xbf16>
    %177 = vector.shape_cast %176 : vector<1x128x512xbf16> to vector<128x512xbf16>
    %cst_64 = arith.constant dense<0.000000e+00> : vector<16x512xf32>
    %178 = tpu.matmul %175, %177, %cst_64 {dimension_numbers = #tpu.dot_dimension_numbers<[1], [0], [0], [1], [0, 0, 1, 1], [], []>} : vector<16x128xbf16>, vector<128x512xbf16>, vector<16x512xf32> -> vector<16x512xf32>
    %c0_65 = arith.constant 0 : index
    %c0_66 = arith.constant 0 : index
    %c0_67 = arith.constant 0 : index
    %179 = vector.load %arg15[%c0_65, %c0_66, %c0_67] : memref<1x1x512xf32, #tpu.memory_space<vmem>>, vector<1x1x512xf32>
    %180 = vector.shape_cast %179 : vector<1x1x512xf32> to vector<1x512xf32>
    %181 = vector.broadcast %180 : vector<1x512xf32> to vector<16x512xf32>
    %182 = arith.addf %178, %181 : vector<16x512xf32>
    %cst_68 = arith.constant 5.000000e-01 : f32
    %183 = vector.broadcast %cst_68 : f32 to vector<16x512xf32>
    %184 = arith.mulf %183, %182 : vector<16x512xf32>
    %cst_69 = arith.constant 0.707106769 : f32
    %185 = vector.broadcast %cst_69 : f32 to vector<16x512xf32>
    %186 = arith.mulf %182, %185 : vector<16x512xf32>
    %187 = math.erf %186 : vector<16x512xf32>
    %cst_70 = arith.constant 1.000000e+00 : f32
    %188 = vector.broadcast %cst_70 : f32 to vector<16x512xf32>
    %189 = arith.addf %188, %187 : vector<16x512xf32>
    %190 = arith.mulf %184, %189 : vector<16x512xf32>
    %191 = arith.truncf %190 : vector<16x512xf32> to vector<16x512xbf16>
    %c0_71 = arith.constant 0 : index
    %c0_72 = arith.constant 0 : index
    %c0_73 = arith.constant 0 : index
    %192 = vector.load %arg16[%c0_71, %c0_72, %c0_73] : memref<1x512x128xbf16, #tpu.memory_space<vmem>>, vector<1x512x128xbf16>
    %193 = vector.shape_cast %192 : vector<1x512x128xbf16> to vector<512x128xbf16>
    %cst_74 = arith.constant dense<0.000000e+00> : vector<16x128xf32>
    %194 = tpu.matmul %191, %193, %cst_74 {dimension_numbers = #tpu.dot_dimension_numbers<[1], [0], [0], [1], [0, 0, 1, 1], [], []>} : vector<16x512xbf16>, vector<512x128xbf16>, vector<16x128xf32> -> vector<16x128xf32>
    %c0_75 = arith.constant 0 : index
    %c0_76 = arith.constant 0 : index
    %c0_77 = arith.constant 0 : index
    %195 = vector.load %arg17[%c0_75, %c0_76, %c0_77] : memref<1x1x128xf32, #tpu.memory_space<vmem>>, vector<1x1x128xf32>
    %196 = vector.shape_cast %195 : vector<1x1x128xf32> to vector<1x128xf32>
    %197 = vector.broadcast %196 : vector<1x128xf32> to vector<16x128xf32>
    %198 = arith.addf %194, %197 : vector<16x128xf32>
    %199 = arith.addf %148, %198 : vector<16x128xf32>
    %c0_78 = arith.constant 0 : index
    %c0_79 = arith.constant 0 : index
    %200 = vector.load %arg21[%c0_78, %c0_79] : memref<16x128xf32, #tpu.memory_space<vmem>>, vector<16x128xf32>
    tpu.vector_store %arg21[%c0_78, %c0_79], %199 {strides = array<i32>} : memref<16x128xf32, #tpu.memory_space<vmem>>, vector<16x128xf32>,
    %c2_i32 = arith.constant 2 : i32
    %201 = arith.cmpi eq, %arg1, %c2_i32 : i32
    %202 = arith.extui %201 : i1 to i32
    %c0_i32_80 = arith.constant 0 : i32
    %203 = arith.cmpi ne, %202, %c0_i32_80 : i32
    scf.if %203 {
      %c0_81 = arith.constant 0 : index
      %c0_82 = arith.constant 0 : index
      %204 = vector.load %arg18[%c0_81, %c0_82] : memref<1x128xf32, #tpu.memory_space<vmem>>, vector<1x128xf32>
      %c0_83 = arith.constant 0 : index
      %c0_84 = arith.constant 0 : index
      %205 = vector.load %arg19[%c0_83, %c0_84] : memref<1x128xf32, #tpu.memory_space<vmem>>, vector<1x128xf32>
      %cst_85 = arith.constant dense<0.000000e+00> : vector<16xf32>
      %206 = vector.multi_reduction <add>, %199, %cst_85 [1] : vector<16x128xf32> to vector<16xf32>
      %207 = vector.shape_cast %206 : vector<16xf32> to vector<16x1xf32>
      %cst_86 = arith.constant 1.280000e+02 : f32
      %208 = vector.broadcast %cst_86 : f32 to vector<16x1xf32>
      %209 = arith.divf %207, %208 : vector<16x1xf32>
      %210 = vector.broadcast %209 : vector<16x1xf32> to vector<16x128xf32>
      %211 = arith.subf %199, %210 : vector<16x128xf32>
      %212 = arith.mulf %211, %211 : vector<16x128xf32>
      %cst_87 = arith.constant dense<0.000000e+00> : vector<16xf32>
      %213 = vector.multi_reduction <add>, %212, %cst_87 [1] : vector<16x128xf32> to vector<16xf32>
      %214 = vector.shape_cast %213 : vector<16xf32> to vector<16x1xf32>
      %cst_88 = arith.constant 1.280000e+02 : f32
      %215 = vector.broadcast %cst_88 : f32 to vector<16x1xf32>
      %216 = arith.divf %214, %215 : vector<16x1xf32>
      %217 = vector.broadcast %209 : vector<16x1xf32> to vector<16x128xf32>
      %218 = arith.subf %199, %217 : vector<16x128xf32>
      %cst_89 = arith.constant 9.99999974E-6 : f32
      %219 = vector.broadcast %cst_89 : f32 to vector<16x1xf32>
      %220 = arith.addf %216, %219 : vector<16x1xf32>
      %221 = math.rsqrt %220 : vector<16x1xf32>
      %222 = vector.broadcast %221 : vector<16x1xf32> to vector<16x128xf32>
      %223 = arith.mulf %218, %222 : vector<16x128xf32>
      %224 = vector.broadcast %204 : vector<1x128xf32> to vector<16x128xf32>
      %225 = arith.mulf %223, %224 : vector<16x128xf32>
      %226 = vector.broadcast %205 : vector<1x128xf32> to vector<16x128xf32>
      %227 = arith.addf %225, %226 : vector<16x128xf32>
      %c0_90 = arith.constant 0 : index
      %c0_91 = arith.constant 0 : index
      %c0_92 = arith.constant 0 : index
      %228 = vector.load %arg20[%c0_90, %c0_91, %c0_92] : memref<1x16x128xf32, #tpu.memory_space<vmem>>, vector<1x16x128xf32>
      %229 = vector.shape_cast %228 : vector<1x16x128xf32> to vector<16x128xf32>
      %230 = vector.shape_cast %227 : vector<16x128xf32> to vector<1x16x128xf32>
      tpu.vector_store %arg20[%c0_90, %c0_91, %c0_92], %230 {strides = array<i32>} : memref<1x16x128xf32, #tpu.memory_space<vmem>>, vector<1x16x128xf32>,
    } else {
    }
    return
  }
  func.func @transform_0(%arg0: i32, %arg1: i32) -> (i32, i32, i32) {
    %c0_i32 = arith.constant 0 : i32
    %c0_i32_0 = arith.constant 0 : i32
    %c0_i32_1 = arith.constant 0 : i32
    return %arg0, %c0_i32, %c0_i32_0 : i32, i32, i32
  }
  func.func @transform_1(%arg0: i32, %arg1: i32) -> (i32, i32) {
    %c0_i32 = arith.constant 0 : i32
    %c0_i32_0 = arith.constant 0 : i32
    %c0_i32_1 = arith.constant 0 : i32
    return %c0_i32, %c0_i32_0 : i32, i32
  }
  func.func @transform_2(%arg0: i32, %arg1: i32) -> (i32, i32) {
    %c0_i32 = arith.constant 0 : i32
    %c0_i32_0 = arith.constant 0 : i32
    %c0_i32_1 = arith.constant 0 : i32
    return %c0_i32, %c0_i32_0 : i32, i32
  }
  func.func @transform_3(%arg0: i32, %arg1: i32) -> (i32, i32) {
    %c0_i32 = arith.constant 0 : i32
    %c0_i32_0 = arith.constant 0 : i32
    %c0_i32_1 = arith.constant 0 : i32
    return %c0_i32, %c0_i32_0 : i32, i32
  }
  func.func @transform_4(%arg0: i32, %arg1: i32) -> (i32, i32, i32) {
    %c0_i32 = arith.constant 0 : i32
    %c0_i32_0 = arith.constant 0 : i32
    %c0_i32_1 = arith.constant 0 : i32
    return %arg1, %c0_i32, %c0_i32_0 : i32, i32, i32
  }
  func.func @transform_5(%arg0: i32, %arg1: i32) -> (i32, i32, i32) {
    %c0_i32 = arith.constant 0 : i32
    %c0_i32_0 = arith.constant 0 : i32
    %c0_i32_1 = arith.constant 0 : i32
    return %arg1, %c0_i32, %c0_i32_0 : i32, i32, i32
  }
  func.func @transform_6(%arg0: i32, %arg1: i32) -> (i32, i32, i32) {
    %c0_i32 = arith.constant 0 : i32
    %c0_i32_0 = arith.constant 0 : i32
    %c0_i32_1 = arith.constant 0 : i32
    return %arg1, %c0_i32, %c0_i32_0 : i32, i32, i32
  }
  func.func @transform_7(%arg0: i32, %arg1: i32) -> (i32, i32, i32) {
    %c0_i32 = arith.constant 0 : i32
    %c0_i32_0 = arith.constant 0 : i32
    %c0_i32_1 = arith.constant 0 : i32
    return %arg1, %c0_i32, %c0_i32_0 : i32, i32, i32
  }
  func.func @transform_8(%arg0: i32, %arg1: i32) -> (i32, i32, i32) {
    %c0_i32 = arith.constant 0 : i32
    %c0_i32_0 = arith.constant 0 : i32
    %c0_i32_1 = arith.constant 0 : i32
    return %arg1, %c0_i32, %c0_i32_0 : i32, i32, i32
  }
  func.func @transform_9(%arg0: i32, %arg1: i32) -> (i32, i32, i32) {
    %c0_i32 = arith.constant 0 : i32
    %c0_i32_0 = arith.constant 0 : i32
    %c0_i32_1 = arith.constant 0 : i32
    return %arg1, %c0_i32, %c0_i32_0 : i32, i32, i32
  }
  func.func @transform_10(%arg0: i32, %arg1: i32) -> (i32, i32, i32) {
    %c0_i32 = arith.constant 0 : i32
    %c0_i32_0 = arith.constant 0 : i32
    %c0_i32_1 = arith.constant 0 : i32
    return %arg1, %c0_i32, %c0_i32_0 : i32, i32, i32
  }
  func.func @transform_11(%arg0: i32, %arg1: i32) -> (i32, i32, i32) {
    %c0_i32 = arith.constant 0 : i32
    %c0_i32_0 = arith.constant 0 : i32
    %c0_i32_1 = arith.constant 0 : i32
    return %arg1, %c0_i32, %c0_i32_0 : i32, i32, i32
  }
  func.func @transform_12(%arg0: i32, %arg1: i32) -> (i32, i32, i32) {
    %c0_i32 = arith.constant 0 : i32
    %c0_i32_0 = arith.constant 0 : i32
    %c0_i32_1 = arith.constant 0 : i32
    return %arg1, %c0_i32, %c0_i32_0 : i32, i32, i32
  }
  func.func @transform_13(%arg0: i32, %arg1: i32) -> (i32, i32, i32) {
    %c0_i32 = arith.constant 0 : i32
    %c0_i32_0 = arith.constant 0 : i32
    %c0_i32_1 = arith.constant 0 : i32
    return %arg1, %c0_i32, %c0_i32_0 : i32, i32, i32
  }
  func.func @transform_14(%arg0: i32, %arg1: i32) -> (i32, i32, i32) {
    %c0_i32 = arith.constant 0 : i32
    %c0_i32_0 = arith.constant 0 : i32
    %c0_i32_1 = arith.constant 0 : i32
    return %arg1, %c0_i32, %c0_i32_0 : i32, i32, i32
  }
  func.func @transform_15(%arg0: i32, %arg1: i32) -> (i32, i32, i32) {
    %c0_i32 = arith.constant 0 : i32
    %c0_i32_0 = arith.constant 0 : i32
    %c0_i32_1 = arith.constant 0 : i32
    return %arg1, %c0_i32, %c0_i32_0 : i32, i32, i32
  }
  func.func @transform_16(%arg0: i32, %arg1: i32) -> (i32, i32) {
    %c0_i32 = arith.constant 0 : i32
    %c0_i32_0 = arith.constant 0 : i32
    %c0_i32_1 = arith.constant 0 : i32
    return %c0_i32, %c0_i32_0 : i32, i32
  }
  func.func @transform_17(%arg0: i32, %arg1: i32) -> (i32, i32) {
    %c0_i32 = arith.constant 0 : i32
    %c0_i32_0 = arith.constant 0 : i32
    %c0_i32_1 = arith.constant 0 : i32
    return %c0_i32, %c0_i32_0 : i32, i32
  }
  func.func @transform_18(%arg0: i32, %arg1: i32) -> (i32, i32, i32) {
    %c0_i32 = arith.constant 0 : i32
    %c0_i32_0 = arith.constant 0 : i32
    %c0_i32_1 = arith.constant 0 : i32
    return %arg0, %c0_i32, %c0_i32_0 : i32, i32, i32
  }
}

</mosaic_0001>

<llo_original>
// kernel: tpu_custom_call.1
$region0: #{tpu_custom_call.1}
  #allocation0 [shape = 'u32[]', space=smem, size = 0x4, offset = 0x4, fixed_abs, tag = 'smem constant byte address 0x4 - core index']
  #allocation1 [shape = 'u32[144,128]{1,0:T(1,128)}', space=vmem, size = 0x12000, scoped, tag = 'internal scratch']
  #allocation2 [shape = 'f32[16,128]{1,0:T(8,128)}', space=vmem, size = 0x2000, scoped, tag = 'scratch operand']
  %s0 = inlined_call_operand.hbm [shape: bf16[2,16,64], index: 0, kind: input, shape index: {}]
  %s1 = inlined_call_operand.hbm [shape: bf16[64,128], index: 1, kind: input, shape index: {}]
  %s2 = inlined_call_operand.hbm [shape: f32[1,128], index: 2, kind: input, shape index: {}]
  %s3 = inlined_call_operand.hbm [shape: f32[16,128], index: 3, kind: input, shape index: {}]
  %s4 = inlined_call_operand.hbm [shape: f32[3,1,128], index: 4, kind: input, shape index: {}]
  %s5 = inlined_call_operand.hbm [shape: f32[3,1,128], index: 5, kind: input, shape index: {}]
  %s6 = inlined_call_operand.hbm [shape: bf16[3,128,384], index: 6, kind: input, shape index: {}]
  %s7 = inlined_call_operand.vmem [shape: f32[3,1,384], index: 7, kind: input, shape index: {}]
  %s8 = inlined_call_operand.hbm [shape: bf16[3,128,128], index: 8, kind: input, shape index: {}]
  %s9 = inlined_call_operand.vmem [shape: f32[3,1,128], index: 9, kind: input, shape index: {}]
  %s10 = inlined_call_operand.vmem [shape: f32[3,1,128], index: 10, kind: input, shape index: {}]
  %s11 = inlined_call_operand.vmem [shape: f32[3,1,128], index: 11, kind: input, shape index: {}]
  %s12 = inlined_call_operand.hbm [shape: bf16[3,128,512], index: 12, kind: input, shape index: {}]
  %s13 = inlined_call_operand.vmem [shape: f32[3,1,512], index: 13, kind: input, shape index: {}]
  %s14 = inlined_call_operand.hbm [shape: bf16[3,512,128], index: 14, kind: input, shape index: {}]
  %s15 = inlined_call_operand.vmem [shape: f32[3,1,128], index: 15, kind: input, shape index: {}]
  %s16 = inlined_call_operand.vmem [shape: f32[1,128], index: 16, kind: input, shape index: {}]
  %s17 = inlined_call_operand.vmem [shape: f32[1,128], index: 17, kind: input, shape index: {}]
  %s18 = inlined_call_operand.hbm [shape: f32[2,16,128], index: 18, kind: output, shape index: {}]
  %s19 = sld [smem:[#allocation0]]
  $region153: #{tpu_custom_call.1} parent=0
    _
  %s21 = ssub.s32 1, %s19
  %s22 = scalar_select 0, %s21, %s19
  $region1: #{tpu_custom_call.1} parent=0
    #allocation3 [shape = 'u8[8192]{0}', space=vmem, size = 0x2000, scoped, tag = 'input window, operand 0']
    #allocation4 [shape = 's32[2]{0}', space=sflag, size = 0x8, scoped, tag = 'scoped memory for tpu_custom_call.1']
    #allocation5 [shape = 's32[2]{0}', space=sflag, size = 0x8, scoped, tag = 'scoped memory for tpu_custom_call.1']
    #allocation6 [shape = 'u8[16384]{0}', space=vmem, size = 0x4000, scoped, tag = 'input window, operand 1, single buffered']
    #allocation7 [shape = 's32[1]{0}', space=sflag, size = 0x4, scoped, tag = 'scoped memory for tpu_custom_call.1']
    #allocation8 [shape = 'u8[512]{0}', space=vmem, size = 0x400, scoped, tag = 'input window, operand 2, single buffered']
    #allocation9 [shape = 'u8[8192]{0}', space=vmem, size = 0x2000, scoped, tag = 'input window, operand 3, single buffered']
    #allocation10 [shape = 's32[1]{0}', space=sflag, size = 0x4, scoped, tag = 'scoped memory for tpu_custom_call.1']
    #allocation11 [shape = 'u8[1024]{0}', space=vmem, size = 0x400, scoped, tag = 'input window, operand 4']
    #allocation12 [shape = 'u8[1024]{0}', space=vmem, size = 0x400, scoped, tag = 'input window, operand 5']
    #allocation13 [shape = 'u8[196608]{0}', space=vmem, size = 0x30000, scoped, tag = 'input window, operand 6']
    #allocation14 [shape = 'u8[65536]{0}', space=vmem, size = 0x10000, scoped, tag = 'input window, operand 8']
    #allocation15 [shape = 'u8[262144]{0}', space=vmem, size = 0x40000, scoped, tag = 'input window, operand 12']
    #allocation16 [shape = 'u8[262144]{0}', space=vmem, size = 0x40000, scoped, tag = 'input window, operand 14']
    #allocation17 [shape = 'u8[16384]{0}', space=vmem, size = 0x4000, scoped, tag = 'output window, operand 0']
    %23 = vsyncpa [#allocation4], 0
    %s24 = scalar_lea.sflag [#allocation4], 1
    %25 = vsyncpa %s24, 0
    %26 = vsyncpa [#allocation7], 0
    %27 = vsyncpa [#allocation10], 0
    %28 = vsyncpa [#allocation5], 0
    %s29 = scalar_lea.sflag [#allocation5], 1
    %30 = vsyncpa %s29, 0
    loop: start=0, step=1, limit=8
    $region2: #{tpu_custom_call.1} parent=1 // loop_pre_header
      _
    $region3: #{tpu_custom_call.1} parent=1 // loop_header
      %s32 = sphi 0, %s36
      %p33 = scmp.ge.s32.totalorder %s32, 8
      %s39 = sphi 0, %s51
      %s40 = sphi 0, %s47
      %s41 = sphi 0, %s39
      %s42 = sphi 0, %s40
      %s43 = sphi 0, %s41
      %s44 = sphi 0, %s42
      %s54 = sphi 0, %s56
      %s57 = sphi 0, %s54
      %s58 = sphi 0, %s57
      %s74 = sphi 0, %s58
      %s78 = sphi 0, %s78
      %s80 = sphi 0, %s78
      %s81 = sphi 0, %s80
      %s95 = sphi 0, %s81
      %s99 = sphi 0, %s99
      %s101 = sphi 0, %s99
      %s102 = sphi 0, %s101
      %s116 = sphi 0, %s102
      %s120 = sphi 0, %s120
      %s122 = sphi 0, %s120
      %s123 = sphi 0, %s122
      %s137 = sphi 0, %s123
      %s143 = sphi 0, %s145
      %s146 = sphi 0, %s143
      %s147 = sphi 0, %s146
      %s163 = sphi 0, %s147
      %s169 = sphi 0, %s171
      %s172 = sphi 0, %s169
      %s173 = sphi 0, %s172
      %s189 = sphi 0, %s173
      %s195 = sphi 0, %s197
      %s198 = sphi 0, %s195
      %s199 = sphi 0, %s198
      %s215 = sphi 0, %s199
      %s221 = sphi 0, %s223
      %s224 = sphi 0, %s221
      %s225 = sphi 0, %s224
      %s241 = sphi 0, %s225
      %s247 = sphi 0, %s249
      %s250 = sphi 0, %s247
      %s251 = sphi 0, %s250
      %s267 = sphi 0, %s251
      %s273 = sphi 0, %s275
      %s276 = sphi 0, %s273
      %s277 = sphi 0, %s276
      %s293 = sphi 0, %s277
      %s299 = sphi 0, %s301
      %s302 = sphi 0, %s299
      %s303 = sphi 0, %s302
      %s319 = sphi 0, %s303
      %s325 = sphi 0, %s327
      %s328 = sphi 0, %s325
      %s329 = sphi 0, %s328
      %s345 = sphi 0, %s329
      %s351 = sphi 0, %s353
      %s354 = sphi 0, %s351
      %s355 = sphi 0, %s354
      %s371 = sphi 0, %s355
      %s377 = sphi 0, %s379
      %s380 = sphi 0, %s377
      %s381 = sphi 0, %s380
      %s397 = sphi 0, %s381
      %s403 = sphi 0, %s405
      %s406 = sphi 0, %s403
      %s407 = sphi 0, %s406
      %s423 = sphi 0, %s407
      %s429 = sphi 0, %s431
      %s432 = sphi 0, %s429
      %s433 = sphi 0, %s432
      %s449 = sphi 0, %s433
      %s453 = sphi 0, %s453
      %s455 = sphi 0, %s453
      %s456 = sphi 0, %s455
      %s470 = sphi 0, %s456
      %s474 = sphi 0, %s474
      %s476 = sphi 0, %s474
      %s477 = sphi 0, %s476
      %s491 = sphi 0, %s477
      %s497 = sphi 0, %s499
      %s500 = sphi 0, %s497
      %s501 = sphi 0, %s500
      %s517 = sphi 0, %s501
    $region4: #{tpu_custom_call.1} parent=1 // loop_header_branch
      %35 = sbr.rel (%p33) target = $region8
    $region5: #{tpu_custom_call.1} parent=1 // loop_body
      %s37 = ssub.s32 %s32, 1
      %s38 = ssub.s32 %s32, 2
      %s45 = sadd.s32 1, %s40
      %p46 = scmp.ge.s32.totalorder %s45, 3
      %s47 = scalar_select %p46, 0, %s45
      %s48 = sadd.s32 1, %s39
      %s49 = scalar_select %p46, %s48, %s39
      %p50 = scmp.ge.s32.totalorder %s49, 2
      %s51 = scalar_select %p50, 0, %s49
      %s52 = ssub.s32 %s39, %s51
      %p53 = scmp.eq.s32.totalorder %s52, 0
      %s55 = sadd.s32 %s54, 1
      %s56 = scalar_select %p53, %s54, %s55
      %p59 = pneg %p53
      %p60 = scmp.eq.s32.totalorder %s32, 5
      %p61 = por %p59, %p60
      %p62 = scmp.ne.s32.totalorder %s54, %s57
      %p63 = scmp.eq.s32.totalorder %s32, 0
      %p64 = por %p62, %p63
      %p65 = scmp.ne.s32.totalorder %s54, %s57
      %p66 = scmp.eq.s32.totalorder %s37, 5
      %p67 = por %p65, %p66
      %p68 = scmp.ne.s32.totalorder %s57, %s58
      %p69 = scmp.eq.s32.totalorder %s37, 0
      %p70 = por %p68, %p69
      %p71 = scmp.ne.s32.totalorder %s57, %s58
      %p72 = scmp.eq.s32.totalorder %s38, 5
      %p73 = por %p71, %p72
      %p75 = scmp.ne.s32.totalorder %s58, %s74
      %p76 = scmp.eq.s32.totalorder %s38, 0
      %p77 = por %p75, %p76
      %s79 = sadd.s32 %s78, 1
      %p82 = scmp.eq.s32.totalorder %s32, 5
      %p83 = scmp.ne.s32.totalorder %s78, %s80
      %p84 = scmp.eq.s32.totalorder %s32, 0
      %p85 = por %p83, %p84
      %p86 = scmp.ne.s32.totalorder %s78, %s80
      %p87 = scmp.eq.s32.totalorder %s37, 5
      %p88 = por %p86, %p87
      %p89 = scmp.ne.s32.totalorder %s80, %s81
      %p90 = scmp.eq.s32.totalorder %s37, 0
      %p91 = por %p89, %p90
      %p92 = scmp.ne.s32.totalorder %s80, %s81
      %p93 = scmp.eq.s32.totalorder %s38, 5
      %p94 = por %p92, %p93
      %p96 = scmp.ne.s32.totalorder %s81, %s95
      %p97 = scmp.eq.s32.totalorder %s38, 0
      %p98 = por %p96, %p97
      %s100 = sadd.s32 %s99, 1
      %p103 = scmp.eq.s32.totalorder %s32, 5
      %p104 = scmp.ne.s32.totalorder %s99, %s101
      %p105 = scmp.eq.s32.totalorder %s32, 0
      %p106 = por %p104, %p105
      %p107 = scmp.ne.s32.totalorder %s99, %s101
      %p108 = scmp.eq.s32.totalorder %s37, 5
      %p109 = por %p107, %p108
      %p110 = scmp.ne.s32.totalorder %s101, %s102
      %p111 = scmp.eq.s32.totalorder %s37, 0
      %p112 = por %p110, %p111
      %p113 = scmp.ne.s32.totalorder %s101, %s102
      %p114 = scmp.eq.s32.totalorder %s38, 5
      %p115 = por %p113, %p114
      %p117 = scmp.ne.s32.totalorder %s102, %s116
      %p118 = scmp.eq.s32.totalorder %s38, 0
      %p119 = por %p117, %p118
      %s121 = sadd.s32 %s120, 1
      %p124 = scmp.eq.s32.totalorder %s32, 5
      %p125 = scmp.ne.s32.totalorder %s120, %s122
      %p126 = scmp.eq.s32.totalorder %s32, 0
      %p127 = por %p125, %p126
      %p128 = scmp.ne.s32.totalorder %s120, %s122
      %p129 = scmp.eq.s32.totalorder %s37, 5
      %p130 = por %p128, %p129
      %p131 = scmp.ne.s32.totalorder %s122, %s123
      %p132 = scmp.eq.s32.totalorder %s37, 0
      %p133 = por %p131, %p132
      %p134 = scmp.ne.s32.totalorder %s122, %s123
      %p135 = scmp.eq.s32.totalorder %s38, 5
      %p136 = por %p134, %p135
      %p138 = scmp.ne.s32.totalorder %s123, %s137
      %p139 = scmp.eq.s32.totalorder %s38, 0
      %p140 = por %p138, %p139
      %s141 = ssub.s32 %s40, %s47
      %p142 = scmp.eq.s32.totalorder %s141, 0
      %s144 = sadd.s32 %s143, 1
      %s145 = scalar_select %p142, %s143, %s144
      %p148 = pneg %p142
      %p149 = scmp.eq.s32.totalorder %s32, 5
      %p150 = por %p148, %p149
      %p151 = scmp.ne.s32.totalorder %s143, %s146
      %p152 = scmp.eq.s32.totalorder %s32, 0
      %p153 = por %p151, %p152
      %p154 = scmp.ne.s32.totalorder %s143, %s146
      %p155 = scmp.eq.s32.totalorder %s37, 5
      %p156 = por %p154, %p155
      %p157 = scmp.ne.s32.totalorder %s146, %s147
      %p158 = scmp.eq.s32.totalorder %s37, 0
      %p159 = por %p157, %p158
      %p160 = scmp.ne.s32.totalorder %s146, %s147
      %p161 = scmp.eq.s32.totalorder %s38, 5
      %p162 = por %p160, %p161
      %p164 = scmp.ne.s32.totalorder %s147, %s163
      %p165 = scmp.eq.s32.totalorder %s38, 0
      %p166 = por %p164, %p165
      %s167 = ssub.s32 %s40, %s47
      %p168 = scmp.eq.s32.totalorder %s167, 0
      %s170 = sadd.s32 %s169, 1
      %s171 = scalar_select %p168, %s169, %s170
      %p174 = pneg %p168
      %p175 = scmp.eq.s32.totalorder %s32, 5
      %p176 = por %p174, %p175
      %p177 = scmp.ne.s32.totalorder %s169, %s172
      %p178 = scmp.eq.s32.totalorder %s32, 0
      %p179 = por %p177, %p178
      %p180 = scmp.ne.s32.totalorder %s169, %s172
      %p181 = scmp.eq.s32.totalorder %s37, 5
      %p182 = por %p180, %p181
      %p183 = scmp.ne.s32.totalorder %s172, %s173
      %p184 = scmp.eq.s32.totalorder %s37, 0
      %p185 = por %p183, %p184
      %p186 = scmp.ne.s32.totalorder %s172, %s173
      %p187 = scmp.eq.s32.totalorder %s38, 5
      %p188 = por %p186, %p187
      %p190 = scmp.ne.s32.totalorder %s173, %s189
      %p191 = scmp.eq.s32.totalorder %s38, 0
      %p192 = por %p190, %p191
      %s193 = ssub.s32 %s40, %s47
      %p194 = scmp.eq.s32.totalorder %s193, 0
      %s196 = sadd.s32 %s195, 1
      %s197 = scalar_select %p194, %s195, %s196
      %p200 = pneg %p194
      %p201 = scmp.eq.s32.totalorder %s32, 5
      %p202 = por %p200, %p201
      %p203 = scmp.ne.s32.totalorder %s195, %s198
      %p204 = scmp.eq.s32.totalorder %s32, 0
      %p205 = por %p203, %p204
      %p206 = scmp.ne.s32.totalorder %s195, %s198
      %p207 = scmp.eq.s32.totalorder %s37, 5
      %p208 = por %p206, %p207
      %p209 = scmp.ne.s32.totalorder %s198, %s199
      %p210 = scmp.eq.s32.totalorder %s37, 0
      %p211 = por %p209, %p210
      %p212 = scmp.ne.s32.totalorder %s198, %s199
      %p213 = scmp.eq.s32.totalorder %s38, 5
      %p214 = por %p212, %p213
      %p216 = scmp.ne.s32.totalorder %s199, %s215
      %p217 = scmp.eq.s32.totalorder %s38, 0
      %p218 = por %p216, %p217
      %s219 = ssub.s32 %s40, %s47
      %p220 = scmp.eq.s32.totalorder %s219, 0
      %s222 = sadd.s32 %s221, 1
      %s223 = scalar_select %p220, %s221, %s222
      %p226 = pneg %p220
      %p227 = scmp.eq.s32.totalorder %s32, 5
      %p228 = por %p226, %p227
      %p229 = scmp.ne.s32.totalorder %s221, %s224
      %p230 = scmp.eq.s32.totalorder %s32, 0
      %p231 = por %p229, %p230
      %p232 = scmp.ne.s32.totalorder %s221, %s224
      %p233 = scmp.eq.s32.totalorder %s37, 5
      %p234 = por %p232, %p233
      %p235 = scmp.ne.s32.totalorder %s224, %s225
      %p236 = scmp.eq.s32.totalorder %s37, 0
      %p237 = por %p235, %p236
      %p238 = scmp.ne.s32.totalorder %s224, %s225
      %p239 = scmp.eq.s32.totalorder %s38, 5
      %p240 = por %p238, %p239
      %p242 = scmp.ne.s32.totalorder %s225, %s241
      %p243 = scmp.eq.s32.totalorder %s38, 0
      %p244 = por %p242, %p243
      %s245 = ssub.s32 %s40, %s47
      %p246 = scmp.eq.s32.totalorder %s245, 0
      %s248 = sadd.s32 %s247, 1
      %s249 = scalar_select %p246, %s247, %s248
      %p252 = pneg %p246
      %p253 = scmp.eq.s32.totalorder %s32, 5
      %p254 = por %p252, %p253
      %p255 = scmp.ne.s32.totalorder %s247, %s250
      %p256 = scmp.eq.s32.totalorder %s32, 0
      %p257 = por %p255, %p256
      %p258 = scmp.ne.s32.totalorder %s247, %s250
      %p259 = scmp.eq.s32.totalorder %s37, 5
      %p260 = por %p258, %p259
      %p261 = scmp.ne.s32.totalorder %s250, %s251
      %p262 = scmp.eq.s32.totalorder %s37, 0
      %p263 = por %p261, %p262
      %p264 = scmp.ne.s32.totalorder %s250, %s251
      %p265 = scmp.eq.s32.totalorder %s38, 5
      %p266 = por %p264, %p265
      %p268 = scmp.ne.s32.totalorder %s251, %s267
      %p269 = scmp.eq.s32.totalorder %s38, 0
      %p270 = por %p268, %p269
      %s271 = ssub.s32 %s40, %s47
      %p272 = scmp.eq.s32.totalorder %s271, 0
      %s274 = sadd.s32 %s273, 1
      %s275 = scalar_select %p272, %s273, %s274
      %p278 = pneg %p272
      %p279 = scmp.eq.s32.totalorder %s32, 5
      %p280 = por %p278, %p279
      %p281 = scmp.ne.s32.totalorder %s273, %s276
      %p282 = scmp.eq.s32.totalorder %s32, 0
      %p283 = por %p281, %p282
      %p284 = scmp.ne.s32.totalorder %s273, %s276
      %p285 = scmp.eq.s32.totalorder %s37, 5
      %p286 = por %p284, %p285
      %p287 = scmp.ne.s32.totalorder %s276, %s277
      %p288 = scmp.eq.s32.totalorder %s37, 0
      %p289 = por %p287, %p288
      %p290 = scmp.ne.s32.totalorder %s276, %s277
      %p291 = scmp.eq.s32.totalorder %s38, 5
      %p292 = por %p290, %p291
      %p294 = scmp.ne.s32.totalorder %s277, %s293
      %p295 = scmp.eq.s32.totalorder %s38, 0
      %p296 = por %p294, %p295
      %s297 = ssub.s32 %s40, %s47
      %p298 = scmp.eq.s32.totalorder %s297, 0
      %s300 = sadd.s32 %s299, 1
      %s301 = scalar_select %p298, %s299, %s300
      %p304 = pneg %p298
      %p305 = scmp.eq.s32.totalorder %s32, 5
      %p306 = por %p304, %p305
      %p307 = scmp.ne.s32.totalorder %s299, %s302
      %p308 = scmp.eq.s32.totalorder %s32, 0
      %p309 = por %p307, %p308
      %p310 = scmp.ne.s32.totalorder %s299, %s302
      %p311 = scmp.eq.s32.totalorder %s37, 5
      %p312 = por %p310, %p311
      %p313 = scmp.ne.s32.totalorder %s302, %s303
      %p314 = scmp.eq.s32.totalorder %s37, 0
      %p315 = por %p313, %p314
      %p316 = scmp.ne.s32.totalorder %s302, %s303
      %p317 = scmp.eq.s32.totalorder %s38, 5
      %p318 = por %p316, %p317
      %p320 = scmp.ne.s32.totalorder %s303, %s319
      %p321 = scmp.eq.s32.totalorder %s38, 0
      %p322 = por %p320, %p321
      %s323 = ssub.s32 %s40, %s47
      %p324 = scmp.eq.s32.totalorder %s323, 0
      %s326 = sadd.s32 %s325, 1
      %s327 = scalar_select %p324, %s325, %s326
      %p330 = pneg %p324
      %p331 = scmp.eq.s32.totalorder %s32, 5
      %p332 = por %p330, %p331
      %p333 = scmp.ne.s32.totalorder %s325, %s328
      %p334 = scmp.eq.s32.totalorder %s32, 0
      %p335 = por %p333, %p334
      %p336 = scmp.ne.s32.totalorder %s325, %s328
      %p337 = scmp.eq.s32.totalorder %s37, 5
      %p338 = por %p336, %p337
      %p339 = scmp.ne.s32.totalorder %s328, %s329
      %p340 = scmp.eq.s32.totalorder %s37, 0
      %p341 = por %p339, %p340
      %p342 = scmp.ne.s32.totalorder %s328, %s329
      %p343 = scmp.eq.s32.totalorder %s38, 5
      %p344 = por %p342, %p343
      %p346 = scmp.ne.s32.totalorder %s329, %s345
      %p347 = scmp.eq.s32.totalorder %s38, 0
      %p348 = por %p346, %p347
      %s349 = ssub.s32 %s40, %s47
      %p350 = scmp.eq.s32.totalorder %s349, 0
      %s352 = sadd.s32 %s351, 1
      %s353 = scalar_select %p350, %s351, %s352
      %p356 = pneg %p350
      %p357 = scmp.eq.s32.totalorder %s32, 5
      %p358 = por %p356, %p357
      %p359 = scmp.ne.s32.totalorder %s351, %s354
      %p360 = scmp.eq.s32.totalorder %s32, 0
      %p361 = por %p359, %p360
      %p362 = scmp.ne.s32.totalorder %s351, %s354
      %p363 = scmp.eq.s32.totalorder %s37, 5
      %p364 = por %p362, %p363
      %p365 = scmp.ne.s32.totalorder %s354, %s355
      %p366 = scmp.eq.s32.totalorder %s37, 0
      %p367 = por %p365, %p366
      %p368 = scmp.ne.s32.totalorder %s354, %s355
      %p369 = scmp.eq.s32.totalorder %s38, 5
      %p370 = por %p368, %p369
      %p372 = scmp.ne.s32.totalorder %s355, %s371
      %p373 = scmp.eq.s32.totalorder %s38, 0
      %p374 = por %p372, %p373
      %s375 = ssub.s32 %s40, %s47
      %p376 = scmp.eq.s32.totalorder %s375, 0
      %s378 = sadd.s32 %s377, 1
      %s379 = scalar_select %p376, %s377, %s378
      %p382 = pneg %p376
      %p383 = scmp.eq.s32.totalorder %s32, 5
      %p384 = por %p382, %p383
      %p385 = scmp.ne.s32.totalorder %s377, %s380
      %p386 = scmp.eq.s32.totalorder %s32, 0
      %p387 = por %p385, %p386
      %p388 = scmp.ne.s32.totalorder %s377, %s380
      %p389 = scmp.eq.s32.totalorder %s37, 5
      %p390 = por %p388, %p389
      %p391 = scmp.ne.s32.totalorder %s380, %s381
      %p392 = scmp.eq.s32.totalorder %s37, 0
      %p393 = por %p391, %p392
      %p394 = scmp.ne.s32.totalorder %s380, %s381
      %p395 = scmp.eq.s32.totalorder %s38, 5
      %p396 = por %p394, %p395
      %p398 = scmp.ne.s32.totalorder %s381, %s397
      %p399 = scmp.eq.s32.totalorder %s38, 0
      %p400 = por %p398, %p399
      %s401 = ssub.s32 %s40, %s47
      %p402 = scmp.eq.s32.totalorder %s401, 0
      %s404 = sadd.s32 %s403, 1
      %s405 = scalar_select %p402, %s403, %s404
      %p408 = pneg %p402
      %p409 = scmp.eq.s32.totalorder %s32, 5
      %p410 = por %p408, %p409
      %p411 = scmp.ne.s32.totalorder %s403, %s406
      %p412 = scmp.eq.s32.totalorder %s32, 0
      %p413 = por %p411, %p412
      %p414 = scmp.ne.s32.totalorder %s403, %s406
      %p415 = scmp.eq.s32.totalorder %s37, 5
      %p416 = por %p414, %p415
      %p417 = scmp.ne.s32.totalorder %s406, %s407
      %p418 = scmp.eq.s32.totalorder %s37, 0
      %p419 = por %p417, %p418
      %p420 = scmp.ne.s32.totalorder %s406, %s407
      %p421 = scmp.eq.s32.totalorder %s38, 5
      %p422 = por %p420, %p421
      %p424 = scmp.ne.s32.totalorder %s407, %s423
      %p425 = scmp.eq.s32.totalorder %s38, 0
      %p426 = por %p424, %p425
      %s427 = ssub.s32 %s40, %s47
      %p428 = scmp.eq.s32.totalorder %s427, 0
      %s430 = sadd.s32 %s429, 1
      %s431 = scalar_select %p428, %s429, %s430
      %p434 = pneg %p428
      %p435 = scmp.eq.s32.totalorder %s32, 5
      %p436 = por %p434, %p435
      %p437 = scmp.ne.s32.totalorder %s429, %s432
      %p438 = scmp.eq.s32.totalorder %s32, 0
      %p439 = por %p437, %p438
      %p440 = scmp.ne.s32.totalorder %s429, %s432
      %p441 = scmp.eq.s32.totalorder %s37, 5
      %p442 = por %p440, %p441
      %p443 = scmp.ne.s32.totalorder %s432, %s433
      %p444 = scmp.eq.s32.totalorder %s37, 0
      %p445 = por %p443, %p444
      %p446 = scmp.ne.s32.totalorder %s432, %s433
      %p447 = scmp.eq.s32.totalorder %s38, 5
      %p448 = por %p446, %p447
      %p450 = scmp.ne.s32.totalorder %s433, %s449
      %p451 = scmp.eq.s32.totalorder %s38, 0
      %p452 = por %p450, %p451
      %s454 = sadd.s32 %s453, 1
      %p457 = scmp.eq.s32.totalorder %s32, 5
      %p458 = scmp.ne.s32.totalorder %s453, %s455
      %p459 = scmp.eq.s32.totalorder %s32, 0
      %p460 = por %p458, %p459
      %p461 = scmp.ne.s32.totalorder %s453, %s455
      %p462 = scmp.eq.s32.totalorder %s37, 5
      %p463 = por %p461, %p462
      %p464 = scmp.ne.s32.totalorder %s455, %s456
      %p465 = scmp.eq.s32.totalorder %s37, 0
      %p466 = por %p464, %p465
      %p467 = scmp.ne.s32.totalorder %s455, %s456
      %p468 = scmp.eq.s32.totalorder %s38, 5
      %p469 = por %p467, %p468
      %p471 = scmp.ne.s32.totalorder %s456, %s470
      %p472 = scmp.eq.s32.totalorder %s38, 0
      %p473 = por %p471, %p472
      %s475 = sadd.s32 %s474, 1
      %p478 = scmp.eq.s32.totalorder %s32, 5
      %p479 = scmp.ne.s32.totalorder %s474, %s476
      %p480 = scmp.eq.s32.totalorder %s32, 0
      %p481 = por %p479, %p480
      %p482 = scmp.ne.s32.totalorder %s474, %s476
      %p483 = scmp.eq.s32.totalorder %s37, 5
      %p484 = por %p482, %p483
      %p485 = scmp.ne.s32.totalorder %s476, %s477
      %p486 = scmp.eq.s32.totalorder %s37, 0
      %p487 = por %p485, %p486
      %p488 = scmp.ne.s32.totalorder %s476, %s477
      %p489 = scmp.eq.s32.totalorder %s38, 5
      %p490 = por %p488, %p489
      %p492 = scmp.ne.s32.totalorder %s477, %s491
      %p493 = scmp.eq.s32.totalorder %s38, 0
      %p494 = por %p492, %p493
      %s495 = ssub.s32 %s39, %s51
      %p496 = scmp.eq.s32.totalorder %s495, 0
      %s498 = sadd.s32 %s497, 1
      %s499 = scalar_select %p496, %s497, %s498
      %p502 = pneg %p496
      %p503 = scmp.eq.s32.totalorder %s32, 5
      %p504 = por %p502, %p503
      %p505 = scmp.ne.s32.totalorder %s497, %s500
      %p506 = scmp.eq.s32.totalorder %s32, 0
      %p507 = por %p505, %p506
      %p508 = scmp.ne.s32.totalorder %s497, %s500
      %p509 = scmp.eq.s32.totalorder %s37, 5
      %p510 = por %p508, %p509
      %p511 = scmp.ne.s32.totalorder %s500, %s501
      %p512 = scmp.eq.s32.totalorder %s37, 0
      %p513 = por %p511, %p512
      %p514 = scmp.ne.s32.totalorder %s500, %s501
      %p515 = scmp.eq.s32.totalorder %s38, 5
      %p516 = por %p514, %p515
      %p518 = scmp.ne.s32.totalorder %s501, %s517
      %p519 = scmp.eq.s32.totalorder %s38, 0
      %p520 = por %p518, %p519
      %p521 = scmp.le.s32.totalorder 1, %s32
      %p522 = scmp.lt.s32.totalorder %s32, 7
      %p523 = pnand %p521, %p522
      %p524 = pneg %p523
      // Predicated region
      $region9: #{tpu_custom_call.1} parent=5 // pred_check
        _
      $region10: #{tpu_custom_call.1} parent=5 // pred_check_branch
        %526 = sbr.rel (%p523) target = $region12
      $region11: #{tpu_custom_call.1} parent=5 // pred_region
        %s527 = ssub.s32 %s32, 1
        // Predicated region
        $region13: #{tpu_custom_call.1} parent=11 // pred_check
          %p528 = pneg %p91
        $region14: #{tpu_custom_call.1} parent=11 // pred_check_branch
          %530 = sbr.rel (%p528) target = $region16
        $region15: #{tpu_custom_call.1} parent=11 // pred_region
          %s532 = ssub.s32 512, 512
          %533 = vsyncadd [#allocation7], %s532
          %s534 = sshll.u32 [#allocation6], 4
          %s535 = int_to_ptr.vmem [resolvable:$true] %s534
          %540 = dma.hbm_to_vmem [thread:$0]  %s1, 512, %s535, [#allocation7], 64, 64, 4
        $region16: #{tpu_custom_call.1} parent=11 // pred_fallthru
          _
        // Predicated region
        $region17: #{tpu_custom_call.1} parent=11 // pred_check
          %p541 = pneg %p112
        $region18: #{tpu_custom_call.1} parent=11 // pred_check_branch
          %543 = sbr.rel (%p541) target = $region20
        $region19: #{tpu_custom_call.1} parent=11 // pred_region
          %s545 = ssub.s32 16, 16
          %546 = vsyncadd [#allocation7], %s545
          %s548 = sshll.u32 [#allocation8], 4
          %s549 = int_to_ptr.vmem [resolvable:$true] %s548
          %551 = dma.hbm_to_vmem [thread:$0]  %s2, 16, %s549, [#allocation7]
        $region20: #{tpu_custom_call.1} parent=11 // pred_fallthru
          _
        // Predicated region
        $region21: #{tpu_custom_call.1} parent=11 // pred_check
          %p552 = pneg %p133
        $region22: #{tpu_custom_call.1} parent=11 // pred_check_branch
          %554 = sbr.rel (%p552) target = $region24
        $region23: #{tpu_custom_call.1} parent=11 // pred_region
          %s556 = ssub.s32 256, 256
          %557 = vsyncadd [#allocation10], %s556
          %s558 = sshll.u32 [#allocation9], 4
          %s559 = int_to_ptr.vmem [resolvable:$true] %s558
          %564 = dma.hbm_to_vmem [thread:$0]  %s3, 256, %s559, [#allocation10], 128, 128, 8
        $region24: #{tpu_custom_call.1} parent=11 // pred_fallthru
          _
        // Predicated region
        $region25: #{tpu_custom_call.1} parent=11 // pred_check
          %p565 = pneg %p466
        $region26: #{tpu_custom_call.1} parent=11 // pred_check_branch
          %567 = sbr.rel (%p565) target = $region28
        $region27: #{tpu_custom_call.1} parent=11 // pred_region
          _
        $region28: #{tpu_custom_call.1} parent=11 // pred_fallthru
          _
        // Predicated region
        $region29: #{tpu_custom_call.1} parent=11 // pred_check
          %p568 = pneg %p487
        $region30: #{tpu_custom_call.1} parent=11 // pred_check_branch
          %570 = sbr.rel (%p568) target = $region32
        $region31: #{tpu_custom_call.1} parent=11 // pred_region
          _
        $region32: #{tpu_custom_call.1} parent=11 // pred_fallthru
          _
      $region12: #{tpu_custom_call.1} parent=5 // pred_fallthru
        _
      %p571 = scmp.lt.s32.totalorder %s32, 6
      // Predicated region
      $region33: #{tpu_custom_call.1} parent=5 // pred_check
        %p572 = pneg %p571
      $region34: #{tpu_custom_call.1} parent=5 // pred_check_branch
        %574 = sbr.rel (%p572) target = $region36
      $region35: #{tpu_custom_call.1} parent=5 // pred_region
        // Predicated region
        $region37: #{tpu_custom_call.1} parent=35 // pred_check
          %p575 = pneg %p64
        $region38: #{tpu_custom_call.1} parent=35 // pred_check_branch
          %577 = sbr.rel (%p575) target = $region40
        $region39: #{tpu_custom_call.1} parent=35 // pred_region
          %s578 = sand.u32 %s32, 1
          %s579 = scalar_lea.sflag [#allocation4], %s578
          %s580 = sand.u32 %s54, 1
          %s581 = smul.addr %s580, 8
          %s582 = scalar_lea.vmem [#allocation3], %s581
          %s584 = ssub.s32 128, 128
          %585 = vsyncadd %s579, %s584
          %s586 = smul.addr %s39, 2
          %s587 = smul.addr %s586, 64
          %s588 = scalar_lea.hbm %s0, %s587
          %s589 = sshll.u32 %s582, 4
          %s590 = int_to_ptr.vmem [resolvable:$true] %s589
          %595 = dma.hbm_to_vmem [thread:$0]  %s588, 128, %s590, %s579, 64, 64, 4
        $region40: #{tpu_custom_call.1} parent=35 // pred_fallthru
          _
        // Predicated region
        $region41: #{tpu_custom_call.1} parent=35 // pred_check
          %p596 = pneg %p153
        $region42: #{tpu_custom_call.1} parent=35 // pred_check_branch
          %598 = sbr.rel (%p596) target = $region44
        $region43: #{tpu_custom_call.1} parent=35 // pred_region
          %s599 = sand.u32 %s32, 1
          %s600 = scalar_lea.sflag [#allocation4], %s599
          %s601 = sand.u32 %s143, 1
          %s602 = scalar_lea.vmem [#allocation11], %s601
          %s604 = ssub.s32 16, 16
          %605 = vsyncadd %s600, %s604
          %s606 = smul.addr %s40, 16
          %s607 = scalar_lea.hbm %s4, %s606
          %s609 = sshll.u32 %s602, 4
          %s610 = int_to_ptr.vmem [resolvable:$true] %s609
          %612 = dma.hbm_to_vmem [thread:$0]  %s607, 16, %s610, %s600
        $region44: #{tpu_custom_call.1} parent=35 // pred_fallthru
          _
        // Predicated region
        $region45: #{tpu_custom_call.1} parent=35 // pred_check
          %p613 = pneg %p179
        $region46: #{tpu_custom_call.1} parent=35 // pred_check_branch
          %615 = sbr.rel (%p613) target = $region48
        $region47: #{tpu_custom_call.1} parent=35 // pred_region
          %s616 = sand.u32 %s32, 1
          %s617 = scalar_lea.sflag [#allocation4], %s616
          %s618 = sand.u32 %s169, 1
          %s619 = scalar_lea.vmem [#allocation12], %s618
          %s621 = ssub.s32 16, 16
          %622 = vsyncadd %s617, %s621
          %s623 = smul.addr %s40, 16
          %s624 = scalar_lea.hbm %s5, %s623
          %s626 = sshll.u32 %s619, 4
          %s627 = int_to_ptr.vmem [resolvable:$true] %s626
          %629 = dma.hbm_to_vmem [thread:$0]  %s624, 16, %s627, %s617
        $region48: #{tpu_custom_call.1} parent=35 // pred_fallthru
          _
        // Predicated region
        $region49: #{tpu_custom_call.1} parent=35 // pred_check
          %p630 = pneg %p205
        $region50: #{tpu_custom_call.1} parent=35 // pred_check_branch
          %632 = sbr.rel (%p630) target = $region52
        $region51: #{tpu_custom_call.1} parent=35 // pred_region
          %s633 = sand.u32 %s32, 1
          %s634 = scalar_lea.sflag [#allocation4], %s633
          %s635 = sand.u32 %s195, 1
          %s636 = smul.addr %s635, 192
          %s637 = scalar_lea.vmem [#allocation13], %s636
          %s639 = ssub.s32 3072, 3072
          %640 = vsyncadd %s634, %s639
          %s641 = smul.addr %s40, 48
          %s642 = smul.addr %s641, 64
          %s643 = scalar_lea.hbm %s6, %s642
          %s644 = sshll.u32 %s637, 4
          %s645 = int_to_ptr.vmem [resolvable:$true] %s644
          %650 = dma.hbm_to_vmem [thread:$0]  %s643, 3072, %s645, %s634, 192, 192, 12
        $region52: #{tpu_custom_call.1} parent=35 // pred_fallthru
          _
        // Predicated region
        $region53: #{tpu_custom_call.1} parent=35 // pred_check
          %p651 = pneg %p231
        $region54: #{tpu_custom_call.1} parent=35 // pred_check_branch
          %653 = sbr.rel (%p651) target = $region56
        $region55: #{tpu_custom_call.1} parent=35 // pred_region
          %p654 = scmp.lt.s32.totalorder %s40, 2
          %s655 = scalar_select %p654, %s40, 2
          %s656 = smul.addr %s655, 3
          %s657 = scalar_lea.vmem %s7, %s656
        $region56: #{tpu_custom_call.1} parent=35 // pred_fallthru
          _
        // Predicated region
        $region57: #{tpu_custom_call.1} parent=35 // pred_check
          %p658 = pneg %p257
        $region58: #{tpu_custom_call.1} parent=35 // pred_check_branch
          %660 = sbr.rel (%p658) target = $region60
        $region59: #{tpu_custom_call.1} parent=35 // pred_region
          %s661 = sand.u32 %s32, 1
          %s662 = scalar_lea.sflag [#allocation4], %s661
          %s663 = sand.u32 %s247, 1
          %s664 = smul.addr %s663, 64
          %s665 = scalar_lea.vmem [#allocation14], %s664
          %s667 = ssub.s32 1024, 1024
          %668 = vsyncadd %s662, %s667
          %s669 = smul.addr %s40, 16
          %s670 = smul.addr %s669, 64
          %s671 = scalar_lea.hbm %s8, %s670
          %s672 = sshll.u32 %s665, 4
          %s673 = int_to_ptr.vmem [resolvable:$true] %s672
          %678 = dma.hbm_to_vmem [thread:$0]  %s671, 1024, %s673, %s662, 64, 64, 4
        $region60: #{tpu_custom_call.1} parent=35 // pred_fallthru
          _
        // Predicated region
        $region61: #{tpu_custom_call.1} parent=35 // pred_check
          %p679 = pneg %p283
        $region62: #{tpu_custom_call.1} parent=35 // pred_check_branch
          %681 = sbr.rel (%p679) target = $region64
        $region63: #{tpu_custom_call.1} parent=35 // pred_region
          %p682 = scmp.lt.s32.totalorder %s40, 2
          %s683 = scalar_select %p682, %s40, 2
          %s684 = scalar_lea.vmem %s9, %s683
        $region64: #{tpu_custom_call.1} parent=35 // pred_fallthru
          _
        // Predicated region
        $region65: #{tpu_custom_call.1} parent=35 // pred_check
          %p685 = pneg %p309
        $region66: #{tpu_custom_call.1} parent=35 // pred_check_branch
          %687 = sbr.rel (%p685) target = $region68
        $region67: #{tpu_custom_call.1} parent=35 // pred_region
          %p688 = scmp.lt.s32.totalorder %s40, 2
          %s689 = scalar_select %p688, %s40, 2
          %s690 = scalar_lea.vmem %s10, %s689
        $region68: #{tpu_custom_call.1} parent=35 // pred_fallthru
          _
        // Predicated region
        $region69: #{tpu_custom_call.1} parent=35 // pred_check
          %p691 = pneg %p335
        $region70: #{tpu_custom_call.1} parent=35 // pred_check_branch
          %693 = sbr.rel (%p691) target = $region72
        $region71: #{tpu_custom_call.1} parent=35 // pred_region
          %p694 = scmp.lt.s32.totalorder %s40, 2
          %s695 = scalar_select %p694, %s40, 2
          %s696 = scalar_lea.vmem %s11, %s695
        $region72: #{tpu_custom_call.1} parent=35 // pred_fallthru
          _
        // Predicated region
        $region73: #{tpu_custom_call.1} parent=35 // pred_check
          %p697 = pneg %p361
        $region74: #{tpu_custom_call.1} parent=35 // pred_check_branch
          %699 = sbr.rel (%p697) target = $region76
        $region75: #{tpu_custom_call.1} parent=35 // pred_region
          %s700 = sand.u32 %s32, 1
          %s701 = scalar_lea.sflag [#allocation4], %s700
          %s702 = sand.u32 %s351, 1
          %s703 = smul.addr %s702, 256
          %s704 = scalar_lea.vmem [#allocation15], %s703
          %s706 = ssub.s32 4096, 4096
          %707 = vsyncadd %s701, %s706
          %s708 = smul.addr %s40, 64
          %s709 = smul.addr %s708, 64
          %s710 = scalar_lea.hbm %s12, %s709
          %s711 = sshll.u32 %s704, 4
          %s712 = int_to_ptr.vmem [resolvable:$true] %s711
          %717 = dma.hbm_to_vmem [thread:$0]  %s710, 4096, %s712, %s701, 256, 256, 16
        $region76: #{tpu_custom_call.1} parent=35 // pred_fallthru
          _
        // Predicated region
        $region77: #{tpu_custom_call.1} parent=35 // pred_check
          %p718 = pneg %p387
        $region78: #{tpu_custom_call.1} parent=35 // pred_check_branch
          %720 = sbr.rel (%p718) target = $region80
        $region79: #{tpu_custom_call.1} parent=35 // pred_region
          %p721 = scmp.lt.s32.totalorder %s40, 2
          %s722 = scalar_select %p721, %s40, 2
          %s723 = smul.addr %s722, 4
          %s724 = scalar_lea.vmem %s13, %s723
        $region80: #{tpu_custom_call.1} parent=35 // pred_fallthru
          _
        // Predicated region
        $region81: #{tpu_custom_call.1} parent=35 // pred_check
          %p725 = pneg %p413
        $region82: #{tpu_custom_call.1} parent=35 // pred_check_branch
          %727 = sbr.rel (%p725) target = $region84
        $region83: #{tpu_custom_call.1} parent=35 // pred_region
          %s728 = sand.u32 %s32, 1
          %s729 = scalar_lea.sflag [#allocation4], %s728
          %s730 = sand.u32 %s403, 1
          %s731 = smul.addr %s730, 256
          %s732 = scalar_lea.vmem [#allocation16], %s731
          %s734 = ssub.s32 4096, 4096
          %735 = vsyncadd %s729, %s734
          %s736 = smul.addr %s40, 64
          %s737 = smul.addr %s736, 64
          %s738 = scalar_lea.hbm %s14, %s737
          %s739 = sshll.u32 %s732, 4
          %s740 = int_to_ptr.vmem [resolvable:$true] %s739
          %745 = dma.hbm_to_vmem [thread:$0]  %s738, 4096, %s740, %s729, 64, 64, 4
        $region84: #{tpu_custom_call.1} parent=35 // pred_fallthru
          _
        // Predicated region
        $region85: #{tpu_custom_call.1} parent=35 // pred_check
          %p746 = pneg %p439
        $region86: #{tpu_custom_call.1} parent=35 // pred_check_branch
          %748 = sbr.rel (%p746) target = $region88
        $region87: #{tpu_custom_call.1} parent=35 // pred_region
          %p749 = scmp.lt.s32.totalorder %s40, 2
          %s750 = scalar_select %p749, %s40, 2
          %s751 = scalar_lea.vmem %s15, %s750
        $region88: #{tpu_custom_call.1} parent=35 // pred_fallthru
          _
      $region36: #{tpu_custom_call.1} parent=5 // pred_fallthru
        _
      %p752 = scmp.le.s32.totalorder 1, %s32
      %p753 = scmp.lt.s32.totalorder %s32, 7
      %p754 = pnand %p752, %p753
      %p755 = pneg %p754
      // Predicated region
      $region89: #{tpu_custom_call.1} parent=5 // pred_check
        _
      $region90: #{tpu_custom_call.1} parent=5 // pred_check_branch
        %757 = sbr.rel (%p754) target = $region92
      $region91: #{tpu_custom_call.1} parent=5 // pred_region
        %s758 = ssub.s32 %s32, 1
        %s759 = sand.u32 %s37, 1
        %s760 = scalar_lea.sflag [#allocation4], %s759
        %s761 = sand.u32 %s57, 1
        %s762 = smul.addr %s761, 8
        %s763 = scalar_lea.vmem [#allocation3], %s762
        // Predicated region
        $region93: #{tpu_custom_call.1} parent=91 // pred_check
          %p764 = pneg %p70
        $region94: #{tpu_custom_call.1} parent=91 // pred_check_branch
          %766 = sbr.rel (%p764) target = $region96
        $region95: #{tpu_custom_call.1} parent=91 // pred_region
          %767 = dma.done %s760, 128
        $region96: #{tpu_custom_call.1} parent=91 // pred_fallthru
          _
        // Predicated region
        $region97: #{tpu_custom_call.1} parent=91 // pred_check
          %p768 = pneg %p91
        $region98: #{tpu_custom_call.1} parent=91 // pred_check_branch
          %770 = sbr.rel (%p768) target = $region100
        $region99: #{tpu_custom_call.1} parent=91 // pred_region
          %771 = dma.done [#allocation7], 512
        $region100: #{tpu_custom_call.1} parent=91 // pred_fallthru
          _
        // Predicated region
        $region101: #{tpu_custom_call.1} parent=91 // pred_check
          %p772 = pneg %p112
        $region102: #{tpu_custom_call.1} parent=91 // pred_check_branch
          %774 = sbr.rel (%p772) target = $region104
        $region103: #{tpu_custom_call.1} parent=91 // pred_region
          %775 = dma.done [#allocation7], 16
        $region104: #{tpu_custom_call.1} parent=91 // pred_fallthru
          _
        // Predicated region
        $region105: #{tpu_custom_call.1} parent=91 // pred_check
          %p776 = pneg %p133
        $region106: #{tpu_custom_call.1} parent=91 // pred_check_branch
          %778 = sbr.rel (%p776) target = $region108
        $region107: #{tpu_custom_call.1} parent=91 // pred_region
          %779 = dma.done [#allocation10], 256
        $region108: #{tpu_custom_call.1} parent=91 // pred_fallthru
          _
        %s780 = sand.u32 %s37, 1
        %s781 = scalar_lea.sflag [#allocation4], %s780
        %s782 = sand.u32 %s146, 1
        %s783 = scalar_lea.vmem [#allocation11], %s782
        // Predicated region
        $region109: #{tpu_custom_call.1} parent=91 // pred_check
          %p784 = pneg %p159
        $region110: #{tpu_custom_call.1} parent=91 // pred_check_branch
          %786 = sbr.rel (%p784) target = $region112
        $region111: #{tpu_custom_call.1} parent=91 // pred_region
          %787 = dma.done %s781, 16
        $region112: #{tpu_custom_call.1} parent=91 // pred_fallthru
          _
        %s788 = sand.u32 %s37, 1
        %s789 = scalar_lea.sflag [#allocation4], %s788
        %s790 = sand.u32 %s172, 1
        %s791 = scalar_lea.vmem [#allocation12], %s790
        // Predicated region
        $region113: #{tpu_custom_call.1} parent=91 // pred_check
          %p792 = pneg %p185
        $region114: #{tpu_custom_call.1} parent=91 // pred_check_branch
          %794 = sbr.rel (%p792) target = $region116
        $region115: #{tpu_custom_call.1} parent=91 // pred_region
          %795 = dma.done %s789, 16
        $region116: #{tpu_custom_call.1} parent=91 // pred_fallthru
          _
        %s796 = sand.u32 %s37, 1
        %s797 = scalar_lea.sflag [#allocation4], %s796
        %s798 = sand.u32 %s198, 1
        %s799 = smul.addr %s798, 192
        %s800 = scalar_lea.vmem [#allocation13], %s799
        // Predicated region
        $region117: #{tpu_custom_call.1} parent=91 // pred_check
          %p801 = pneg %p211
        $region118: #{tpu_custom_call.1} parent=91 // pred_check_branch
          %803 = sbr.rel (%p801) target = $region120
        $region119: #{tpu_custom_call.1} parent=91 // pred_region
          %804 = dma.done %s797, 3072
        $region120: #{tpu_custom_call.1} parent=91 // pred_fallthru
          _
        %s805 = sand.u32 %s37, 1
        %s806 = scalar_lea.sflag [#allocation4], %s805
        %s807 = sand.u32 %s250, 1
        %s808 = smul.addr %s807, 64
        %s809 = scalar_lea.vmem [#allocation14], %s808
        // Predicated region
        $region121: #{tpu_custom_call.1} parent=91 // pred_check
          %p810 = pneg %p263
        $region122: #{tpu_custom_call.1} parent=91 // pred_check_branch
          %812 = sbr.rel (%p810) target = $region124
        $region123: #{tpu_custom_call.1} parent=91 // pred_region
          %813 = dma.done %s806, 1024
        $region124: #{tpu_custom_call.1} parent=91 // pred_fallthru
          _
        %s814 = sand.u32 %s37, 1
        %s815 = scalar_lea.sflag [#allocation4], %s814
        %s816 = sand.u32 %s354, 1
        %s817 = smul.addr %s816, 256
        %s818 = scalar_lea.vmem [#allocation15], %s817
        // Predicated region
        $region125: #{tpu_custom_call.1} parent=91 // pred_check
          %p819 = pneg %p367
        $region126: #{tpu_custom_call.1} parent=91 // pred_check_branch
          %821 = sbr.rel (%p819) target = $region128
        $region127: #{tpu_custom_call.1} parent=91 // pred_region
          %822 = dma.done %s815, 4096
        $region128: #{tpu_custom_call.1} parent=91 // pred_fallthru
          _
        %s823 = sand.u32 %s37, 1
        %s824 = scalar_lea.sflag [#allocation4], %s823
        %s825 = sand.u32 %s406, 1
        %s826 = smul.addr %s825, 256
        %s827 = scalar_lea.vmem [#allocation16], %s826
        // Predicated region
        $region129: #{tpu_custom_call.1} parent=91 // pred_check
          %p828 = pneg %p419
        $region130: #{tpu_custom_call.1} parent=91 // pred_check_branch
          %830 = sbr.rel (%p828) target = $region132
        $region131: #{tpu_custom_call.1} parent=91 // pred_region
          %831 = dma.done %s824, 4096
        $region132: #{tpu_custom_call.1} parent=91 // pred_fallthru
          _
        %s832 = sand.u32 %s37, 1
        %s833 = scalar_lea.sflag [#allocation4], %s832
        %s834 = sand.u32 %s57, 1
        %s835 = smul.addr %s834, 8
        %s836 = scalar_lea.vmem [#allocation3], %s835
        %p837 = pneg %p70
        %p838 = pneg %p67
        %p839 = pneg %p91
        %p840 = pneg %p88
        %p841 = pneg %p112
        %p842 = pneg %p109
        %p843 = pneg %p133
        %p844 = pneg %p130
        %s845 = sand.u32 %s37, 1
        %s846 = scalar_lea.sflag [#allocation4], %s845
        %s847 = sand.u32 %s146, 1
        %s848 = scalar_lea.vmem [#allocation11], %s847
        %p849 = pneg %p159
        %p850 = pneg %p156
        %s851 = sand.u32 %s37, 1
        %s852 = scalar_lea.sflag [#allocation4], %s851
        %s853 = sand.u32 %s172, 1
        %s854 = scalar_lea.vmem [#allocation12], %s853
        %p855 = pneg %p185
        %p856 = pneg %p182
        %s857 = sand.u32 %s37, 1
        %s858 = scalar_lea.sflag [#allocation4], %s857
        %s859 = sand.u32 %s198, 1
        %s860 = smul.addr %s859, 192
        %s861 = scalar_lea.vmem [#allocation13], %s860
        %p862 = pneg %p211
        %p863 = pneg %p208
        %p864 = scmp.lt.s32.totalorder %s42, 2
        %s865 = scalar_select %p864, %s42, 2
        %s866 = smul.addr %s865, 3
        %s867 = scalar_lea.vmem %s7, %s866
        %p868 = pneg %p237
        %p869 = pneg %p234
        %s870 = sand.u32 %s37, 1
        %s871 = scalar_lea.sflag [#allocation4], %s870
        %s872 = sand.u32 %s250, 1
        %s873 = smul.addr %s872, 64
        %s874 = scalar_lea.vmem [#allocation14], %s873
        %p875 = pneg %p263
        %p876 = pneg %p260
        %p877 = scmp.lt.s32.totalorder %s42, 2
        %s878 = scalar_select %p877, %s42, 2
        %s879 = scalar_lea.vmem %s9, %s878
        %p880 = pneg %p289
        %p881 = pneg %p286
        %p882 = scmp.lt.s32.totalorder %s42, 2
        %s883 = scalar_select %p882, %s42, 2
        %s884 = scalar_lea.vmem %s10, %s883
        %p885 = pneg %p315
        %p886 = pneg %p312
        %p887 = scmp.lt.s32.totalorder %s42, 2
        %s888 = scalar_select %p887, %s42, 2
        %s889 = scalar_lea.vmem %s11, %s888
        %p890 = pneg %p341
        %p891 = pneg %p338
        %s892 = sand.u32 %s37, 1
        %s893 = scalar_lea.sflag [#allocation4], %s892
        %s894 = sand.u32 %s354, 1
        %s895 = smul.addr %s894, 256
        %s896 = scalar_lea.vmem [#allocation15], %s895
        %p897 = pneg %p367
        %p898 = pneg %p364
        %p899 = scmp.lt.s32.totalorder %s42, 2
        %s900 = scalar_select %p899, %s42, 2
        %s901 = smul.addr %s900, 4
        %s902 = scalar_lea.vmem %s13, %s901
        %p903 = pneg %p393
        %p904 = pneg %p390
        %s905 = sand.u32 %s37, 1
        %s906 = scalar_lea.sflag [#allocation4], %s905
        %s907 = sand.u32 %s406, 1
        %s908 = smul.addr %s907, 256
        %s909 = scalar_lea.vmem [#allocation16], %s908
        %p910 = pneg %p419
        %p911 = pneg %p416
        %p912 = scmp.lt.s32.totalorder %s42, 2
        %s913 = scalar_select %p912, %s42, 2
        %s914 = scalar_lea.vmem %s15, %s913
        %p915 = pneg %p445
        %p916 = pneg %p442
        %p917 = pneg %p466
        %p918 = pneg %p463
        %p919 = pneg %p487
        %p920 = pneg %p484
        %p921 = pneg %p513
        %p922 = pneg %p510
        %s923 = sand.u32 %s500, 1
        %s924 = scalar_lea.sflag [#allocation5], %s923
        %s925 = sand.u32 %s500, 1
        %s926 = smul.addr %s925, 16
        %s927 = scalar_lea.vmem [#allocation17], %s926
        %p928 = scmp.lt.s32.totalorder %s42, 2
        %s929 = scalar_select %p928, %s42, 2
        %s930 = smul.addr %s929, 3
        %s931 = scalar_lea.vmem %s7, %s930
        %p932 = scmp.lt.s32.totalorder %s42, 2
        %s933 = scalar_select %p932, %s42, 2
        %s934 = scalar_lea.vmem %s9, %s933
        %p935 = scmp.lt.s32.totalorder %s42, 2
        %s936 = scalar_select %p935, %s42, 2
        %s937 = scalar_lea.vmem %s10, %s936
        %p938 = scmp.lt.s32.totalorder %s42, 2
        %s939 = scalar_select %p938, %s42, 2
        %s940 = scalar_lea.vmem %s11, %s939
        %p941 = scmp.lt.s32.totalorder %s42, 2
        %s942 = scalar_select %p941, %s42, 2
        %s943 = smul.addr %s942, 4
        %s944 = scalar_lea.vmem %s13, %s943
        %p945 = scmp.lt.s32.totalorder %s42, 2
        %s946 = scalar_select %p945, %s42, 2
        %s947 = scalar_lea.vmem %s15, %s946
        %p949 = scmp.eq.s32.totalorder %s42, 0
        // Predicated region
        $region133: #{tpu_custom_call.1} parent=91 // pred_check
          %p950 = pneg %p949
        $region134: #{tpu_custom_call.1} parent=91 // pred_check_branch
          %952 = sbr.rel (%p950) target = $region136
        $region135: #{tpu_custom_call.1} parent=91 // pred_region
          %v953 = vld [vmem:[%s763] sm:$0xf]
          %v954 = vld [vmem:[%s763 + $0x4] sm:$0xf]
          %v955 = vld [vmem:[#allocation6] sm:$0xf]
          %v956 = vld [vmem:[#allocation6 + $0x4] sm:$0xf]
          %v957 = vld [vmem:[#allocation6 + $0x8] sm:$0xf]
          %v958 = vld [vmem:[#allocation6 + $0xc] sm:$0xf]
          %v959 = vld [vmem:[#allocation6 + $0x10] sm:$0xf]
          %v960 = vld [vmem:[#allocation6 + $0x14] sm:$0xf]
          %v961 = vld [vmem:[#allocation6 + $0x18] sm:$0xf]
          %v962 = vld [vmem:[#allocation6 + $0x1c] sm:$0xf]
          %v963 = vld [vmem:[#allocation8] sm:$0x1]
          %v965 = vlaneseq
          %v966 = vshrl.u32 %v965, 7
          %v967 = vsub.s32 0, %v966
          %v968 = vrot.slane %v963, %v967
          %v972 = vunpack.c.l.b16 %v953
          %v973 = vunpack.c.l.b16 %v954
          %v974 = vpack.c.b16 %v973, %v972
          %v983 = vunpack.c.l.b16 %v955
          %v984 = vunpack.c.l.b16 %v956
          %v985 = vunpack.c.l.b16 %v957
          %v986 = vunpack.c.l.b16 %v958
          %v987 = vunpack.c.l.b16 %v959
          %v988 = vunpack.c.l.b16 %v960
          %v989 = vunpack.c.l.b16 %v961
          %v990 = vunpack.c.l.b16 %v962
          %v991 = vpack.c.b16 %v984, %v983
          %v992 = vpack.c.b16 %v986, %v985
          %v993 = vpack.c.b16 %v988, %v987
          %v994 = vpack.c.b16 %v990, %v989
          %vm999 = vcmask 523264
          %v1001 = vsel %vm999, %v974, 0
          %1003 = vmatprep.subr.bf16.mxu0 0
          %1004 = vmatpush1.bf16.msra.mxu0 %v991
          %1005 = vmatprep.subr.bf16.mxu0 0
          %1006 = vmatpush1.bf16.msra.mxu0 %v992
          %1007 = vmatprep.subr.bf16.mxu0 0
          %1008 = vmatpush1.bf16.msra.mxu0 %v993
          %1009 = vmatprep.subr.bf16.mxu0 0
          %1010 = vmatpush1.bf16.msra.mxu0 %v994
          %1011 = vmatprep.subr.bf16.mxu0 0
          %1012 = vmatpush1.bf16.msra.mxu0 0
          %1013 = vmatprep.subr.bf16.mxu0 0
          %1014 = vmatpush1.bf16.msra.mxu0 0
          %1015 = vmatprep.subr.bf16.mxu0 0
          %1016 = vmatpush1.bf16.msra.mxu0 0
          %1017 = vmatprep.subr.bf16.mxu0 0
          %1018 = vmatpush1.bf16.msra.mxu0 0
          %1019 = vmatprep.subr.bf16.mxu0 0
          %1020 = vmatpush1.bf16.msra.mxu0 0
          %1021 = vmatprep.subr.bf16.mxu0 0
          %1022 = vmatpush1.bf16.msra.mxu0 0
          %1023 = vmatprep.subr.bf16.mxu0 0
          %1024 = vmatpush1.bf16.msra.mxu0 0
          %1025 = vmatprep.subr.bf16.mxu0 0
          %1026 = vmatpush1.bf16.msra.mxu0 0
          %1027 = vmatprep.subr.bf16.mxu0 0
          %1028 = vmatpush1.bf16.msra.mxu0 0
          %1029 = vmatprep.subr.bf16.mxu0 0
          %1030 = vmatpush1.bf16.msra.mxu0 0
          %1031 = vmatprep.subr.bf16.mxu0 0
          %1032 = vmatpush1.bf16.msra.mxu0 0
          %1033 = vmatprep.subr.bf16.mxu0 0
          %1034 = vmatpush1.bf16.msra.mxu0 0
          %1035 = vmatprep.mubr.bf16.mxu0 0
          %1036 = vmatmul.mubr.bf16.gmra.mrb[0].mxu0 %v1001
          %v1037 = vpop.f32.mrb[0].mxu0
          %v1038 = vadd.f32 %v968, %v1037
          %v1039 = vpop.f32.mrb[0].mxu0
          %v1040 = vpop.f32.mrb[0].mxu0
          %v1041 = vadd.f32 %v968, %v1040
          %v1042 = vpop.f32.mrb[0].mxu0
          %1043 = vdwg.mxu0
          %v1044 = vld [vmem:[#allocation9] sm:$0xff]
          %v1045 = vld [vmem:[#allocation9 + $0x8] sm:$0xff]
          %v1046 = vadd.f32 %v1038, %v1044
          %v1047 = vadd.f32 %v1041, %v1045
          %1048 = vst [vmem:[#allocation2] sm:$0xff] %v1046
          %1049 = vst [vmem:[#allocation2 + $0x8] sm:$0xff] %v1047
        $region136: #{tpu_custom_call.1} parent=91 // pred_fallthru
          _
        %v1050 = vld [vmem:[#allocation2] sm:$0xff]
        %v1051 = vld [vmem:[#allocation2 + $0x8] sm:$0xff]
        %v1052 = vld [vmem:[%s783] sm:$0x1]
        %v1053 = vld [vmem:[%s791] sm:$0x1]
        %1054 = vadd.xlane.f32.xlu0 %v1050
        %v1055 = vpop.xlane.xlu0 %1054
        %1056 = vadd.xlane.f32.xlu0 %v1051
        %v1057 = vpop.xlane.xlu0 %1056
        %v1058 = vrcp.pop 128.0
        %v1059 = vmul.f32 %v1055, %v1058
        %v1060 = vmul.f32 %v1057, %v1058
        %v1061 = vsub.f32 %v1050, %v1059
        %v1062 = vsub.f32 %v1051, %v1060
        %v1063 = vmul.f32 %v1061, %v1061
        %v1064 = vmul.f32 %v1062, %v1062
        %1065 = vadd.xlane.f32.xlu0 %v1063
        %v1066 = vpop.xlane.xlu0 %1065
        %1067 = vadd.xlane.f32.xlu0 %v1064
        %v1068 = vpop.xlane.xlu0 %1067
        %v1069 = vmul.f32 %v1066, %v1058
        %v1070 = vmul.f32 %v1068, %v1058
        %v1071 = vadd.f32 %v1069, 1e-05
        %v1072 = vadd.f32 %v1070, 1e-05
        %v1073 = vrsqrt.pop %v1071
        %v1074 = vrsqrt.pop %v1072
        %v1075 = vmul.f32 %v1061, %v1073
        %v1076 = vmul.f32 %v1062, %v1074
        %v1078 = vlaneseq
        %v1079 = vshrl.u32 %v1078, 7
        %v1080 = vsub.s32 0, %v1079
        %v1081 = vrot.slane %v1052, %v1080
        %v1083 = vmul.f32 %v1075, %v1081
        %v1084 = vmul.f32 %v1076, %v1081
        %v1086 = vlaneseq
        %v1087 = vshrl.u32 %v1086, 7
        %v1088 = vsub.s32 0, %v1087
        %v1089 = vrot.slane %v1053, %v1088
        %v1091 = vadd.f32 %v1083, %v1089
        %v1092 = vadd.f32 %v1084, %v1089
        %v1093 = vpack.c.bf16 %v1092, %v1091
        %v1094 = vld [vmem:[%s800] sm:$0xff]
        %v1095 = vld [vmem:[%s800 + $0x8] sm:$0xf]
        %v1096 = vld [vmem:[%s800 + $0xc] sm:$0xff]
        %v1097 = vld [vmem:[%s800 + $0x14] sm:$0xf]
        %v1098 = vld [vmem:[%s800 + $0x18] sm:$0xff]
        %v1099 = vld [vmem:[%s800 + $0x20] sm:$0xf]
        %v1100 = vld [vmem:[%s800 + $0x24] sm:$0xff]
        %v1101 = vld [vmem:[%s800 + $0x2c] sm:$0xf]
        %v1102 = vld [vmem:[%s800 + $0x30] sm:$0xff]
        %v1103 = vld [vmem:[%s800 + $0x38] sm:$0xf]
        %v1104 = vld [vmem:[%s800 + $0x3c] sm:$0xff]
        %v1105 = vld [vmem:[%s800 + $0x44] sm:$0xf]
        %v1106 = vld [vmem:[%s800 + $0x48] sm:$0xff]
        %v1107 = vld [vmem:[%s800 + $0x50] sm:$0xf]
        %v1108 = vld [vmem:[%s800 + $0x54] sm:$0xff]
        %v1109 = vld [vmem:[%s800 + $0x5c] sm:$0xf]
        %v1110 = vld [vmem:[%s800 + $0x60] sm:$0xff]
        %v1111 = vld [vmem:[%s800 + $0x68] sm:$0xf]
        %v1112 = vld [vmem:[%s800 + $0x6c] sm:$0xff]
        %v1113 = vld [vmem:[%s800 + $0x74] sm:$0xf]
        %v1114 = vld [vmem:[%s800 + $0x78] sm:$0xff]
        %v1115 = vld [vmem:[%s800 + $0x80] sm:$0xf]
        %v1116 = vld [vmem:[%s800 + $0x84] sm:$0xff]
        %v1117 = vld [vmem:[%s800 + $0x8c] sm:$0xf]
        %v1118 = vld [vmem:[%s800 + $0x90] sm:$0xff]
        %v1119 = vld [vmem:[%s800 + $0x98] sm:$0xf]
        %v1120 = vld [vmem:[%s800 + $0x9c] sm:$0xff]
        %v1121 = vld [vmem:[%s800 + $0xa4] sm:$0xf]
        %v1122 = vld [vmem:[%s800 + $0xa8] sm:$0xff]
        %v1123 = vld [vmem:[%s800 + $0xb0] sm:$0xf]
        %v1124 = vld [vmem:[%s800 + $0xb4] sm:$0xff]
        %v1125 = vld [vmem:[%s800 + $0xbc] sm:$0xf]
        %v1126 = vld [vmem:[%s931] sm:$0x7]
        %v1128 = vlaneseq
        %v1129 = vshrl.u32 %v1128, 7
        %v1130 = vsub.s32 0, %v1129
        %v1131 = vrot.slane %v1126, %v1130
        %v1132 = vlaneseq
        %v1133 = vshrl.u32 %v1132, 7
        %v1134 = vsub.s32 1, %v1133
        %v1135 = vrot.slane %v1126, %v1134
        %v1136 = vlaneseq
        %v1137 = vshrl.u32 %v1136, 7
        %v1138 = vsub.s32 2, %v1137
        %v1139 = vrot.slane %v1126, %v1138
        %v1175 = vunpack.c.l.b16 %v1094
        %v1176 = vunpack.c.h.b16 %v1094
        %v1177 = vunpack.c.l.b16 %v1095
        %v1178 = vunpack.c.l.b16 %v1096
        %v1179 = vunpack.c.h.b16 %v1096
        %v1180 = vunpack.c.l.b16 %v1097
        %v1181 = vunpack.c.l.b16 %v1098
        %v1182 = vunpack.c.h.b16 %v1098
        %v1183 = vunpack.c.l.b16 %v1099
        %v1184 = vunpack.c.l.b16 %v1100
        %v1185 = vunpack.c.h.b16 %v1100
        %v1186 = vunpack.c.l.b16 %v1101
        %v1187 = vunpack.c.l.b16 %v1102
        %v1188 = vunpack.c.h.b16 %v1102
        %v1189 = vunpack.c.l.b16 %v1103
        %v1190 = vunpack.c.l.b16 %v1104
        %v1191 = vunpack.c.h.b16 %v1104
        %v1192 = vunpack.c.l.b16 %v1105
        %v1193 = vunpack.c.l.b16 %v1106
        %v1194 = vunpack.c.h.b16 %v1106
        %v1195 = vunpack.c.l.b16 %v1107
        %v1196 = vunpack.c.l.b16 %v1108
        %v1197 = vunpack.c.h.b16 %v1108
        %v1198 = vunpack.c.l.b16 %v1109
        %v1199 = vunpack.c.l.b16 %v1110
        %v1200 = vunpack.c.h.b16 %v1110
        %v1201 = vunpack.c.l.b16 %v1111
        %v1202 = vunpack.c.l.b16 %v1112
        %v1203 = vunpack.c.h.b16 %v1112
        %v1204 = vunpack.c.l.b16 %v1113
        %v1205 = vunpack.c.l.b16 %v1114
        %v1206 = vunpack.c.h.b16 %v1114
        %v1207 = vunpack.c.l.b16 %v1115
        %v1208 = vunpack.c.l.b16 %v1116
        %v1209 = vunpack.c.h.b16 %v1116
        %v1210 = vunpack.c.l.b16 %v1117
        %v1211 = vunpack.c.l.b16 %v1118
        %v1212 = vunpack.c.h.b16 %v1118
        %v1213 = vunpack.c.l.b16 %v1119
        %v1214 = vunpack.c.l.b16 %v1120
        %v1215 = vunpack.c.h.b16 %v1120
        %v1216 = vunpack.c.l.b16 %v1121
        %v1217 = vunpack.c.l.b16 %v1122
        %v1218 = vunpack.c.h.b16 %v1122
        %v1219 = vunpack.c.l.b16 %v1123
        %v1220 = vunpack.c.l.b16 %v1124
        %v1221 = vunpack.c.h.b16 %v1124
        %v1222 = vunpack.c.l.b16 %v1125
        %v1223 = vpack.c.b16 %v1178, %v1175
        %v1224 = vpack.c.b16 %v1179, %v1176
        %v1225 = vpack.c.b16 %v1180, %v1177
        %v1226 = vpack.c.b16 %v1184, %v1181
        %v1227 = vpack.c.b16 %v1185, %v1182
        %v1228 = vpack.c.b16 %v1186, %v1183
        %v1229 = vpack.c.b16 %v1190, %v1187
        %v1230 = vpack.c.b16 %v1191, %v1188
        %v1231 = vpack.c.b16 %v1192, %v1189
        %v1232 = vpack.c.b16 %v1196, %v1193
        %v1233 = vpack.c.b16 %v1197, %v1194
        %v1234 = vpack.c.b16 %v1198, %v1195
        %v1235 = vpack.c.b16 %v1202, %v1199
        %v1236 = vpack.c.b16 %v1203, %v1200
        %v1237 = vpack.c.b16 %v1204, %v1201
        %v1238 = vpack.c.b16 %v1208, %v1205
        %v1239 = vpack.c.b16 %v1209, %v1206
        %v1240 = vpack.c.b16 %v1210, %v1207
        %v1241 = vpack.c.b16 %v1214, %v1211
        %v1242 = vpack.c.b16 %v1215, %v1212
        %v1243 = vpack.c.b16 %v1216, %v1213
        %v1244 = vpack.c.b16 %v1220, %v1217
        %v1245 = vpack.c.b16 %v1221, %v1218
        %v1246 = vpack.c.b16 %v1222, %v1219
        %1271 = vmatprep.subr.bf16.mxu0 %v1224
        %1272 = vmatpush1.bf16.msra.mxu0 %v1223
        %1273 = vmatprep.subr.bf16.mxu0 %v1227
        %1274 = vmatpush1.bf16.msra.mxu0 %v1226
        %1275 = vmatprep.subr.bf16.mxu0 %v1230
        %1276 = vmatpush1.bf16.msra.mxu0 %v1229
        %1277 = vmatprep.subr.bf16.mxu0 %v1233
        %1278 = vmatpush1.bf16.msra.mxu0 %v1232
        %1279 = vmatprep.subr.bf16.mxu0 %v1236
        %1280 = vmatpush1.bf16.msra.mxu0 %v1235
        %1281 = vmatprep.subr.bf16.mxu0 %v1239
        %1282 = vmatpush1.bf16.msra.mxu0 %v1238
        %1283 = vmatprep.subr.bf16.mxu0 %v1242
        %1284 = vmatpush1.bf16.msra.mxu0 %v1241
        %1285 = vmatprep.subr.bf16.mxu0 %v1245
        %1286 = vmatpush1.bf16.msra.mxu0 %v1244
        %1287 = vmatprep.subr.bf16.mxu0 0
        %1288 = vmatpush1.bf16.msra.mxu0 0
        %1289 = vmatprep.subr.bf16.mxu0 0
        %1290 = vmatpush1.bf16.msra.mxu0 0
        %1291 = vmatprep.subr.bf16.mxu0 0
        %1292 = vmatpush1.bf16.msra.mxu0 0
        %1293 = vmatprep.subr.bf16.mxu0 0
        %1294 = vmatpush1.bf16.msra.mxu0 0
        %1295 = vmatprep.subr.bf16.mxu0 0
        %1296 = vmatpush1.bf16.msra.mxu0 0
        %1297 = vmatprep.subr.bf16.mxu0 0
        %1298 = vmatpush1.bf16.msra.mxu0 0
        %1299 = vmatprep.subr.bf16.mxu0 0
        %1300 = vmatpush1.bf16.msra.mxu0 0
        %1301 = vmatprep.subr.bf16.mxu0 0
        %1302 = vmatpush1.bf16.msra.mxu0 0
        %1303 = vmatprep.mubr.bf16.mxu0 0
        %1304 = vmatmul.mubr.bf16.gmra.mrb[0].mxu0 %v1093
        %v1305 = vpop.f32.mrb[0].mxu0
        %v1306 = vadd.f32 %v1131, %v1305
        %v1307 = vpop.f32.mrb[0].mxu0
        %v1308 = vadd.f32 %v1135, %v1307
        %v1309 = vpop.f32.mrb[0].mxu0
        %v1310 = vadd.f32 %v1131, %v1309
        %v1311 = vpop.f32.mrb[0].mxu0
        %v1312 = vadd.f32 %v1135, %v1311
        %1313 = vdwg.mxu0
        %1314 = vmatprep.subr.bf16.mxu0 0
        %1315 = vmatpush1.bf16.msra.mxu0 %v1225
        %1316 = vmatprep.subr.bf16.mxu0 0
        %1317 = vmatpush1.bf16.msra.mxu0 %v1228
        %1318 = vmatprep.subr.bf16.mxu0 0
        %1319 = vmatpush1.bf16.msra.mxu0 %v1231
        %1320 = vmatprep.subr.bf16.mxu0 0
        %1321 = vmatpush1.bf16.msra.mxu0 %v1234
        %1322 = vmatprep.subr.bf16.mxu0 0
        %1323 = vmatpush1.bf16.msra.mxu0 %v1237
        %1324 = vmatprep.subr.bf16.mxu0 0
        %1325 = vmatpush1.bf16.msra.mxu0 %v1240
        %1326 = vmatprep.subr.bf16.mxu0 0
        %1327 = vmatpush1.bf16.msra.mxu0 %v1243
        %1328 = vmatprep.subr.bf16.mxu0 0
        %1329 = vmatpush1.bf16.msra.mxu0 %v1246
        %1330 = vmatprep.subr.bf16.mxu0 0
        %1331 = vmatpush1.bf16.msra.mxu0 0
        %1332 = vmatprep.subr.bf16.mxu0 0
        %1333 = vmatpush1.bf16.msra.mxu0 0
        %1334 = vmatprep.subr.bf16.mxu0 0
        %1335 = vmatpush1.bf16.msra.mxu0 0
        %1336 = vmatprep.subr.bf16.mxu0 0
        %1337 = vmatpush1.bf16.msra.mxu0 0
        %1338 = vmatprep.subr.bf16.mxu0 0
        %1339 = vmatpush1.bf16.msra.mxu0 0
        %1340 = vmatprep.subr.bf16.mxu0 0
        %1341 = vmatpush1.bf16.msra.mxu0 0
        %1342 = vmatprep.subr.bf16.mxu0 0
        %1343 = vmatpush1.bf16.msra.mxu0 0
        %1344 = vmatprep.subr.bf16.mxu0 0
        %1345 = vmatpush1.bf16.msra.mxu0 0
        %1346 = vmatprep.mubr.bf16.mxu0 0
        %1347 = vmatmul.mubr.bf16.gmra.mrb[0].mxu0 %v1093
        %v1348 = vpop.f32.mrb[0].mxu0
        %v1349 = vadd.f32 %v1139, %v1348
        %v1350 = vpop.f32.mrb[0].mxu0
        %v1351 = vpop.f32.mrb[0].mxu0
        %v1352 = vadd.f32 %v1139, %v1351
        %v1353 = vpop.f32.mrb[0].mxu0
        %1354 = vdwg.mxu0
        %v1355 = vld [vmem:[%s809] sm:$0xf]
        %v1356 = vld [vmem:[%s809 + $0x4] sm:$0xf]
        %v1357 = vld [vmem:[%s809 + $0x8] sm:$0xf]
        %v1358 = vld [vmem:[%s809 + $0xc] sm:$0xf]
        %v1359 = vld [vmem:[%s809 + $0x10] sm:$0xf]
        %v1360 = vld [vmem:[%s809 + $0x14] sm:$0xf]
        %v1361 = vld [vmem:[%s809 + $0x18] sm:$0xf]
        %v1362 = vld [vmem:[%s809 + $0x1c] sm:$0xf]
        %v1363 = vld [vmem:[%s809 + $0x20] sm:$0xf]
        %v1364 = vld [vmem:[%s809 + $0x24] sm:$0xf]
        %v1365 = vld [vmem:[%s809 + $0x28] sm:$0xf]
        %v1366 = vld [vmem:[%s809 + $0x2c] sm:$0xf]
        %v1367 = vld [vmem:[%s809 + $0x30] sm:$0xf]
        %v1368 = vld [vmem:[%s809 + $0x34] sm:$0xf]
        %v1369 = vld [vmem:[%s809 + $0x38] sm:$0xf]
        %v1370 = vld [vmem:[%s809 + $0x3c] sm:$0xf]
        %v1371 = vpack.c.bf16 %v1310, %v1306
        %v1372 = vpack.c.bf16 %v1312, %v1308
        %v1373 = vpack.c.bf16 %v1352, %v1349
        %vm1374 = vcmask 261120
        %v1376 = vsel %vm1374, %v1371, 0
        %v1379 = vsel %vm1374, %v1372, 0
        %1381 = vmatprep.subr.bf16.mxu0 0
        %1382 = vmatpush1.bf16.xpose.msra.mxu0 %v1379
        %1383 = vmatprep.subr.bf16.mxu0 0
        %1384 = vmatpush1.bf16.xpose.msra.mxu0 0
        %1385 = vmatprep.subr.bf16.mxu0 0
        %1386 = vmatpush1.bf16.xpose.msra.mxu0 0
        %1387 = vmatprep.subr.bf16.mxu0 0
        %1388 = vmatpush1.bf16.xpose.msra.mxu0 0
        %1389 = vmatprep.subr.bf16.mxu0 0
        %1390 = vmatpush1.bf16.xpose.msra.mxu0 0
        %1391 = vmatprep.subr.bf16.mxu0 0
        %1392 = vmatpush1.bf16.xpose.msra.mxu0 0
        %1393 = vmatprep.subr.bf16.mxu0 0
        %1394 = vmatpush1.bf16.xpose.msra.mxu0 0
        %1395 = vmatprep.subr.bf16.mxu0 0
        %1396 = vmatpush1.bf16.xpose.msra.mxu0 0
        %1397 = vmatprep.subr.bf16.mxu0 0
        %1398 = vmatpush1.bf16.xpose.msra.mxu0 0
        %1399 = vmatprep.subr.bf16.mxu0 0
        %1400 = vmatpush1.bf16.xpose.msra.mxu0 0
        %1401 = vmatprep.subr.bf16.mxu0 0
        %1402 = vmatpush1.bf16.xpose.msra.mxu0 0
        %1403 = vmatprep.subr.bf16.mxu0 0
        %1404 = vmatpush1.bf16.xpose.msra.mxu0 0
        %1405 = vmatprep.subr.bf16.mxu0 0
        %1406 = vmatpush1.bf16.xpose.msra.mxu0 0
        %1407 = vmatprep.subr.bf16.mxu0 0
        %1408 = vmatpush1.bf16.xpose.msra.mxu0 0
        %1409 = vmatprep.subr.bf16.mxu0 0
        %1410 = vmatpush1.bf16.xpose.msra.mxu0 0
        %1411 = vmatprep.subr.bf16.mxu0 0
        %1412 = vmatpush1.bf16.xpose.msra.mxu0 0
        %1413 = vmatprep.mubr.bf16.mxu0 0
        %1414 = vmatmul.mubr.bf16.gmra.mrb[0].mxu0 %v1376
        %v1415 = vpop.f32.mrb[0].mxu0
        %v1416 = vadd.f32 0.0, %v1415
        %v1417 = vpop.f32.mrb[0].mxu0
        %v1418 = vpop.f32.mrb[0].mxu0
        %v1419 = vadd.f32 0.0, %v1418
        %v1420 = vpop.f32.mrb[0].mxu0
        %1421 = vdwg.mxu0
        %v1422 = vmul.f32 %v1416, 0.17677669
        %v1423 = vmul.f32 %v1419, 0.17677669
        %vm1424 = vcmask 130048
        %v1425 = vsel %vm1424, %v1422, -inf
        %1426 = vmax.xlane.f32.xlu0 %v1425
        %v1427 = vpop.xlane.xlu0 %1426
        %v1428 = vsel %vm1424, %v1423, -inf
        %1429 = vmax.xlane.f32.xlu0 %v1428
        %v1430 = vpop.xlane.xlu0 %1429
        %v1431 = vsub.f32 %v1422, %v1427
        %v1432 = vsub.f32 %v1423, %v1430
        %v1433 = vmul.f32 %v1431, 1.442695
        %v1434 = vpow.pop %v1433
        %v1435 = vmul.f32 %v1432, 1.442695
        %v1436 = vpow.pop %v1435
        %v1437 = vsel %vm1424, %v1434, 0.0
        %1438 = vadd.xlane.f32.xlu0 %v1437
        %v1439 = vpop.xlane.xlu0 %1438
        %v1440 = vsel %vm1424, %v1436, 0.0
        %1441 = vadd.xlane.f32.xlu0 %v1440
        %v1442 = vpop.xlane.xlu0 %1441
        %v1443 = vrcp.pop %v1439
        %v1444 = vrcp.pop %v1442
        %v1445 = vmul.f32 %v1434, %v1443
        %v1446 = vmul.f32 %v1436, %v1444
        %v1447 = vpack.c.bf16 %v1446, %v1445
        %v1449 = vsel %vm1424, %v1447, 0
        %1451 = vmatprep.subr.bf16.mxu0 0
        %1452 = vmatpush1.bf16.msra.mxu0 %v1373
        %1453 = vmatprep.subr.bf16.mxu0 0
        %1454 = vmatpush1.bf16.msra.mxu0 0
        %1455 = vmatprep.subr.bf16.mxu0 0
        %1456 = vmatpush1.bf16.msra.mxu0 0
        %1457 = vmatprep.subr.bf16.mxu0 0
        %1458 = vmatpush1.bf16.msra.mxu0 0
        %1459 = vmatprep.subr.bf16.mxu0 0
        %1460 = vmatpush1.bf16.msra.mxu0 0
        %1461 = vmatprep.subr.bf16.mxu0 0
        %1462 = vmatpush1.bf16.msra.mxu0 0
        %1463 = vmatprep.subr.bf16.mxu0 0
        %1464 = vmatpush1.bf16.msra.mxu0 0
        %1465 = vmatprep.subr.bf16.mxu0 0
        %1466 = vmatpush1.bf16.msra.mxu0 0
        %1467 = vmatprep.subr.bf16.mxu0 0
        %1468 = vmatpush1.bf16.msra.mxu0 0
        %1469 = vmatprep.subr.bf16.mxu0 0
        %1470 = vmatpush1.bf16.msra.mxu0 0
        %1471 = vmatprep.subr.bf16.mxu0 0
        %1472 = vmatpush1.bf16.msra.mxu0 0
        %1473 = vmatprep.subr.bf16.mxu0 0
        %1474 = vmatpush1.bf16.msra.mxu0 0
        %1475 = vmatprep.subr.bf16.mxu0 0
        %1476 = vmatpush1.bf16.msra.mxu0 0
        %1477 = vmatprep.subr.bf16.mxu0 0
        %1478 = vmatpush1.bf16.msra.mxu0 0
        %1479 = vmatprep.subr.bf16.mxu0 0
        %1480 = vmatpush1.bf16.msra.mxu0 0
        %1481 = vmatprep.subr.bf16.mxu0 0
        %1482 = vmatpush1.bf16.msra.mxu0 0
        %1483 = vmatprep.mubr.bf16.mxu0 0
        %1484 = vmatmul.mubr.bf16.gmra.mrb[0].mxu0 %v1449
        %v1485 = vpop.f32.mrb[0].mxu0
        %v1486 = vadd.f32 0.0, %v1485
        %v1487 = vpop.f32.mrb[0].mxu0
        %v1488 = vpop.f32.mrb[0].mxu0
        %v1489 = vadd.f32 0.0, %v1488
        %v1490 = vpop.f32.mrb[0].mxu0
        %1491 = vdwg.mxu0
        %v1492 = vpack.c.bf16 %v1489, %v1486
        %1494 = vrot.lane.b32.xlu0 %v1371, 96
        %v1495 = vpop.permute.xlu0 %1494
        %1497 = vrot.lane.b32.xlu0 %v1372, 96
        %v1498 = vpop.permute.xlu0 %1497
        %v1500 = vsel %vm1374, %v1495, 0
        %v1503 = vsel %vm1374, %v1498, 0
        %1505 = vmatprep.subr.bf16.mxu0 0
        %1506 = vmatpush1.bf16.xpose.msra.mxu0 %v1503
        %1507 = vmatprep.subr.bf16.mxu0 0
        %1508 = vmatpush1.bf16.xpose.msra.mxu0 0
        %1509 = vmatprep.subr.bf16.mxu0 0
        %1510 = vmatpush1.bf16.xpose.msra.mxu0 0
        %1511 = vmatprep.subr.bf16.mxu0 0
        %1512 = vmatpush1.bf16.xpose.msra.mxu0 0
        %1513 = vmatprep.subr.bf16.mxu0 0
        %1514 = vmatpush1.bf16.xpose.msra.mxu0 0
        %1515 = vmatprep.subr.bf16.mxu0 0
        %1516 = vmatpush1.bf16.xpose.msra.mxu0 0
        %1517 = vmatprep.subr.bf16.mxu0 0
        %1518 = vmatpush1.bf16.xpose.msra.mxu0 0
        %1519 = vmatprep.subr.bf16.mxu0 0
        %1520 = vmatpush1.bf16.xpose.msra.mxu0 0
        %1521 = vmatprep.subr.bf16.mxu0 0
        %1522 = vmatpush1.bf16.xpose.msra.mxu0 0
        %1523 = vmatprep.subr.bf16.mxu0 0
        %1524 = vmatpush1.bf16.xpose.msra.mxu0 0
        %1525 = vmatprep.subr.bf16.mxu0 0
        %1526 = vmatpush1.bf16.xpose.msra.mxu0 0
        %1527 = vmatprep.subr.bf16.mxu0 0
        %1528 = vmatpush1.bf16.xpose.msra.mxu0 0
        %1529 = vmatprep.subr.bf16.mxu0 0
        %1530 = vmatpush1.bf16.xpose.msra.mxu0 0
        %1531 = vmatprep.subr.bf16.mxu0 0
        %1532 = vmatpush1.bf16.xpose.msra.mxu0 0
        %1533 = vmatprep.subr.bf16.mxu0 0
        %1534 = vmatpush1.bf16.xpose.msra.mxu0 0
        %1535 = vmatprep.subr.bf16.mxu0 0
        %1536 = vmatpush1.bf16.xpose.msra.mxu0 0
        %1537 = vmatprep.mubr.bf16.mxu0 0
        %1538 = vmatmul.mubr.bf16.gmra.mrb[0].mxu0 %v1500
        %v1539 = vpop.f32.mrb[0].mxu0
        %v1540 = vadd.f32 0.0, %v1539
        %v1541 = vpop.f32.mrb[0].mxu0
        %v1542 = vpop.f32.mrb[0].mxu0
        %v1543 = vadd.f32 0.0, %v1542
        %v1544 = vpop.f32.mrb[0].mxu0
        %1545 = vdwg.mxu0
        %v1546 = vmul.f32 %v1540, 0.17677669
        %v1547 = vmul.f32 %v1543, 0.17677669
        %v1548 = vsel %vm1424, %v1546, -inf
        %1549 = vmax.xlane.f32.xlu0 %v1548
        %v1550 = vpop.xlane.xlu0 %1549
        %v1551 = vsel %vm1424, %v1547, -inf
        %1552 = vmax.xlane.f32.xlu0 %v1551
        %v1553 = vpop.xlane.xlu0 %1552
        %v1554 = vsub.f32 %v1546, %v1550
        %v1555 = vsub.f32 %v1547, %v1553
        %v1556 = vmul.f32 %v1554, 1.442695
        %v1557 = vpow.pop %v1556
        %v1558 = vmul.f32 %v1555, 1.442695
        %v1559 = vpow.pop %v1558
        %v1560 = vsel %vm1424, %v1557, 0.0
        %1561 = vadd.xlane.f32.xlu0 %v1560
        %v1562 = vpop.xlane.xlu0 %1561
        %v1563 = vsel %vm1424, %v1559, 0.0
        %1564 = vadd.xlane.f32.xlu0 %v1563
        %v1565 = vpop.xlane.xlu0 %1564
        %v1566 = vrcp.pop %v1562
        %v1567 = vrcp.pop %v1565
        %v1568 = vmul.f32 %v1557, %v1566
        %v1569 = vmul.f32 %v1559, %v1567
        %v1570 = vpack.c.bf16 %v1569, %v1568
        %1572 = vrot.lane.b32.xlu0 %v1373, 96
        %v1573 = vpop.permute.xlu0 %1572
        %v1576 = vsel %vm1424, %v1570, 0
        %1578 = vmatprep.subr.bf16.mxu0 0
        %1579 = vmatpush1.bf16.msra.mxu0 %v1573
        %1580 = vmatprep.subr.bf16.mxu0 0
        %1581 = vmatpush1.bf16.msra.mxu0 0
        %1582 = vmatprep.subr.bf16.mxu0 0
        %1583 = vmatpush1.bf16.msra.mxu0 0
        %1584 = vmatprep.subr.bf16.mxu0 0
        %1585 = vmatpush1.bf16.msra.mxu0 0
        %1586 = vmatprep.subr.bf16.mxu0 0
        %1587 = vmatpush1.bf16.msra.mxu0 0
        %1588 = vmatprep.subr.bf16.mxu0 0
        %1589 = vmatpush1.bf16.msra.mxu0 0
        %1590 = vmatprep.subr.bf16.mxu0 0
        %1591 = vmatpush1.bf16.msra.mxu0 0
        %1592 = vmatprep.subr.bf16.mxu0 0
        %1593 = vmatpush1.bf16.msra.mxu0 0
        %1594 = vmatprep.subr.bf16.mxu0 0
        %1595 = vmatpush1.bf16.msra.mxu0 0
        %1596 = vmatprep.subr.bf16.mxu0 0
        %1597 = vmatpush1.bf16.msra.mxu0 0
        %1598 = vmatprep.subr.bf16.mxu0 0
        %1599 = vmatpush1.bf16.msra.mxu0 0
        %1600 = vmatprep.subr.bf16.mxu0 0
        %1601 = vmatpush1.bf16.msra.mxu0 0
        %1602 = vmatprep.subr.bf16.mxu0 0
        %1603 = vmatpush1.bf16.msra.mxu0 0
        %1604 = vmatprep.subr.bf16.mxu0 0
        %1605 = vmatpush1.bf16.msra.mxu0 0
        %1606 = vmatprep.subr.bf16.mxu0 0
        %1607 = vmatpush1.bf16.msra.mxu0 0
        %1608 = vmatprep.subr.bf16.mxu0 0
        %1609 = vmatpush1.bf16.msra.mxu0 0
        %1610 = vmatprep.mubr.bf16.mxu0 0
        %1611 = vmatmul.mubr.bf16.gmra.mrb[0].mxu0 %v1576
        %v1612 = vpop.f32.mrb[0].mxu0
        %v1613 = vadd.f32 0.0, %v1612
        %v1614 = vpop.f32.mrb[0].mxu0
        %v1615 = vpop.f32.mrb[0].mxu0
        %v1616 = vadd.f32 0.0, %v1615
        %v1617 = vpop.f32.mrb[0].mxu0
        %1618 = vdwg.mxu0
        %v1619 = vpack.c.bf16 %v1616, %v1613
        %v1624 = vunpack.c.l.b16 %v1359
        %v1625 = vunpack.c.l.b16 %v1360
        %v1626 = vunpack.c.l.b16 %v1361
        %v1627 = vunpack.c.l.b16 %v1362
        %v1628 = vpack.c.b16 %v1625, %v1624
        %v1629 = vpack.c.b16 %v1627, %v1626
        %v1633 = vsel %vm1374, %v1619, 0
        %1635 = vmatprep.subr.bf16.mxu0 0
        %1636 = vmatpush1.bf16.msra.mxu0 %v1628
        %1637 = vmatprep.subr.bf16.mxu0 0
        %1638 = vmatpush1.bf16.msra.mxu0 %v1629
        %1639 = vmatprep.subr.bf16.mxu0 0
        %1640 = vmatpush1.bf16.msra.mxu0 0
        %1641 = vmatprep.subr.bf16.mxu0 0
        %1642 = vmatpush1.bf16.msra.mxu0 0
        %1643 = vmatprep.subr.bf16.mxu0 0
        %1644 = vmatpush1.bf16.msra.mxu0 0
        %1645 = vmatprep.subr.bf16.mxu0 0
        %1646 = vmatpush1.bf16.msra.mxu0 0
        %1647 = vmatprep.subr.bf16.mxu0 0
        %1648 = vmatpush1.bf16.msra.mxu0 0
        %1649 = vmatprep.subr.bf16.mxu0 0
        %1650 = vmatpush1.bf16.msra.mxu0 0
        %1651 = vmatprep.subr.bf16.mxu0 0
        %1652 = vmatpush1.bf16.msra.mxu0 0
        %1653 = vmatprep.subr.bf16.mxu0 0
        %1654 = vmatpush1.bf16.msra.mxu0 0
        %1655 = vmatprep.subr.bf16.mxu0 0
        %1656 = vmatpush1.bf16.msra.mxu0 0
        %1657 = vmatprep.subr.bf16.mxu0 0
        %1658 = vmatpush1.bf16.msra.mxu0 0
        %1659 = vmatprep.subr.bf16.mxu0 0
        %1660 = vmatpush1.bf16.msra.mxu0 0
        %1661 = vmatprep.subr.bf16.mxu0 0
        %1662 = vmatpush1.bf16.msra.mxu0 0
        %1663 = vmatprep.subr.bf16.mxu0 0
        %1664 = vmatpush1.bf16.msra.mxu0 0
        %1665 = vmatprep.subr.bf16.mxu0 0
        %1666 = vmatpush1.bf16.msra.mxu0 0
        %1667 = vmatprep.mubr.bf16.mxu0 0
        %1668 = vmatmul.mubr.bf16.gmra.mrb[0].mxu0 %v1633
        %v1669 = vpop.f32.mrb[0].mxu0
        %v1670 = vadd.f32 0.0, %v1669
        %v1671 = vpop.f32.mrb[0].mxu0
        %v1672 = vpop.f32.mrb[0].mxu0
        %v1673 = vadd.f32 0.0, %v1672
        %v1674 = vpop.f32.mrb[0].mxu0
        %1675 = vdwg.mxu0
        %v1680 = vunpack.c.l.b16 %v1355
        %v1681 = vunpack.c.l.b16 %v1356
        %v1682 = vunpack.c.l.b16 %v1357
        %v1683 = vunpack.c.l.b16 %v1358
        %v1684 = vpack.c.b16 %v1681, %v1680
        %v1685 = vpack.c.b16 %v1683, %v1682
        %v1689 = vsel %vm1374, %v1492, 0
        %1691 = vmatprep.subr.bf16.mxu0 0
        %1692 = vmatpush1.bf16.msra.mxu0 %v1684
        %1693 = vmatprep.subr.bf16.mxu0 0
        %1694 = vmatpush1.bf16.msra.mxu0 %v1685
        %1695 = vmatprep.subr.bf16.mxu0 0
        %1696 = vmatpush1.bf16.msra.mxu0 0
        %1697 = vmatprep.subr.bf16.mxu0 0
        %1698 = vmatpush1.bf16.msra.mxu0 0
        %1699 = vmatprep.subr.bf16.mxu0 0
        %1700 = vmatpush1.bf16.msra.mxu0 0
        %1701 = vmatprep.subr.bf16.mxu0 0
        %1702 = vmatpush1.bf16.msra.mxu0 0
        %1703 = vmatprep.subr.bf16.mxu0 0
        %1704 = vmatpush1.bf16.msra.mxu0 0
        %1705 = vmatprep.subr.bf16.mxu0 0
        %1706 = vmatpush1.bf16.msra.mxu0 0
        %1707 = vmatprep.subr.bf16.mxu0 0
        %1708 = vmatpush1.bf16.msra.mxu0 0
        %1709 = vmatprep.subr.bf16.mxu0 0
        %1710 = vmatpush1.bf16.msra.mxu0 0
        %1711 = vmatprep.subr.bf16.mxu0 0
        %1712 = vmatpush1.bf16.msra.mxu0 0
        %1713 = vmatprep.subr.bf16.mxu0 0
        %1714 = vmatpush1.bf16.msra.mxu0 0
        %1715 = vmatprep.subr.bf16.mxu0 0
        %1716 = vmatpush1.bf16.msra.mxu0 0
        %1717 = vmatprep.subr.bf16.mxu0 0
        %1718 = vmatpush1.bf16.msra.mxu0 0
        %1719 = vmatprep.subr.bf16.mxu0 0
        %1720 = vmatpush1.bf16.msra.mxu0 0
        %1721 = vmatprep.subr.bf16.mxu0 0
        %1722 = vmatpush1.bf16.msra.mxu0 0
        %1723 = vmatprep.mubr.bf16.mxu0 0
        %1724 = vmatmul.mubr.bf16.gmra.mrb[0].mxu0 %v1689
        %v1725 = vpop.f32.mrb[0].mxu0
        %v1726 = vadd.f32 %v1670, %v1725
        %v1727 = vpop.f32.mrb[0].mxu0
        %v1728 = vpop.f32.mrb[0].mxu0
        %v1729 = vadd.f32 %v1673, %v1728
        %v1730 = vpop.f32.mrb[0].mxu0
        %1731 = vdwg.mxu0
        %1732 = vrot.lane.b32.xlu0 %v1371, 64
        %v1733 = vpop.permute.xlu0 %1732
        %1734 = vrot.lane.b32.xlu0 %v1372, 64
        %v1735 = vpop.permute.xlu0 %1734
        %v1737 = vsel %vm1374, %v1733, 0
        %v1740 = vsel %vm1374, %v1735, 0
        %1742 = vmatprep.subr.bf16.mxu0 0
        %1743 = vmatpush1.bf16.xpose.msra.mxu0 %v1740
        %1744 = vmatprep.subr.bf16.mxu0 0
        %1745 = vmatpush1.bf16.xpose.msra.mxu0 0
        %1746 = vmatprep.subr.bf16.mxu0 0
        %1747 = vmatpush1.bf16.xpose.msra.mxu0 0
        %1748 = vmatprep.subr.bf16.mxu0 0
        %1749 = vmatpush1.bf16.xpose.msra.mxu0 0
        %1750 = vmatprep.subr.bf16.mxu0 0
        %1751 = vmatpush1.bf16.xpose.msra.mxu0 0
        %1752 = vmatprep.subr.bf16.mxu0 0
        %1753 = vmatpush1.bf16.xpose.msra.mxu0 0
        %1754 = vmatprep.subr.bf16.mxu0 0
        %1755 = vmatpush1.bf16.xpose.msra.mxu0 0
        %1756 = vmatprep.subr.bf16.mxu0 0
        %1757 = vmatpush1.bf16.xpose.msra.mxu0 0
        %1758 = vmatprep.subr.bf16.mxu0 0
        %1759 = vmatpush1.bf16.xpose.msra.mxu0 0
        %1760 = vmatprep.subr.bf16.mxu0 0
        %1761 = vmatpush1.bf16.xpose.msra.mxu0 0
        %1762 = vmatprep.subr.bf16.mxu0 0
        %1763 = vmatpush1.bf16.xpose.msra.mxu0 0
        %1764 = vmatprep.subr.bf16.mxu0 0
        %1765 = vmatpush1.bf16.xpose.msra.mxu0 0
        %1766 = vmatprep.subr.bf16.mxu0 0
        %1767 = vmatpush1.bf16.xpose.msra.mxu0 0
        %1768 = vmatprep.subr.bf16.mxu0 0
        %1769 = vmatpush1.bf16.xpose.msra.mxu0 0
        %1770 = vmatprep.subr.bf16.mxu0 0
        %1771 = vmatpush1.bf16.xpose.msra.mxu0 0
        %1772 = vmatprep.subr.bf16.mxu0 0
        %1773 = vmatpush1.bf16.xpose.msra.mxu0 0
        %1774 = vmatprep.mubr.bf16.mxu0 0
        %1775 = vmatmul.mubr.bf16.gmra.mrb[0].mxu0 %v1737
        %v1776 = vpop.f32.mrb[0].mxu0
        %v1777 = vadd.f32 0.0, %v1776
        %v1778 = vpop.f32.mrb[0].mxu0
        %v1779 = vpop.f32.mrb[0].mxu0
        %v1780 = vadd.f32 0.0, %v1779
        %v1781 = vpop.f32.mrb[0].mxu0
        %1782 = vdwg.mxu0
        %v1783 = vmul.f32 %v1777, 0.17677669
        %v1784 = vmul.f32 %v1780, 0.17677669
        %v1785 = vsel %vm1424, %v1783, -inf
        %1786 = vmax.xlane.f32.xlu0 %v1785
        %v1787 = vpop.xlane.xlu0 %1786
        %v1788 = vsel %vm1424, %v1784, -inf
        %1789 = vmax.xlane.f32.xlu0 %v1788
        %v1790 = vpop.xlane.xlu0 %1789
        %v1791 = vsub.f32 %v1783, %v1787
        %v1792 = vsub.f32 %v1784, %v1790
        %v1793 = vmul.f32 %v1791, 1.442695
        %v1794 = vpow.pop %v1793
        %v1795 = vmul.f32 %v1792, 1.442695
        %v1796 = vpow.pop %v1795
        %v1797 = vsel %vm1424, %v1794, 0.0
        %1798 = vadd.xlane.f32.xlu0 %v1797
        %v1799 = vpop.xlane.xlu0 %1798
        %v1800 = vsel %vm1424, %v1796, 0.0
        %1801 = vadd.xlane.f32.xlu0 %v1800
        %v1802 = vpop.xlane.xlu0 %1801
        %v1803 = vrcp.pop %v1799
        %v1804 = vrcp.pop %v1802
        %v1805 = vmul.f32 %v1794, %v1803
        %v1806 = vmul.f32 %v1796, %v1804
        %v1807 = vpack.c.bf16 %v1806, %v1805
        %1808 = vrot.lane.b32.xlu0 %v1373, 64
        %v1809 = vpop.permute.xlu0 %1808
        %v1812 = vsel %vm1424, %v1807, 0
        %1814 = vmatprep.subr.bf16.mxu0 0
        %1815 = vmatpush1.bf16.msra.mxu0 %v1809
        %1816 = vmatprep.subr.bf16.mxu0 0
        %1817 = vmatpush1.bf16.msra.mxu0 0
        %1818 = vmatprep.subr.bf16.mxu0 0
        %1819 = vmatpush1.bf16.msra.mxu0 0
        %1820 = vmatprep.subr.bf16.mxu0 0
        %1821 = vmatpush1.bf16.msra.mxu0 0
        %1822 = vmatprep.subr.bf16.mxu0 0
        %1823 = vmatpush1.bf16.msra.mxu0 0
        %1824 = vmatprep.subr.bf16.mxu0 0
        %1825 = vmatpush1.bf16.msra.mxu0 0
        %1826 = vmatprep.subr.bf16.mxu0 0
        %1827 = vmatpush1.bf16.msra.mxu0 0
        %1828 = vmatprep.subr.bf16.mxu0 0
        %1829 = vmatpush1.bf16.msra.mxu0 0
        %1830 = vmatprep.subr.bf16.mxu0 0
        %1831 = vmatpush1.bf16.msra.mxu0 0
        %1832 = vmatprep.subr.bf16.mxu0 0
        %1833 = vmatpush1.bf16.msra.mxu0 0
        %1834 = vmatprep.subr.bf16.mxu0 0
        %1835 = vmatpush1.bf16.msra.mxu0 0
        %1836 = vmatprep.subr.bf16.mxu0 0
        %1837 = vmatpush1.bf16.msra.mxu0 0
        %1838 = vmatprep.subr.bf16.mxu0 0
        %1839 = vmatpush1.bf16.msra.mxu0 0
        %1840 = vmatprep.subr.bf16.mxu0 0
        %1841 = vmatpush1.bf16.msra.mxu0 0
        %1842 = vmatprep.subr.bf16.mxu0 0
        %1843 = vmatpush1.bf16.msra.mxu0 0
        %1844 = vmatprep.subr.bf16.mxu0 0
        %1845 = vmatpush1.bf16.msra.mxu0 0
        %1846 = vmatprep.mubr.bf16.mxu0 0
        %1847 = vmatmul.mubr.bf16.gmra.mrb[0].mxu0 %v1812
        %v1848 = vpop.f32.mrb[0].mxu0
        %v1849 = vadd.f32 0.0, %v1848
        %v1850 = vpop.f32.mrb[0].mxu0
        %v1851 = vpop.f32.mrb[0].mxu0
        %v1852 = vadd.f32 0.0, %v1851
        %v1853 = vpop.f32.mrb[0].mxu0
        %1854 = vdwg.mxu0
        %v1855 = vpack.c.bf16 %v1852, %v1849
        %v1860 = vunpack.c.l.b16 %v1363
        %v1861 = vunpack.c.l.b16 %v1364
        %v1862 = vunpack.c.l.b16 %v1365
        %v1863 = vunpack.c.l.b16 %v1366
        %v1864 = vpack.c.b16 %v1861, %v1860
        %v1865 = vpack.c.b16 %v1863, %v1862
        %v1869 = vsel %vm1374, %v1855, 0
        %1871 = vmatprep.subr.bf16.mxu0 0
        %1872 = vmatpush1.bf16.msra.mxu0 %v1864
        %1873 = vmatprep.subr.bf16.mxu0 0
        %1874 = vmatpush1.bf16.msra.mxu0 %v1865
        %1875 = vmatprep.subr.bf16.mxu0 0
        %1876 = vmatpush1.bf16.msra.mxu0 0
        %1877 = vmatprep.subr.bf16.mxu0 0
        %1878 = vmatpush1.bf16.msra.mxu0 0
        %1879 = vmatprep.subr.bf16.mxu0 0
        %1880 = vmatpush1.bf16.msra.mxu0 0
        %1881 = vmatprep.subr.bf16.mxu0 0
        %1882 = vmatpush1.bf16.msra.mxu0 0
        %1883 = vmatprep.subr.bf16.mxu0 0
        %1884 = vmatpush1.bf16.msra.mxu0 0
        %1885 = vmatprep.subr.bf16.mxu0 0
        %1886 = vmatpush1.bf16.msra.mxu0 0
        %1887 = vmatprep.subr.bf16.mxu0 0
        %1888 = vmatpush1.bf16.msra.mxu0 0
        %1889 = vmatprep.subr.bf16.mxu0 0
        %1890 = vmatpush1.bf16.msra.mxu0 0
        %1891 = vmatprep.subr.bf16.mxu0 0
        %1892 = vmatpush1.bf16.msra.mxu0 0
        %1893 = vmatprep.subr.bf16.mxu0 0
        %1894 = vmatpush1.bf16.msra.mxu0 0
        %1895 = vmatprep.subr.bf16.mxu0 0
        %1896 = vmatpush1.bf16.msra.mxu0 0
        %1897 = vmatprep.subr.bf16.mxu0 0
        %1898 = vmatpush1.bf16.msra.mxu0 0
        %1899 = vmatprep.subr.bf16.mxu0 0
        %1900 = vmatpush1.bf16.msra.mxu0 0
        %1901 = vmatprep.subr.bf16.mxu0 0
        %1902 = vmatpush1.bf16.msra.mxu0 0
        %1903 = vmatprep.mubr.bf16.mxu0 0
        %1904 = vmatmul.mubr.bf16.gmra.mrb[0].mxu0 %v1869
        %v1905 = vpop.f32.mrb[0].mxu0
        %v1906 = vadd.f32 0.0, %v1905
        %v1907 = vpop.f32.mrb[0].mxu0
        %v1908 = vpop.f32.mrb[0].mxu0
        %v1909 = vadd.f32 0.0, %v1908
        %v1910 = vpop.f32.mrb[0].mxu0
        %1911 = vdwg.mxu0
        %v1912 = vadd.f32 %v1726, %v1906
        %v1913 = vadd.f32 %v1729, %v1909
        %1914 = vrot.lane.b32.xlu0 %v1371, 32
        %v1915 = vpop.permute.xlu0 %1914
        %1916 = vrot.lane.b32.xlu0 %v1372, 32
        %v1917 = vpop.permute.xlu0 %1916
        %v1919 = vsel %vm1374, %v1915, 0
        %v1922 = vsel %vm1374, %v1917, 0
        %1924 = vmatprep.subr.bf16.mxu0 0
        %1925 = vmatpush1.bf16.xpose.msra.mxu0 %v1922
        %1926 = vmatprep.subr.bf16.mxu0 0
        %1927 = vmatpush1.bf16.xpose.msra.mxu0 0
        %1928 = vmatprep.subr.bf16.mxu0 0
        %1929 = vmatpush1.bf16.xpose.msra.mxu0 0
        %1930 = vmatprep.subr.bf16.mxu0 0
        %1931 = vmatpush1.bf16.xpose.msra.mxu0 0
        %1932 = vmatprep.subr.bf16.mxu0 0
        %1933 = vmatpush1.bf16.xpose.msra.mxu0 0
        %1934 = vmatprep.subr.bf16.mxu0 0
        %1935 = vmatpush1.bf16.xpose.msra.mxu0 0
        %1936 = vmatprep.subr.bf16.mxu0 0
        %1937 = vmatpush1.bf16.xpose.msra.mxu0 0
        %1938 = vmatprep.subr.bf16.mxu0 0
        %1939 = vmatpush1.bf16.xpose.msra.mxu0 0
        %1940 = vmatprep.subr.bf16.mxu0 0
        %1941 = vmatpush1.bf16.xpose.msra.mxu0 0
        %1942 = vmatprep.subr.bf16.mxu0 0
        %1943 = vmatpush1.bf16.xpose.msra.mxu0 0
        %1944 = vmatprep.subr.bf16.mxu0 0
        %1945 = vmatpush1.bf16.xpose.msra.mxu0 0
        %1946 = vmatprep.subr.bf16.mxu0 0
        %1947 = vmatpush1.bf16.xpose.msra.mxu0 0
        %1948 = vmatprep.subr.bf16.mxu0 0
        %1949 = vmatpush1.bf16.xpose.msra.mxu0 0
        %1950 = vmatprep.subr.bf16.mxu0 0
        %1951 = vmatpush1.bf16.xpose.msra.mxu0 0
        %1952 = vmatprep.subr.bf16.mxu0 0
        %1953 = vmatpush1.bf16.xpose.msra.mxu0 0
        %1954 = vmatprep.subr.bf16.mxu0 0
        %1955 = vmatpush1.bf16.xpose.msra.mxu0 0
        %1956 = vmatprep.mubr.bf16.mxu0 0
        %1957 = vmatmul.mubr.bf16.gmra.mrb[0].mxu0 %v1919
        %v1958 = vpop.f32.mrb[0].mxu0
        %v1959 = vadd.f32 0.0, %v1958
        %v1960 = vpop.f32.mrb[0].mxu0
        %v1961 = vpop.f32.mrb[0].mxu0
        %v1962 = vadd.f32 0.0, %v1961
        %v1963 = vpop.f32.mrb[0].mxu0
        %1964 = vdwg.mxu0
        %v1965 = vmul.f32 %v1959, 0.17677669
        %v1966 = vmul.f32 %v1962, 0.17677669
        %v1967 = vsel %vm1424, %v1965, -inf
        %1968 = vmax.xlane.f32.xlu0 %v1967
        %v1969 = vpop.xlane.xlu0 %1968
        %v1970 = vsel %vm1424, %v1966, -inf
        %1971 = vmax.xlane.f32.xlu0 %v1970
        %v1972 = vpop.xlane.xlu0 %1971
        %v1973 = vsub.f32 %v1965, %v1969
        %v1974 = vsub.f32 %v1966, %v1972
        %v1975 = vmul.f32 %v1973, 1.442695
        %v1976 = vpow.pop %v1975
        %v1977 = vmul.f32 %v1974, 1.442695
        %v1978 = vpow.pop %v1977
        %v1979 = vsel %vm1424, %v1976, 0.0
        %1980 = vadd.xlane.f32.xlu0 %v1979
        %v1981 = vpop.xlane.xlu0 %1980
        %v1982 = vsel %vm1424, %v1978, 0.0
        %1983 = vadd.xlane.f32.xlu0 %v1982
        %v1984 = vpop.xlane.xlu0 %1983
        %v1985 = vrcp.pop %v1981
        %v1986 = vrcp.pop %v1984
        %v1987 = vmul.f32 %v1976, %v1985
        %v1988 = vmul.f32 %v1978, %v1986
        %v1989 = vpack.c.bf16 %v1988, %v1987
        %1990 = vrot.lane.b32.xlu0 %v1373, 32
        %v1991 = vpop.permute.xlu0 %1990
        %v1994 = vsel %vm1424, %v1989, 0
        %1996 = vmatprep.subr.bf16.mxu0 0
        %1997 = vmatpush1.bf16.msra.mxu0 %v1991
        %1998 = vmatprep.subr.bf16.mxu0 0
        %1999 = vmatpush1.bf16.msra.mxu0 0
        %2000 = vmatprep.subr.bf16.mxu0 0
        %2001 = vmatpush1.bf16.msra.mxu0 0
        %2002 = vmatprep.subr.bf16.mxu0 0
        %2003 = vmatpush1.bf16.msra.mxu0 0
        %2004 = vmatprep.subr.bf16.mxu0 0
        %2005 = vmatpush1.bf16.msra.mxu0 0
        %2006 = vmatprep.subr.bf16.mxu0 0
        %2007 = vmatpush1.bf16.msra.mxu0 0
        %2008 = vmatprep.subr.bf16.mxu0 0
        %2009 = vmatpush1.bf16.msra.mxu0 0
        %2010 = vmatprep.subr.bf16.mxu0 0
        %2011 = vmatpush1.bf16.msra.mxu0 0
        %2012 = vmatprep.subr.bf16.mxu0 0
        %2013 = vmatpush1.bf16.msra.mxu0 0
        %2014 = vmatprep.subr.bf16.mxu0 0
        %2015 = vmatpush1.bf16.msra.mxu0 0
        %2016 = vmatprep.subr.bf16.mxu0 0
        %2017 = vmatpush1.bf16.msra.mxu0 0
        %2018 = vmatprep.subr.bf16.mxu0 0
        %2019 = vmatpush1.bf16.msra.mxu0 0
        %2020 = vmatprep.subr.bf16.mxu0 0
        %2021 = vmatpush1.bf16.msra.mxu0 0
        %2022 = vmatprep.subr.bf16.mxu0 0
        %2023 = vmatpush1.bf16.msra.mxu0 0
        %2024 = vmatprep.subr.bf16.mxu0 0
        %2025 = vmatpush1.bf16.msra.mxu0 0
        %2026 = vmatprep.subr.bf16.mxu0 0
        %2027 = vmatpush1.bf16.msra.mxu0 0
        %2028 = vmatprep.mubr.bf16.mxu0 0
        %2029 = vmatmul.mubr.bf16.gmra.mrb[0].mxu0 %v1994
        %v2030 = vpop.f32.mrb[0].mxu0
        %v2031 = vadd.f32 0.0, %v2030
        %v2032 = vpop.f32.mrb[0].mxu0
        %v2033 = vpop.f32.mrb[0].mxu0
        %v2034 = vadd.f32 0.0, %v2033
        %v2035 = vpop.f32.mrb[0].mxu0
        %2036 = vdwg.mxu0
        %v2037 = vpack.c.bf16 %v2034, %v2031
        %v2042 = vunpack.c.l.b16 %v1367
        %v2043 = vunpack.c.l.b16 %v1368
        %v2044 = vunpack.c.l.b16 %v1369
        %v2045 = vunpack.c.l.b16 %v1370
        %v2046 = vpack.c.b16 %v2043, %v2042
        %v2047 = vpack.c.b16 %v2045, %v2044
        %v2051 = vsel %vm1374, %v2037, 0
        %2053 = vmatprep.subr.bf16.mxu0 0
        %2054 = vmatpush1.bf16.msra.mxu0 %v2046
        %2055 = vmatprep.subr.bf16.mxu0 0
        %2056 = vmatpush1.bf16.msra.mxu0 %v2047
        %2057 = vmatprep.subr.bf16.mxu0 0
        %2058 = vmatpush1.bf16.msra.mxu0 0
        %2059 = vmatprep.subr.bf16.mxu0 0
        %2060 = vmatpush1.bf16.msra.mxu0 0
        %2061 = vmatprep.subr.bf16.mxu0 0
        %2062 = vmatpush1.bf16.msra.mxu0 0
        %2063 = vmatprep.subr.bf16.mxu0 0
        %2064 = vmatpush1.bf16.msra.mxu0 0
        %2065 = vmatprep.subr.bf16.mxu0 0
        %2066 = vmatpush1.bf16.msra.mxu0 0
        %2067 = vmatprep.subr.bf16.mxu0 0
        %2068 = vmatpush1.bf16.msra.mxu0 0
        %2069 = vmatprep.subr.bf16.mxu0 0
        %2070 = vmatpush1.bf16.msra.mxu0 0
        %2071 = vmatprep.subr.bf16.mxu0 0
        %2072 = vmatpush1.bf16.msra.mxu0 0
        %2073 = vmatprep.subr.bf16.mxu0 0
        %2074 = vmatpush1.bf16.msra.mxu0 0
        %2075 = vmatprep.subr.bf16.mxu0 0
        %2076 = vmatpush1.bf16.msra.mxu0 0
        %2077 = vmatprep.subr.bf16.mxu0 0
        %2078 = vmatpush1.bf16.msra.mxu0 0
        %2079 = vmatprep.subr.bf16.mxu0 0
        %2080 = vmatpush1.bf16.msra.mxu0 0
        %2081 = vmatprep.subr.bf16.mxu0 0
        %2082 = vmatpush1.bf16.msra.mxu0 0
        %2083 = vmatprep.subr.bf16.mxu0 0
        %2084 = vmatpush1.bf16.msra.mxu0 0
        %2085 = vmatprep.mubr.bf16.mxu0 0
        %2086 = vmatmul.mubr.bf16.gmra.mrb[0].mxu0 %v2051
        %v2087 = vpop.f32.mrb[0].mxu0
        %v2088 = vadd.f32 0.0, %v2087
        %v2089 = vpop.f32.mrb[0].mxu0
        %v2090 = vpop.f32.mrb[0].mxu0
        %v2091 = vadd.f32 0.0, %v2090
        %v2092 = vpop.f32.mrb[0].mxu0
        %2093 = vdwg.mxu0
        %v2094 = vadd.f32 %v1912, %v2088
        %v2095 = vadd.f32 %v1913, %v2091
        %v2096 = vadd.f32 %v1050, %v2094
        %v2097 = vadd.f32 %v1051, %v2095
        %v2098 = vld [vmem:[%s934] sm:$0x1]
        %v2100 = vlaneseq
        %v2101 = vshrl.u32 %v2100, 7
        %v2102 = vsub.s32 0, %v2101
        %v2103 = vrot.slane %v2098, %v2102
        %v2105 = vadd.f32 %v2096, %v2103
        %v2106 = vadd.f32 %v2097, %v2103
        %v2107 = vld [vmem:[%s937] sm:$0x1]
        %v2108 = vld [vmem:[%s940] sm:$0x1]
        %2109 = vadd.xlane.f32.xlu0 %v2105
        %v2110 = vpop.xlane.xlu0 %2109
        %2111 = vadd.xlane.f32.xlu0 %v2106
        %v2112 = vpop.xlane.xlu0 %2111
        %v2113 = vmul.f32 %v2110, %v1058
        %v2114 = vmul.f32 %v2112, %v1058
        %v2115 = vsub.f32 %v2105, %v2113
        %v2116 = vsub.f32 %v2106, %v2114
        %v2117 = vmul.f32 %v2115, %v2115
        %v2118 = vmul.f32 %v2116, %v2116
        %2119 = vadd.xlane.f32.xlu0 %v2117
        %v2120 = vpop.xlane.xlu0 %2119
        %2121 = vadd.xlane.f32.xlu0 %v2118
        %v2122 = vpop.xlane.xlu0 %2121
        %v2123 = vmul.f32 %v2120, %v1058
        %v2124 = vmul.f32 %v2122, %v1058
        %v2125 = vadd.f32 %v2123, 1e-05
        %v2126 = vadd.f32 %v2124, 1e-05
        %v2127 = vrsqrt.pop %v2125
        %v2128 = vrsqrt.pop %v2126
        %v2129 = vmul.f32 %v2115, %v2127
        %v2130 = vmul.f32 %v2116, %v2128
        %v2132 = vlaneseq
        %v2133 = vshrl.u32 %v2132, 7
        %v2134 = vsub.s32 0, %v2133
        %v2135 = vrot.slane %v2107, %v2134
        %v2137 = vmul.f32 %v2129, %v2135
        %v2138 = vmul.f32 %v2130, %v2135
        %v2140 = vlaneseq
        %v2141 = vshrl.u32 %v2140, 7
        %v2142 = vsub.s32 0, %v2141
        %v2143 = vrot.slane %v2108, %v2142
        %v2145 = vadd.f32 %v2137, %v2143
        %v2146 = vadd.f32 %v2138, %v2143
        %v2147 = vpack.c.bf16 %v2146, %v2145
        %v2148 = vld [vmem:[%s818] sm:$0xff]
        %v2149 = vld [vmem:[%s818 + $0x8] sm:$0xff]
        %v2150 = vld [vmem:[%s818 + $0x10] sm:$0xff]
        %v2151 = vld [vmem:[%s818 + $0x18] sm:$0xff]
        %v2152 = vld [vmem:[%s818 + $0x20] sm:$0xff]
        %v2153 = vld [vmem:[%s818 + $0x28] sm:$0xff]
        %v2154 = vld [vmem:[%s818 + $0x30] sm:$0xff]
        %v2155 = vld [vmem:[%s818 + $0x38] sm:$0xff]
        %v2156 = vld [vmem:[%s818 + $0x40] sm:$0xff]
        %v2157 = vld [vmem:[%s818 + $0x48] sm:$0xff]
        %v2158 = vld [vmem:[%s818 + $0x50] sm:$0xff]
        %v2159 = vld [vmem:[%s818 + $0x58] sm:$0xff]
        %v2160 = vld [vmem:[%s818 + $0x60] sm:$0xff]
        %v2161 = vld [vmem:[%s818 + $0x68] sm:$0xff]
        %v2162 = vld [vmem:[%s818 + $0x70] sm:$0xff]
        %v2163 = vld [vmem:[%s818 + $0x78] sm:$0xff]
        %v2164 = vld [vmem:[%s818 + $0x80] sm:$0xff]
        %v2165 = vld [vmem:[%s818 + $0x88] sm:$0xff]
        %v2166 = vld [vmem:[%s818 + $0x90] sm:$0xff]
        %v2167 = vld [vmem:[%s818 + $0x98] sm:$0xff]
        %v2168 = vld [vmem:[%s818 + $0xa0] sm:$0xff]
        %v2169 = vld [vmem:[%s818 + $0xa8] sm:$0xff]
        %v2170 = vld [vmem:[%s818 + $0xb0] sm:$0xff]
        %v2171 = vld [vmem:[%s818 + $0xb8] sm:$0xff]
        %v2172 = vld [vmem:[%s818 + $0xc0] sm:$0xff]
        %v2173 = vld [vmem:[%s818 + $0xc8] sm:$0xff]
        %v2174 = vld [vmem:[%s818 + $0xd0] sm:$0xff]
        %v2175 = vld [vmem:[%s818 + $0xd8] sm:$0xff]
        %v2176 = vld [vmem:[%s818 + $0xe0] sm:$0xff]
        %v2177 = vld [vmem:[%s818 + $0xe8] sm:$0xff]
        %v2178 = vld [vmem:[%s818 + $0xf0] sm:$0xff]
        %v2179 = vld [vmem:[%s818 + $0xf8] sm:$0xff]
        %v2180 = vld [vmem:[%s944] sm:$0xf]
        %v2182 = vlaneseq
        %v2183 = vshrl.u32 %v2182, 7
        %v2184 = vsub.s32 0, %v2183
        %v2185 = vrot.slane %v2180, %v2184
        %v2186 = vlaneseq
        %v2187 = vshrl.u32 %v2186, 7
        %v2188 = vsub.s32 1, %v2187
        %v2189 = vrot.slane %v2180, %v2188
        %v2190 = vlaneseq
        %v2191 = vshrl.u32 %v2190, 7
        %v2192 = vsub.s32 2, %v2191
        %v2193 = vrot.slane %v2180, %v2192
        %v2194 = vlaneseq
        %v2195 = vshrl.u32 %v2194, 7
        %v2196 = vsub.s32 3, %v2195
        %v2197 = vrot.slane %v2180, %v2196
        %v2234 = vunpack.c.l.b16 %v2148
        %v2235 = vunpack.c.h.b16 %v2148
        %v2236 = vunpack.c.l.b16 %v2149
        %v2237 = vunpack.c.h.b16 %v2149
        %v2238 = vunpack.c.l.b16 %v2150
        %v2239 = vunpack.c.h.b16 %v2150
        %v2240 = vunpack.c.l.b16 %v2151
        %v2241 = vunpack.c.h.b16 %v2151
        %v2242 = vunpack.c.l.b16 %v2152
        %v2243 = vunpack.c.h.b16 %v2152
        %v2244 = vunpack.c.l.b16 %v2153
        %v2245 = vunpack.c.h.b16 %v2153
        %v2246 = vunpack.c.l.b16 %v2154
        %v2247 = vunpack.c.h.b16 %v2154
        %v2248 = vunpack.c.l.b16 %v2155
        %v2249 = vunpack.c.h.b16 %v2155
        %v2250 = vunpack.c.l.b16 %v2156
        %v2251 = vunpack.c.h.b16 %v2156
        %v2252 = vunpack.c.l.b16 %v2157
        %v2253 = vunpack.c.h.b16 %v2157
        %v2254 = vunpack.c.l.b16 %v2158
        %v2255 = vunpack.c.h.b16 %v2158
        %v2256 = vunpack.c.l.b16 %v2159
        %v2257 = vunpack.c.h.b16 %v2159
        %v2258 = vunpack.c.l.b16 %v2160
        %v2259 = vunpack.c.h.b16 %v2160
        %v2260 = vunpack.c.l.b16 %v2161
        %v2261 = vunpack.c.h.b16 %v2161
        %v2262 = vunpack.c.l.b16 %v2162
        %v2263 = vunpack.c.h.b16 %v2162
        %v2264 = vunpack.c.l.b16 %v2163
        %v2265 = vunpack.c.h.b16 %v2163
        %v2266 = vunpack.c.l.b16 %v2164
        %v2267 = vunpack.c.h.b16 %v2164
        %v2268 = vunpack.c.l.b16 %v2165
        %v2269 = vunpack.c.h.b16 %v2165
        %v2270 = vunpack.c.l.b16 %v2166
        %v2271 = vunpack.c.h.b16 %v2166
        %v2272 = vunpack.c.l.b16 %v2167
        %v2273 = vunpack.c.h.b16 %v2167
        %v2274 = vunpack.c.l.b16 %v2168
        %v2275 = vunpack.c.h.b16 %v2168
        %v2276 = vunpack.c.l.b16 %v2169
        %v2277 = vunpack.c.h.b16 %v2169
        %v2278 = vunpack.c.l.b16 %v2170
        %v2279 = vunpack.c.h.b16 %v2170
        %v2280 = vunpack.c.l.b16 %v2171
        %v2281 = vunpack.c.h.b16 %v2171
        %v2282 = vunpack.c.l.b16 %v2172
        %v2283 = vunpack.c.h.b16 %v2172
        %v2284 = vunpack.c.l.b16 %v2173
        %v2285 = vunpack.c.h.b16 %v2173
        %v2286 = vunpack.c.l.b16 %v2174
        %v2287 = vunpack.c.h.b16 %v2174
        %v2288 = vunpack.c.l.b16 %v2175
        %v2289 = vunpack.c.h.b16 %v2175
        %v2290 = vunpack.c.l.b16 %v2176
        %v2291 = vunpack.c.h.b16 %v2176
        %v2292 = vunpack.c.l.b16 %v2177
        %v2293 = vunpack.c.h.b16 %v2177
        %v2294 = vunpack.c.l.b16 %v2178
        %v2295 = vunpack.c.h.b16 %v2178
        %v2296 = vunpack.c.l.b16 %v2179
        %v2297 = vunpack.c.h.b16 %v2179
        %v2298 = vpack.c.b16 %v2238, %v2234
        %v2299 = vpack.c.b16 %v2239, %v2235
        %v2300 = vpack.c.b16 %v2240, %v2236
        %v2301 = vpack.c.b16 %v2241, %v2237
        %v2302 = vpack.c.b16 %v2246, %v2242
        %v2303 = vpack.c.b16 %v2247, %v2243
        %v2304 = vpack.c.b16 %v2248, %v2244
        %v2305 = vpack.c.b16 %v2249, %v2245
        %v2306 = vpack.c.b16 %v2254, %v2250
        %v2307 = vpack.c.b16 %v2255, %v2251
        %v2308 = vpack.c.b16 %v2256, %v2252
        %v2309 = vpack.c.b16 %v2257, %v2253
        %v2310 = vpack.c.b16 %v2262, %v2258
        %v2311 = vpack.c.b16 %v2263, %v2259
        %v2312 = vpack.c.b16 %v2264, %v2260
        %v2313 = vpack.c.b16 %v2265, %v2261
        %v2314 = vpack.c.b16 %v2270, %v2266
        %v2315 = vpack.c.b16 %v2271, %v2267
        %v2316 = vpack.c.b16 %v2272, %v2268
        %v2317 = vpack.c.b16 %v2273, %v2269
        %v2318 = vpack.c.b16 %v2278, %v2274
        %v2319 = vpack.c.b16 %v2279, %v2275
        %v2320 = vpack.c.b16 %v2280, %v2276
        %v2321 = vpack.c.b16 %v2281, %v2277
        %v2322 = vpack.c.b16 %v2286, %v2282
        %v2323 = vpack.c.b16 %v2287, %v2283
        %v2324 = vpack.c.b16 %v2288, %v2284
        %v2325 = vpack.c.b16 %v2289, %v2285
        %v2326 = vpack.c.b16 %v2294, %v2290
        %v2327 = vpack.c.b16 %v2295, %v2291
        %v2328 = vpack.c.b16 %v2296, %v2292
        %v2329 = vpack.c.b16 %v2297, %v2293
        %2362 = vmatprep.subr.bf16.mxu0 %v2299
        %2363 = vmatpush1.bf16.msra.mxu0 %v2298
        %2364 = vmatprep.subr.bf16.mxu0 %v2303
        %2365 = vmatpush1.bf16.msra.mxu0 %v2302
        %2366 = vmatprep.subr.bf16.mxu0 %v2307
        %2367 = vmatpush1.bf16.msra.mxu0 %v2306
        %2368 = vmatprep.subr.bf16.mxu0 %v2311
        %2369 = vmatpush1.bf16.msra.mxu0 %v2310
        %2370 = vmatprep.subr.bf16.mxu0 %v2315
        %2371 = vmatpush1.bf16.msra.mxu0 %v2314
        %2372 = vmatprep.subr.bf16.mxu0 %v2319
        %2373 = vmatpush1.bf16.msra.mxu0 %v2318
        %2374 = vmatprep.subr.bf16.mxu0 %v2323
        %2375 = vmatpush1.bf16.msra.mxu0 %v2322
        %2376 = vmatprep.subr.bf16.mxu0 %v2327
        %2377 = vmatpush1.bf16.msra.mxu0 %v2326
        %2378 = vmatprep.subr.bf16.mxu0 0
        %2379 = vmatpush1.bf16.msra.mxu0 0
        %2380 = vmatprep.subr.bf16.mxu0 0
        %2381 = vmatpush1.bf16.msra.mxu0 0
        %2382 = vmatprep.subr.bf16.mxu0 0
        %2383 = vmatpush1.bf16.msra.mxu0 0
        %2384 = vmatprep.subr.bf16.mxu0 0
        %2385 = vmatpush1.bf16.msra.mxu0 0
        %2386 = vmatprep.subr.bf16.mxu0 0
        %2387 = vmatpush1.bf16.msra.mxu0 0
        %2388 = vmatprep.subr.bf16.mxu0 0
        %2389 = vmatpush1.bf16.msra.mxu0 0
        %2390 = vmatprep.subr.bf16.mxu0 0
        %2391 = vmatpush1.bf16.msra.mxu0 0
        %2392 = vmatprep.subr.bf16.mxu0 0
        %2393 = vmatpush1.bf16.msra.mxu0 0
        %2394 = vmatprep.mubr.bf16.mxu0 0
        %2395 = vmatmul.mubr.bf16.gmra.mrb[0].mxu0 %v2147
        %v2396 = vpop.f32.mrb[0].mxu0
        %v2397 = vadd.f32 %v2185, %v2396
        %v2398 = vpop.f32.mrb[0].mxu0
        %v2399 = vadd.f32 %v2189, %v2398
        %v2400 = vpop.f32.mrb[0].mxu0
        %v2401 = vadd.f32 %v2185, %v2400
        %v2402 = vpop.f32.mrb[0].mxu0
        %v2403 = vadd.f32 %v2189, %v2402
        %2404 = vdwg.mxu0
        %2405 = vmatprep.subr.bf16.mxu0 %v2301
        %2406 = vmatpush1.bf16.msra.mxu0 %v2300
        %2407 = vmatprep.subr.bf16.mxu0 %v2305
        %2408 = vmatpush1.bf16.msra.mxu0 %v2304
        %2409 = vmatprep.subr.bf16.mxu0 %v2309
        %2410 = vmatpush1.bf16.msra.mxu0 %v2308
        %2411 = vmatprep.subr.bf16.mxu0 %v2313
        %2412 = vmatpush1.bf16.msra.mxu0 %v2312
        %2413 = vmatprep.subr.bf16.mxu0 %v2317
        %2414 = vmatpush1.bf16.msra.mxu0 %v2316
        %2415 = vmatprep.subr.bf16.mxu0 %v2321
        %2416 = vmatpush1.bf16.msra.mxu0 %v2320
        %2417 = vmatprep.subr.bf16.mxu0 %v2325
        %2418 = vmatpush1.bf16.msra.mxu0 %v2324
        %2419 = vmatprep.subr.bf16.mxu0 %v2329
        %2420 = vmatpush1.bf16.msra.mxu0 %v2328
        %2421 = vmatprep.subr.bf16.mxu0 0
        %2422 = vmatpush1.bf16.msra.mxu0 0
        %2423 = vmatprep.subr.bf16.mxu0 0
        %2424 = vmatpush1.bf16.msra.mxu0 0
        %2425 = vmatprep.subr.bf16.mxu0 0
        %2426 = vmatpush1.bf16.msra.mxu0 0
        %2427 = vmatprep.subr.bf16.mxu0 0
        %2428 = vmatpush1.bf16.msra.mxu0 0
        %2429 = vmatprep.subr.bf16.mxu0 0
        %2430 = vmatpush1.bf16.msra.mxu0 0
        %2431 = vmatprep.subr.bf16.mxu0 0
        %2432 = vmatpush1.bf16.msra.mxu0 0
        %2433 = vmatprep.subr.bf16.mxu0 0
        %2434 = vmatpush1.bf16.msra.mxu0 0
        %2435 = vmatprep.subr.bf16.mxu0 0
        %2436 = vmatpush1.bf16.msra.mxu0 0
        %2437 = vmatprep.mubr.bf16.mxu0 0
        %2438 = vmatmul.mubr.bf16.gmra.mrb[0].mxu0 %v2147
        %v2439 = vpop.f32.mrb[0].mxu0
        %v2440 = vadd.f32 %v2193, %v2439
        %v2441 = vpop.f32.mrb[0].mxu0
        %v2442 = vadd.f32 %v2197, %v2441
        %v2443 = vpop.f32.mrb[0].mxu0
        %v2444 = vadd.f32 %v2193, %v2443
        %v2445 = vpop.f32.mrb[0].mxu0
        %v2446 = vadd.f32 %v2197, %v2445
        %2447 = vdwg.mxu0
        %v2448 = vmul.f32 %v2397, 0.5
        %v2449 = vmul.f32 %v2399, 0.5
        %v2450 = vmul.f32 %v2440, 0.5
        %v2451 = vmul.f32 %v2442, 0.5
        %v2452 = vmul.f32 %v2401, 0.5
        %v2453 = vmul.f32 %v2403, 0.5
        %v2454 = vmul.f32 %v2444, 0.5
        %v2455 = vmul.f32 %v2446, 0.5
        %v2456 = vmul.f32 %v2397, 0.70710677
        %v2457 = vmul.f32 %v2399, 0.70710677
        %v2458 = vmul.f32 %v2440, 0.70710677
        %v2459 = vmul.f32 %v2442, 0.70710677
        %v2460 = vmul.f32 %v2401, 0.70710677
        %v2461 = vmul.f32 %v2403, 0.70710677
        %v2462 = vmul.f32 %v2444, 0.70710677
        %v2463 = vmul.f32 %v2446, 0.70710677
        %v2464 = verf.f32.pop %v2456
        %v2465 = verf.f32.pop %v2457
        %v2466 = verf.f32.pop %v2458
        %v2467 = verf.f32.pop %v2459
        %v2468 = verf.f32.pop %v2460
        %v2469 = verf.f32.pop %v2461
        %v2470 = verf.f32.pop %v2462
        %v2471 = verf.f32.pop %v2463
        %v2472 = vadd.f32 %v2464, 1.0
        %v2473 = vadd.f32 %v2465, 1.0
        %v2474 = vadd.f32 %v2466, 1.0
        %v2475 = vadd.f32 %v2467, 1.0
        %v2476 = vadd.f32 %v2468, 1.0
        %v2477 = vadd.f32 %v2469, 1.0
        %v2478 = vadd.f32 %v2470, 1.0
        %v2479 = vadd.f32 %v2471, 1.0
        %v2480 = vmul.f32 %v2448, %v2472
        %v2481 = vmul.f32 %v2449, %v2473
        %v2482 = vmul.f32 %v2450, %v2474
        %v2483 = vmul.f32 %v2451, %v2475
        %v2484 = vmul.f32 %v2452, %v2476
        %v2485 = vmul.f32 %v2453, %v2477
        %v2486 = vmul.f32 %v2454, %v2478
        %v2487 = vmul.f32 %v2455, %v2479
        %v2488 = vpack.c.bf16 %v2484, %v2480
        %v2489 = vpack.c.bf16 %v2485, %v2481
        %v2490 = vpack.c.bf16 %v2486, %v2482
        %v2491 = vpack.c.bf16 %v2487, %v2483
        %v2492 = vld [vmem:[%s827] sm:$0xf]
        %v2493 = vld [vmem:[%s827 + $0x4] sm:$0xf]
        %v2494 = vld [vmem:[%s827 + $0x8] sm:$0xf]
        %v2495 = vld [vmem:[%s827 + $0xc] sm:$0xf]
        %v2496 = vld [vmem:[%s827 + $0x10] sm:$0xf]
        %v2497 = vld [vmem:[%s827 + $0x14] sm:$0xf]
        %v2498 = vld [vmem:[%s827 + $0x18] sm:$0xf]
        %v2499 = vld [vmem:[%s827 + $0x1c] sm:$0xf]
        %v2500 = vld [vmem:[%s827 + $0x20] sm:$0xf]
        %v2501 = vld [vmem:[%s827 + $0x24] sm:$0xf]
        %v2502 = vld [vmem:[%s827 + $0x28] sm:$0xf]
        %v2503 = vld [vmem:[%s827 + $0x2c] sm:$0xf]
        %v2504 = vld [vmem:[%s827 + $0x30] sm:$0xf]
        %v2505 = vld [vmem:[%s827 + $0x34] sm:$0xf]
        %v2506 = vld [vmem:[%s827 + $0x38] sm:$0xf]
        %v2507 = vld [vmem:[%s827 + $0x3c] sm:$0xf]
        %v2508 = vld [vmem:[%s827 + $0x40] sm:$0xf]
        %v2509 = vld [vmem:[%s827 + $0x44] sm:$0xf]
        %v2510 = vld [vmem:[%s827 + $0x48] sm:$0xf]
        %v2511 = vld [vmem:[%s827 + $0x4c] sm:$0xf]
        %v2512 = vld [vmem:[%s827 + $0x50] sm:$0xf]
        %v2513 = vld [vmem:[%s827 + $0x54] sm:$0xf]
        %v2514 = vld [vmem:[%s827 + $0x58] sm:$0xf]
        %v2515 = vld [vmem:[%s827 + $0x5c] sm:$0xf]
        %v2516 = vld [vmem:[%s827 + $0x60] sm:$0xf]
        %v2517 = vld [vmem:[%s827 + $0x64] sm:$0xf]
        %v2518 = vld [vmem:[%s827 + $0x68] sm:$0xf]
        %v2519 = vld [vmem:[%s827 + $0x6c] sm:$0xf]
        %v2520 = vld [vmem:[%s827 + $0x70] sm:$0xf]
        %v2521 = vld [vmem:[%s827 + $0x74] sm:$0xf]
        %v2522 = vld [vmem:[%s827 + $0x78] sm:$0xf]
        %v2523 = vld [vmem:[%s827 + $0x7c] sm:$0xf]
        %v2524 = vld [vmem:[%s827 + $0x80] sm:$0xf]
        %v2525 = vld [vmem:[%s827 + $0x84] sm:$0xf]
        %v2526 = vld [vmem:[%s827 + $0x88] sm:$0xf]
        %v2527 = vld [vmem:[%s827 + $0x8c] sm:$0xf]
        %v2528 = vld [vmem:[%s827 + $0x90] sm:$0xf]
        %v2529 = vld [vmem:[%s827 + $0x94] sm:$0xf]
        %v2530 = vld [vmem:[%s827 + $0x98] sm:$0xf]
        %v2531 = vld [vmem:[%s827 + $0x9c] sm:$0xf]
        %v2532 = vld [vmem:[%s827 + $0xa0] sm:$0xf]
        %v2533 = vld [vmem:[%s827 + $0xa4] sm:$0xf]
        %v2534 = vld [vmem:[%s827 + $0xa8] sm:$0xf]
        %v2535 = vld [vmem:[%s827 + $0xac] sm:$0xf]
        %v2536 = vld [vmem:[%s827 + $0xb0] sm:$0xf]
        %v2537 = vld [vmem:[%s827 + $0xb4] sm:$0xf]
        %v2538 = vld [vmem:[%s827 + $0xb8] sm:$0xf]
        %v2539 = vld [vmem:[%s827 + $0xbc] sm:$0xf]
        %v2540 = vld [vmem:[%s827 + $0xc0] sm:$0xf]
        %v2541 = vld [vmem:[%s827 + $0xc4] sm:$0xf]
        %v2542 = vld [vmem:[%s827 + $0xc8] sm:$0xf]
        %v2543 = vld [vmem:[%s827 + $0xcc] sm:$0xf]
        %v2544 = vld [vmem:[%s827 + $0xd0] sm:$0xf]
        %v2545 = vld [vmem:[%s827 + $0xd4] sm:$0xf]
        %v2546 = vld [vmem:[%s827 + $0xd8] sm:$0xf]
        %v2547 = vld [vmem:[%s827 + $0xdc] sm:$0xf]
        %v2548 = vld [vmem:[%s827 + $0xe0] sm:$0xf]
        %v2549 = vld [vmem:[%s827 + $0xe4] sm:$0xf]
        %v2550 = vld [vmem:[%s827 + $0xe8] sm:$0xf]
        %v2551 = vld [vmem:[%s827 + $0xec] sm:$0xf]
        %v2552 = vld [vmem:[%s827 + $0xf0] sm:$0xf]
        %v2553 = vld [vmem:[%s827 + $0xf4] sm:$0xf]
        %v2554 = vld [vmem:[%s827 + $0xf8] sm:$0xf]
        %v2555 = vld [vmem:[%s827 + $0xfc] sm:$0xf]
        %v2556 = vld [vmem:[%s947] sm:$0x1]
        %v2558 = vlaneseq
        %v2559 = vshrl.u32 %v2558, 7
        %v2560 = vsub.s32 0, %v2559
        %v2561 = vrot.slane %v2556, %v2560
        %v2627 = vunpack.c.l.b16 %v2492
        %v2628 = vunpack.c.l.b16 %v2493
        %v2629 = vunpack.c.l.b16 %v2494
        %v2630 = vunpack.c.l.b16 %v2495
        %v2631 = vunpack.c.l.b16 %v2496
        %v2632 = vunpack.c.l.b16 %v2497
        %v2633 = vunpack.c.l.b16 %v2498
        %v2634 = vunpack.c.l.b16 %v2499
        %v2635 = vunpack.c.l.b16 %v2500
        %v2636 = vunpack.c.l.b16 %v2501
        %v2637 = vunpack.c.l.b16 %v2502
        %v2638 = vunpack.c.l.b16 %v2503
        %v2639 = vunpack.c.l.b16 %v2504
        %v2640 = vunpack.c.l.b16 %v2505
        %v2641 = vunpack.c.l.b16 %v2506
        %v2642 = vunpack.c.l.b16 %v2507
        %v2643 = vunpack.c.l.b16 %v2508
        %v2644 = vunpack.c.l.b16 %v2509
        %v2645 = vunpack.c.l.b16 %v2510
        %v2646 = vunpack.c.l.b16 %v2511
        %v2647 = vunpack.c.l.b16 %v2512
        %v2648 = vunpack.c.l.b16 %v2513
        %v2649 = vunpack.c.l.b16 %v2514
        %v2650 = vunpack.c.l.b16 %v2515
        %v2651 = vunpack.c.l.b16 %v2516
        %v2652 = vunpack.c.l.b16 %v2517
        %v2653 = vunpack.c.l.b16 %v2518
        %v2654 = vunpack.c.l.b16 %v2519
        %v2655 = vunpack.c.l.b16 %v2520
        %v2656 = vunpack.c.l.b16 %v2521
        %v2657 = vunpack.c.l.b16 %v2522
        %v2658 = vunpack.c.l.b16 %v2523
        %v2659 = vunpack.c.l.b16 %v2524
        %v2660 = vunpack.c.l.b16 %v2525
        %v2661 = vunpack.c.l.b16 %v2526
        %v2662 = vunpack.c.l.b16 %v2527
        %v2663 = vunpack.c.l.b16 %v2528
        %v2664 = vunpack.c.l.b16 %v2529
        %v2665 = vunpack.c.l.b16 %v2530
        %v2666 = vunpack.c.l.b16 %v2531
        %v2667 = vunpack.c.l.b16 %v2532
        %v2668 = vunpack.c.l.b16 %v2533
        %v2669 = vunpack.c.l.b16 %v2534
        %v2670 = vunpack.c.l.b16 %v2535
        %v2671 = vunpack.c.l.b16 %v2536
        %v2672 = vunpack.c.l.b16 %v2537
        %v2673 = vunpack.c.l.b16 %v2538
        %v2674 = vunpack.c.l.b16 %v2539
        %v2675 = vunpack.c.l.b16 %v2540
        %v2676 = vunpack.c.l.b16 %v2541
        %v2677 = vunpack.c.l.b16 %v2542
        %v2678 = vunpack.c.l.b16 %v2543
        %v2679 = vunpack.c.l.b16 %v2544
        %v2680 = vunpack.c.l.b16 %v2545
        %v2681 = vunpack.c.l.b16 %v2546
        %v2682 = vunpack.c.l.b16 %v2547
        %v2683 = vunpack.c.l.b16 %v2548
        %v2684 = vunpack.c.l.b16 %v2549
        %v2685 = vunpack.c.l.b16 %v2550
        %v2686 = vunpack.c.l.b16 %v2551
        %v2687 = vunpack.c.l.b16 %v2552
        %v2688 = vunpack.c.l.b16 %v2553
        %v2689 = vunpack.c.l.b16 %v2554
        %v2690 = vunpack.c.l.b16 %v2555
        %v2691 = vpack.c.b16 %v2628, %v2627
        %v2692 = vpack.c.b16 %v2630, %v2629
        %v2693 = vpack.c.b16 %v2632, %v2631
        %v2694 = vpack.c.b16 %v2634, %v2633
        %v2695 = vpack.c.b16 %v2636, %v2635
        %v2696 = vpack.c.b16 %v2638, %v2637
        %v2697 = vpack.c.b16 %v2640, %v2639
        %v2698 = vpack.c.b16 %v2642, %v2641
        %v2699 = vpack.c.b16 %v2644, %v2643
        %v2700 = vpack.c.b16 %v2646, %v2645
        %v2701 = vpack.c.b16 %v2648, %v2647
        %v2702 = vpack.c.b16 %v2650, %v2649
        %v2703 = vpack.c.b16 %v2652, %v2651
        %v2704 = vpack.c.b16 %v2654, %v2653
        %v2705 = vpack.c.b16 %v2656, %v2655
        %v2706 = vpack.c.b16 %v2658, %v2657
        %v2707 = vpack.c.b16 %v2660, %v2659
        %v2708 = vpack.c.b16 %v2662, %v2661
        %v2709 = vpack.c.b16 %v2664, %v2663
        %v2710 = vpack.c.b16 %v2666, %v2665
        %v2711 = vpack.c.b16 %v2668, %v2667
        %v2712 = vpack.c.b16 %v2670, %v2669
        %v2713 = vpack.c.b16 %v2672, %v2671
        %v2714 = vpack.c.b16 %v2674, %v2673
        %v2715 = vpack.c.b16 %v2676, %v2675
        %v2716 = vpack.c.b16 %v2678, %v2677
        %v2717 = vpack.c.b16 %v2680, %v2679
        %v2718 = vpack.c.b16 %v2682, %v2681
        %v2719 = vpack.c.b16 %v2684, %v2683
        %v2720 = vpack.c.b16 %v2686, %v2685
        %v2721 = vpack.c.b16 %v2688, %v2687
        %v2722 = vpack.c.b16 %v2690, %v2689
        %2755 = vmatprep.subr.bf16.mxu0 0
        %2756 = vmatpush1.bf16.msra.mxu0 %v2691
        %2757 = vmatprep.subr.bf16.mxu0 0
        %2758 = vmatpush1.bf16.msra.mxu0 %v2692
        %2759 = vmatprep.subr.bf16.mxu0 0
        %2760 = vmatpush1.bf16.msra.mxu0 %v2693
        %2761 = vmatprep.subr.bf16.mxu0 0
        %2762 = vmatpush1.bf16.msra.mxu0 %v2694
        %2763 = vmatprep.subr.bf16.mxu0 0
        %2764 = vmatpush1.bf16.msra.mxu0 %v2695
        %2765 = vmatprep.subr.bf16.mxu0 0
        %2766 = vmatpush1.bf16.msra.mxu0 %v2696
        %2767 = vmatprep.subr.bf16.mxu0 0
        %2768 = vmatpush1.bf16.msra.mxu0 %v2697
        %2769 = vmatprep.subr.bf16.mxu0 0
        %2770 = vmatpush1.bf16.msra.mxu0 %v2698
        %2771 = vmatprep.subr.bf16.mxu0 0
        %2772 = vmatpush1.bf16.msra.mxu0 %v2699
        %2773 = vmatprep.subr.bf16.mxu0 0
        %2774 = vmatpush1.bf16.msra.mxu0 %v2700
        %2775 = vmatprep.subr.bf16.mxu0 0
        %2776 = vmatpush1.bf16.msra.mxu0 %v2701
        %2777 = vmatprep.subr.bf16.mxu0 0
        %2778 = vmatpush1.bf16.msra.mxu0 %v2702
        %2779 = vmatprep.subr.bf16.mxu0 0
        %2780 = vmatpush1.bf16.msra.mxu0 %v2703
        %2781 = vmatprep.subr.bf16.mxu0 0
        %2782 = vmatpush1.bf16.msra.mxu0 %v2704
        %2783 = vmatprep.subr.bf16.mxu0 0
        %2784 = vmatpush1.bf16.msra.mxu0 %v2705
        %2785 = vmatprep.subr.bf16.mxu0 0
        %2786 = vmatpush1.bf16.msra.mxu0 %v2706
        %2787 = vmatprep.mubr.bf16.mxu0 %v2489
        %2788 = vmatmul.mubr.bf16.gmra.mrb[0].mxu0 %v2488
        %v2789 = vpop.f32.mrb[0].mxu0
        %v2790 = vadd.f32 %v2561, %v2789
        %v2791 = vpop.f32.mrb[0].mxu0
        %v2792 = vpop.f32.mrb[0].mxu0
        %v2793 = vadd.f32 %v2561, %v2792
        %v2794 = vpop.f32.mrb[0].mxu0
        %2795 = vdwg.mxu0
        %2796 = vmatprep.subr.bf16.mxu0 0
        %2797 = vmatpush1.bf16.msra.mxu0 %v2707
        %2798 = vmatprep.subr.bf16.mxu0 0
        %2799 = vmatpush1.bf16.msra.mxu0 %v2708
        %2800 = vmatprep.subr.bf16.mxu0 0
        %2801 = vmatpush1.bf16.msra.mxu0 %v2709
        %2802 = vmatprep.subr.bf16.mxu0 0
        %2803 = vmatpush1.bf16.msra.mxu0 %v2710
        %2804 = vmatprep.subr.bf16.mxu0 0
        %2805 = vmatpush1.bf16.msra.mxu0 %v2711
        %2806 = vmatprep.subr.bf16.mxu0 0
        %2807 = vmatpush1.bf16.msra.mxu0 %v2712
        %2808 = vmatprep.subr.bf16.mxu0 0
        %2809 = vmatpush1.bf16.msra.mxu0 %v2713
        %2810 = vmatprep.subr.bf16.mxu0 0
        %2811 = vmatpush1.bf16.msra.mxu0 %v2714
        %2812 = vmatprep.subr.bf16.mxu0 0
        %2813 = vmatpush1.bf16.msra.mxu0 %v2715
        %2814 = vmatprep.subr.bf16.mxu0 0
        %2815 = vmatpush1.bf16.msra.mxu0 %v2716
        %2816 = vmatprep.subr.bf16.mxu0 0
        %2817 = vmatpush1.bf16.msra.mxu0 %v2717
        %2818 = vmatprep.subr.bf16.mxu0 0
        %2819 = vmatpush1.bf16.msra.mxu0 %v2718
        %2820 = vmatprep.subr.bf16.mxu0 0
        %2821 = vmatpush1.bf16.msra.mxu0 %v2719
        %2822 = vmatprep.subr.bf16.mxu0 0
        %2823 = vmatpush1.bf16.msra.mxu0 %v2720
        %2824 = vmatprep.subr.bf16.mxu0 0
        %2825 = vmatpush1.bf16.msra.mxu0 %v2721
        %2826 = vmatprep.subr.bf16.mxu0 0
        %2827 = vmatpush1.bf16.msra.mxu0 %v2722
        %2828 = vmatprep.mubr.bf16.mxu0 %v2491
        %2829 = vmatmul.mubr.bf16.gmra.mrb[0].mxu0 %v2490
        %v2830 = vpop.f32.mrb[0].mxu0
        %v2831 = vadd.f32 %v2790, %v2830
        %v2832 = vpop.f32.mrb[0].mxu0
        %v2833 = vpop.f32.mrb[0].mxu0
        %v2834 = vadd.f32 %v2793, %v2833
        %v2835 = vpop.f32.mrb[0].mxu0
        %2836 = vdwg.mxu0
        %v2837 = vadd.f32 %v2105, %v2831
        %v2838 = vadd.f32 %v2106, %v2834
        %2839 = vst [vmem:[#allocation2] sm:$0xff] %v2837
        %2840 = vst [vmem:[#allocation2 + $0x8] sm:$0xff] %v2838
        %p2841 = scmp.eq.s32.totalorder %s42, 2
        // Predicated region
        $region137: #{tpu_custom_call.1} parent=91 // pred_check
          %p2842 = pneg %p2841
        $region138: #{tpu_custom_call.1} parent=91 // pred_check_branch
          %2844 = sbr.rel (%p2842) target = $region140
        $region139: #{tpu_custom_call.1} parent=91 // pred_region
          %v2845 = vld [vmem:[%s16] sm:$0x1]
          %v2846 = vld [vmem:[%s17] sm:$0x1]
          %2847 = vadd.xlane.f32.xlu0 %v2837
          %v2848 = vpop.xlane.xlu0 %2847
          %2849 = vadd.xlane.f32.xlu0 %v2838
          %v2850 = vpop.xlane.xlu0 %2849
          %v2851 = vmul.f32 %v2848, %v1058
          %v2852 = vmul.f32 %v2850, %v1058
          %v2853 = vsub.f32 %v2837, %v2851
          %v2854 = vsub.f32 %v2838, %v2852
          %v2855 = vmul.f32 %v2853, %v2853
          %v2856 = vmul.f32 %v2854, %v2854
          %2857 = vadd.xlane.f32.xlu0 %v2855
          %v2858 = vpop.xlane.xlu0 %2857
          %2859 = vadd.xlane.f32.xlu0 %v2856
          %v2860 = vpop.xlane.xlu0 %2859
          %v2861 = vmul.f32 %v2858, %v1058
          %v2862 = vmul.f32 %v2860, %v1058
          %v2863 = vadd.f32 %v2861, 1e-05
          %v2864 = vadd.f32 %v2862, 1e-05
          %v2865 = vrsqrt.pop %v2863
          %v2866 = vrsqrt.pop %v2864
          %v2867 = vmul.f32 %v2853, %v2865
          %v2868 = vmul.f32 %v2854, %v2866
          %v2870 = vlaneseq
          %v2871 = vshrl.u32 %v2870, 7
          %v2872 = vsub.s32 0, %v2871
          %v2873 = vrot.slane %v2845, %v2872
          %v2875 = vmul.f32 %v2867, %v2873
          %v2876 = vmul.f32 %v2868, %v2873
          %v2878 = vlaneseq
          %v2879 = vshrl.u32 %v2878, 7
          %v2880 = vsub.s32 0, %v2879
          %v2881 = vrot.slane %v2846, %v2880
          %v2883 = vadd.f32 %v2875, %v2881
          %v2884 = vadd.f32 %v2876, %v2881
          %2885 = vst [vmem:[%s927] sm:$0xff] %v2883
          %2886 = vst [vmem:[%s927 + $0x8] sm:$0xff] %v2884
        $region140: #{tpu_custom_call.1} parent=91 // pred_fallthru
          _
        %s2887 = sand.u32 %s500, 1
        %s2888 = scalar_lea.sflag [#allocation5], %s2887
        %s2889 = sand.u32 %s500, 1
        %s2890 = smul.addr %s2889, 16
        %s2891 = scalar_lea.vmem [#allocation17], %s2890
        // Predicated region
        $region141: #{tpu_custom_call.1} parent=91 // pred_check
          %p2892 = pneg %p510
        $region142: #{tpu_custom_call.1} parent=91 // pred_check_branch
          %2894 = sbr.rel (%p2892) target = $region144
        $region143: #{tpu_custom_call.1} parent=91 // pred_region
          %s2896 = ssub.s32 256, 256
          %2897 = vsyncadd %s2888, %s2896
          %s2898 = smul.addr %s41, 2
          %s2899 = smul.addr %s2898, 128
          %s2900 = scalar_lea.hbm %s18, %s2899
          %s2901 = sshll.u32 %s2891, 4
          %s2902 = int_to_ptr.vmem [resolvable:$true] %s2901
          %2907 = dma.vmem_to_hbm [thread:$0]  %s2902, 256, %s2900, %s2888, 128, 128, 8
        $region144: #{tpu_custom_call.1} parent=91 // pred_fallthru
          _
      $region92: #{tpu_custom_call.1} parent=5 // pred_fallthru
        _
      %p2908 = scmp.le.s32.totalorder 2, %s32
      // Predicated region
      $region145: #{tpu_custom_call.1} parent=5 // pred_check
        %p2909 = pneg %p2908
      $region146: #{tpu_custom_call.1} parent=5 // pred_check_branch
        %2911 = sbr.rel (%p2909) target = $region148
      $region147: #{tpu_custom_call.1} parent=5 // pred_region
        %s2912 = ssub.s32 %s32, 2
        // Predicated region
        $region149: #{tpu_custom_call.1} parent=147 // pred_check
          %p2913 = pneg %p516
        $region150: #{tpu_custom_call.1} parent=147 // pred_check_branch
          %2915 = sbr.rel (%p2913) target = $region152
        $region151: #{tpu_custom_call.1} parent=147 // pred_region
          %s2916 = sand.u32 %s501, 1
          %s2917 = scalar_lea.sflag [#allocation5], %s2916
          %s2918 = sand.u32 %s501, 1
          %s2919 = smul.addr %s2918, 16
          %s2920 = scalar_lea.vmem [#allocation17], %s2919
          %2921 = dma.done %s2917, 256
        $region152: #{tpu_custom_call.1} parent=147 // pred_fallthru
          _
      $region148: #{tpu_custom_call.1} parent=5 // pred_fallthru
        _
    $region6: #{tpu_custom_call.1} parent=1 // loop_footer
      %s36 = sadd.s32 1, %s32
    $region7: #{tpu_custom_call.1} parent=1 // loop_footer_branch
      %31 = sbr.rel target = $region3
    $region8: #{tpu_custom_call.1} parent=1 // loop_exit
      _
    %2922 = vsyncpa [#allocation4], 1
    %s2923 = scalar_lea.sflag [#allocation4], 1
    %2924 = vsyncpa %s2923, 1
    %2925 = vsyncpa [#allocation7], 1
    %2926 = vsyncpa [#allocation10], 1
    %2927 = vsyncpa [#allocation5], 1
    %s2928 = scalar_lea.sflag [#allocation5], 1
    %2929 = vsyncpa %s2928, 1

</llo_original>
